<compile_context>
chip_gen: v7x
topology: tpu7x:2x2x1
jax: 0.10.0
libtpu: 0.0.40
codegen_flags: <defaults>
</compile_context>

<pallas_src>
import numpy as np
import jax
import jax.numpy as jnp
from jax.experimental import pallas as pl
from jax.experimental.pallas import tpu as pltpu

TIME_EMBEDDING_DIM = 32


def lstm_classifier_kernel(xg_ref, len_ref,
                           whh0_ref, wih1_ref, whh1_ref, b1_ref,
                           wcls_ref, bcls_ref,
                           out_ref):
    """Whole forward (2-layer masked LSTM + classifier) in one VMEM-resident kernel.

    xg_ref   : (T*B, 4H) f32   time-major gathered layer-0 input projection (emb@Wih0 + b0)
    len_ref  : (B, 1)    int32 sequence lengths
    whh0_ref : (H, 4H)   bf16  layer-0 recurrent weight
    wih1_ref : (H, 4H)   bf16  layer-1 input weight
    whh1_ref : (H, 4H)   bf16  layer-1 recurrent weight
    b1_ref   : (1, 4H)   f32   (b_ih1 + b_hh1)
    wcls_ref : (H, 128)  bf16  lane-padded classifier weight
    bcls_ref : (1, 128)  f32   lane-padded classifier bias
    out_ref  : (B, 128)  f32   lane-padded logits
    """
    H = whh0_ref.shape[0]
    B = len_ref.shape[0]
    TB = xg_ref.shape[0]
    T = TB // B

    lens = len_ref[...]                                    # (B, 1) int32
    b1 = jnp.broadcast_to(b1_ref[...], (B, 4 * H))         # hoisted broadcast

    h0 = jnp.zeros((B, H), jnp.float32)
    c0 = jnp.zeros((B, H), jnp.float32)
    h1 = jnp.zeros((B, H), jnp.float32)
    c1 = jnp.zeros((B, H), jnp.float32)

    def gates_to_state(gates, c_prev):
        # PyTorch LSTM gate order: i, f, g, o  (all math in f32)
        i = jax.nn.sigmoid(gates[:, 0:H])
        f = jax.nn.sigmoid(gates[:, H:2 * H])
        g = jnp.tanh(gates[:, 2 * H:3 * H])
        o = jax.nn.sigmoid(gates[:, 3 * H:4 * H])
        c_new = f * c_prev + i * g
        h_new = o * jnp.tanh(c_new)
        return h_new, c_new

    # --- time loop: fully unrolled (T is small & static) ---
    for t in range(T):
        # one packed-seq mask broadcast per step, reused by all 4 state updates
        mask = jnp.broadcast_to(lens > t, (B, H))

        # layer-1 recurrent half issued EARLY: depends only on h1_{t-1}, so it
        # overlaps with the layer-0 matmul + gate tail of this step.
        g1_rec = jnp.dot(h1.astype(jnp.bfloat16), whh1_ref[...],
                         preferred_element_type=jnp.float32)

        # layer 0: input half precomputed at prep time; only the recurrent half here
        g0 = (xg_ref[pl.ds(t * B, B), :]
              + jnp.dot(h0.astype(jnp.bfloat16), whh0_ref[...],
                        preferred_element_type=jnp.float32))
        h0n, c0n = gates_to_state(g0, c0)
        h0 = jnp.where(mask, h0n, h0)
        c0 = jnp.where(mask, c0n, c0)

        # layer 1: input half (K=H) depends on h0_t
        g1 = (g1_rec
              + jnp.dot(h0.astype(jnp.bfloat16), wih1_ref[...],
                        preferred_element_type=jnp.float32)
              + b1)
        h1n, c1n = gates_to_state(g1, c1)
        h1 = jnp.where(mask, h1n, h1)
        c1 = jnp.where(mask, c1n, c1)

    # classifier(h_n[-1]) -> lane-padded (B, 128) output (unmasked stores)
    out_ref[...] = (jnp.dot(h1.astype(jnp.bfloat16), wcls_ref[...],
                            preferred_element_type=jnp.float32)
                    + bcls_ref[...])


def prepare_params(params):
    """One-time parameter packing (NOT on the per-forward hot path)."""
    H = params["whh0"].shape[0]
    C = params["wcls"].shape[1]
    CP = 128  # lane-padded classifier width

    # Fold the embedding into the layer-0 input projection (Wih0 frozen at inference).
    emb_proj = (jnp.dot(params["embedding"].astype(jnp.float32),
                        params["wih0"].astype(jnp.float32),
                        precision=jax.lax.Precision.HIGHEST)
                + params["b0"].astype(jnp.float32))                     # (V, 4H) f32

    wcls = (jnp.zeros((H, CP), jnp.float32)
            .at[:, :C].set(params["wcls"].astype(jnp.float32))
            .astype(jnp.bfloat16))
    bcls = jnp.zeros((1, CP), jnp.float32).at[:, :C].set(params["bcls"].astype(jnp.float32))

    return {
        "emb_proj": emb_proj,
        "whh0": params["whh0"].astype(jnp.bfloat16),
        "wih1": params["wih1"].astype(jnp.bfloat16),
        "whh1": params["whh1"].astype(jnp.bfloat16),
        "b1": params["b1"].astype(jnp.float32),
        "wcls": wcls,
        "bcls": bcls,
        "num_classes": C,
    }


def baseline_lstm_forward(events, lengths, packed):
    """events: (B, T) int32, lengths: (B,) int32 -> logits (B, num_classes) f32."""
    B, T = events.shape
    H = packed["whh0"].shape[0]
    C = packed["num_classes"]

    # Gather the pre-projected layer-0 input directly time-major.
    xg = packed["emb_proj"][events.T].reshape(T * B, 4 * H)              # (T*B, 4H) f32
    len2d = lengths.astype(jnp.int32).reshape(B, 1)

    vmem_specs = [pl.BlockSpec(memory_space=pltpu.MemorySpace.VMEM) for _ in range(8)]
    out = pl.pallas_call(
        lstm_classifier_kernel,
        out_shape=jax.ShapeDtypeStruct((B, 128), jnp.float32),
        in_specs=vmem_specs,
        out_specs=pl.BlockSpec(memory_space=pltpu.MemorySpace.VMEM),
    )(xg, len2d, packed["whh0"], packed["wih1"], packed["whh1"],
      packed["b1"], packed["wcls"], packed["bcls"])
    return out[:, :C]


def reference_forward(events, lengths, params):
    """Numpy reference with the SAME operand precision (bf16 MXU operands, f32
    accumulation/state/gates, f32 embedding fold) so the tolerance check stays tight."""
    def rb(a):  # round to bf16, compute in f32 (mirrors MXU operand rounding)
        return np.asarray(jnp.asarray(np.asarray(a, np.float32)).astype(jnp.bfloat16)
                          .astype(jnp.float32))

    emb = np.asarray(params["embedding"], np.float32)[np.asarray(events)]   # (B, T, E)
    B, T, _ = emb.shape
    H = np.asarray(params["whh0"]).shape[0]
    lens = np.asarray(lengths)

    def sigmoid(v):
        return 1.0 / (1.0 + np.exp(-v))

    Wih0 = np.asarray(params["wih0"], np.float32)
    b0 = np.asarray(params["b0"], np.float32)
    Whh0 = rb(params["whh0"])
    Wih1 = rb(params["wih1"])
    Whh1 = rb(params["whh1"])
    b1 = np.asarray(params["b1"], np.float32)

    h = [np.zeros((B, H), np.float32) for _ in range(2)]
    c = [np.zeros((B, H), np.float32) for _ in range(2)]

    def step(gates, c_prev):
        i = sigmoid(gates[:, 0:H])
        f = sigmoid(gates[:, H:2 * H])
        g = np.tanh(gates[:, 2 * H:3 * H])
        o = sigmoid(gates[:, 3 * H:4 * H])
        cn = f * c_prev + i * g
        hn = o * np.tanh(cn)
        return hn, cn

    for t in range(T):
        mask = (lens > t)[:, None]
        xg = emb[:, t, :] @ Wih0 + b0                      # f32 fold (matches prep)
        g0 = xg + rb(h[0]) @ Whh0
        h0n, c0n = step(g0, c[0])
        h[0] = np.where(mask, h0n, h[0])
        c[0] = np.where(mask, c0n, c[0])

        g1 = rb(h[1]) @ Whh1 + rb(h[0]) @ Wih1 + b1
        h1n, c1n = step(g1, c[1])
        h[1] = np.where(mask, h1n, h[1])
        c[1] = np.where(mask, c1n, c[1])

    return (rb(h[1]) @ rb(params["wcls"])
            + np.asarray(params["bcls"], np.float32))


if __name__ == "__main__":
    B, T = 8, 10
    input_size, E, H, C = 784, TIME_EMBEDDING_DIM, 128, 10

    key = jax.random.PRNGKey(0)
    keys = jax.random.split(key, 12)
    bound = float(1.0 / np.sqrt(H))

    def u(k, shape, b):
        return jax.random.uniform(k, shape, jnp.float32, -b, b)

    params = {
        "embedding": jax.random.normal(keys[0], (input_size, E), jnp.float32),
        # PyTorch (4H, in) weights stored transposed as (in, 4H); biases = b_ih + b_hh.
        "wih0": u(keys[1], (E, 4 * H), bound),
        "whh0": u(keys[2], (H, 4 * H), bound),
        "b0": u(keys[3], (1, 4 * H), bound) + u(keys[4], (1, 4 * H), bound),
        "wih1": u(keys[5], (H, 4 * H), bound),
        "whh1": u(keys[6], (H, 4 * H), bound),
        "b1": u(keys[7], (1, 4 * H), bound) + u(keys[8], (1, 4 * H), bound),
        "wcls": u(keys[9], (H, C), bound),
        "bcls": u(keys[10], (1, C), bound),
    }

    events = jax.random.randint(keys[11], (B, T), 0, input_size, dtype=jnp.int32)
    # features arg of the PyTorch module is unused in forward; lengths give variable seq lens.
    lengths = jnp.array([10, 7, 5, 10, 3, 8, 1, 6], dtype=jnp.int32)

    packed = prepare_params(params)                      # one-time packing
    packed = jax.tree_util.tree_map(
        lambda x: jax.block_until_ready(x) if isinstance(x, jax.Array) else x, packed)

    out = baseline_lstm_forward(events, lengths, packed)
    out = jax.block_until_ready(out)

    ref = reference_forward(events, lengths, params)
    # bf16 MXU operand rounding is mirrored in the reference; remaining diff is f32
    # accumulation order + EUP transcendental rounding.
    assert np.allclose(np.asarray(out), ref, atol=1e-3, rtol=1e-3), "mismatch vs reference"
    print("KERNEL_OK")
</pallas_src>

<mosaic_0001>
module attributes {stable_mosaic.version = 11 : i64} {
  func.func @lstm_classifier_kernel(%arg0: memref<80x512xf32, #tpu.memory_space<vmem>>, %arg1: memref<8x1xi32, #tpu.memory_space<vmem>>, %arg2: memref<128x512xbf16, #tpu.memory_space<vmem>>, %arg3: memref<128x512xbf16, #tpu.memory_space<vmem>>, %arg4: memref<128x512xbf16, #tpu.memory_space<vmem>>, %arg5: memref<1x512xf32, #tpu.memory_space<vmem>>, %arg6: memref<128x128xbf16, #tpu.memory_space<vmem>>, %arg7: memref<1x128xf32, #tpu.memory_space<vmem>>, %arg8: memref<8x128xf32, #tpu.memory_space<vmem>>) attributes {dimension_semantics = [], scalar_prefetch = 0 : i64, scratch_operands = 0 : i64, tpu.core_type = #tpu.core_type<tc>} {
    %c0 = arith.constant 0 : index
    %c0_0 = arith.constant 0 : index
    %0 = vector.load %arg1[%c0, %c0_0] : memref<8x1xi32, #tpu.memory_space<vmem>>, vector<8x1xi32>
    %c0_1 = arith.constant 0 : index
    %c0_2 = arith.constant 0 : index
    %1 = vector.load %arg5[%c0_1, %c0_2] : memref<1x512xf32, #tpu.memory_space<vmem>>, vector<1x512xf32>
    %2 = vector.shape_cast %1 : vector<1x512xf32> to vector<1x512xf32>
    %3 = vector.broadcast %2 : vector<1x512xf32> to vector<8x512xf32>
    %cst = arith.constant 0.000000e+00 : f32
    %4 = vector.broadcast %cst : f32 to vector<8x128xf32>
    %cst_3 = arith.constant 0.000000e+00 : f32
    %5 = vector.broadcast %cst_3 : f32 to vector<8x128xf32>
    %cst_4 = arith.constant 0.000000e+00 : f32
    %6 = vector.broadcast %cst_4 : f32 to vector<8x128xf32>
    %cst_5 = arith.constant 0.000000e+00 : f32
    %7 = vector.broadcast %cst_5 : f32 to vector<8x128xf32>
    %c0_i32 = arith.constant 0 : i32
    %8 = vector.broadcast %c0_i32 : i32 to vector<8x1xi32>
    %9 = arith.cmpi sgt, %0, %8 : vector<8x1xi32>
    %10 = vector.shape_cast %9 : vector<8x1xi1> to vector<8x1xi1>
    %11 = vector.broadcast %10 : vector<8x1xi1> to vector<8x128xi1>
    %12 = arith.truncf %6 : vector<8x128xf32> to vector<8x128xbf16>
    %c0_6 = arith.constant 0 : index
    %c0_7 = arith.constant 0 : index
    %13 = vector.load %arg4[%c0_6, %c0_7] : memref<128x512xbf16, #tpu.memory_space<vmem>>, vector<128x512xbf16>
    %cst_8 = arith.constant dense<0.000000e+00> : vector<8x512xf32>
    %14 = tpu.matmul %12, %13, %cst_8 {dimension_numbers = #tpu.dot_dimension_numbers<[1], [0], [0], [1], [0, 0, 1, 1], [], []>} : vector<8x128xbf16>, vector<128x512xbf16>, vector<8x512xf32> -> vector<8x512xf32>
    %c0_9 = arith.constant 0 : index
    %c0_10 = arith.constant 0 : index
    %15 = vector.load %arg0[%c0_9, %c0_10] : memref<80x512xf32, #tpu.memory_space<vmem>>, vector<8x512xf32>
    %16 = arith.truncf %4 : vector<8x128xf32> to vector<8x128xbf16>
    %c0_11 = arith.constant 0 : index
    %c0_12 = arith.constant 0 : index
    %17 = vector.load %arg2[%c0_11, %c0_12] : memref<128x512xbf16, #tpu.memory_space<vmem>>, vector<128x512xbf16>
    %cst_13 = arith.constant dense<0.000000e+00> : vector<8x512xf32>
    %18 = tpu.matmul %16, %17, %cst_13 {dimension_numbers = #tpu.dot_dimension_numbers<[1], [0], [0], [1], [0, 0, 1, 1], [], []>} : vector<8x128xbf16>, vector<128x512xbf16>, vector<8x512xf32> -> vector<8x512xf32>
    %19 = arith.addf %15, %18 : vector<8x512xf32>
    %20 = vector.extract_strided_slice %19 {offsets = [0, 0], sizes = [8, 128], strides = [1, 1]} : vector<8x512xf32> to vector<8x128xf32>
    %21 = arith.negf %20 : vector<8x128xf32>
    %22 = math.exp %21 : vector<8x128xf32>
    %cst_14 = arith.constant 1.000000e+00 : f32
    %23 = vector.broadcast %cst_14 : f32 to vector<8x128xf32>
    %24 = arith.addf %23, %22 : vector<8x128xf32>
    %25 = arith.divf %23, %24 : vector<8x128xf32>
    %26 = vector.extract_strided_slice %19 {offsets = [0, 128], sizes = [8, 128], strides = [1, 1]} : vector<8x512xf32> to vector<8x128xf32>
    %27 = arith.negf %26 : vector<8x128xf32>
    %28 = math.exp %27 : vector<8x128xf32>
    %cst_15 = arith.constant 1.000000e+00 : f32
    %29 = vector.broadcast %cst_15 : f32 to vector<8x128xf32>
    %30 = arith.addf %29, %28 : vector<8x128xf32>
    %31 = arith.divf %29, %30 : vector<8x128xf32>
    %32 = vector.extract_strided_slice %19 {offsets = [0, 256], sizes = [8, 128], strides = [1, 1]} : vector<8x512xf32> to vector<8x128xf32>
    %33 = math.tanh %32 : vector<8x128xf32>
    %34 = vector.extract_strided_slice %19 {offsets = [0, 384], sizes = [8, 128], strides = [1, 1]} : vector<8x512xf32> to vector<8x128xf32>
    %35 = arith.negf %34 : vector<8x128xf32>
    %36 = math.exp %35 : vector<8x128xf32>
    %cst_16 = arith.constant 1.000000e+00 : f32
    %37 = vector.broadcast %cst_16 : f32 to vector<8x128xf32>
    %38 = arith.addf %37, %36 : vector<8x128xf32>
    %39 = arith.divf %37, %38 : vector<8x128xf32>
    %40 = arith.mulf %31, %5 : vector<8x128xf32>
    %41 = arith.mulf %25, %33 : vector<8x128xf32>
    %42 = arith.addf %40, %41 : vector<8x128xf32>
    %43 = math.tanh %42 : vector<8x128xf32>
    %44 = arith.mulf %39, %43 : vector<8x128xf32>
    %45 = arith.select %11, %44, %4 : vector<8x128xi1>, vector<8x128xf32>
    %46 = arith.select %11, %42, %5 : vector<8x128xi1>, vector<8x128xf32>
    %47 = arith.truncf %45 : vector<8x128xf32> to vector<8x128xbf16>
    %c0_17 = arith.constant 0 : index
    %c0_18 = arith.constant 0 : index
    %48 = vector.load %arg3[%c0_17, %c0_18] : memref<128x512xbf16, #tpu.memory_space<vmem>>, vector<128x512xbf16>
    %cst_19 = arith.constant dense<0.000000e+00> : vector<8x512xf32>
    %49 = tpu.matmul %47, %48, %cst_19 {dimension_numbers = #tpu.dot_dimension_numbers<[1], [0], [0], [1], [0, 0, 1, 1], [], []>} : vector<8x128xbf16>, vector<128x512xbf16>, vector<8x512xf32> -> vector<8x512xf32>
    %50 = arith.addf %14, %49 : vector<8x512xf32>
    %51 = arith.addf %50, %3 : vector<8x512xf32>
    %52 = vector.extract_strided_slice %51 {offsets = [0, 0], sizes = [8, 128], strides = [1, 1]} : vector<8x512xf32> to vector<8x128xf32>
    %53 = arith.negf %52 : vector<8x128xf32>
    %54 = math.exp %53 : vector<8x128xf32>
    %cst_20 = arith.constant 1.000000e+00 : f32
    %55 = vector.broadcast %cst_20 : f32 to vector<8x128xf32>
    %56 = arith.addf %55, %54 : vector<8x128xf32>
    %57 = arith.divf %55, %56 : vector<8x128xf32>
    %58 = vector.extract_strided_slice %51 {offsets = [0, 128], sizes = [8, 128], strides = [1, 1]} : vector<8x512xf32> to vector<8x128xf32>
    %59 = arith.negf %58 : vector<8x128xf32>
    %60 = math.exp %59 : vector<8x128xf32>
    %cst_21 = arith.constant 1.000000e+00 : f32
    %61 = vector.broadcast %cst_21 : f32 to vector<8x128xf32>
    %62 = arith.addf %61, %60 : vector<8x128xf32>
    %63 = arith.divf %61, %62 : vector<8x128xf32>
    %64 = vector.extract_strided_slice %51 {offsets = [0, 256], sizes = [8, 128], strides = [1, 1]} : vector<8x512xf32> to vector<8x128xf32>
    %65 = math.tanh %64 : vector<8x128xf32>
    %66 = vector.extract_strided_slice %51 {offsets = [0, 384], sizes = [8, 128], strides = [1, 1]} : vector<8x512xf32> to vector<8x128xf32>
    %67 = arith.negf %66 : vector<8x128xf32>
    %68 = math.exp %67 : vector<8x128xf32>
    %cst_22 = arith.constant 1.000000e+00 : f32
    %69 = vector.broadcast %cst_22 : f32 to vector<8x128xf32>
    %70 = arith.addf %69, %68 : vector<8x128xf32>
    %71 = arith.divf %69, %70 : vector<8x128xf32>
    %72 = arith.mulf %63, %7 : vector<8x128xf32>
    %73 = arith.mulf %57, %65 : vector<8x128xf32>
    %74 = arith.addf %72, %73 : vector<8x128xf32>
    %75 = math.tanh %74 : vector<8x128xf32>
    %76 = arith.mulf %71, %75 : vector<8x128xf32>
    %77 = arith.select %11, %76, %6 : vector<8x128xi1>, vector<8x128xf32>
    %78 = arith.select %11, %74, %7 : vector<8x128xi1>, vector<8x128xf32>
    %c1_i32 = arith.constant 1 : i32
    %79 = vector.broadcast %c1_i32 : i32 to vector<8x1xi32>
    %80 = arith.cmpi sgt, %0, %79 : vector<8x1xi32>
    %81 = vector.shape_cast %80 : vector<8x1xi1> to vector<8x1xi1>
    %82 = vector.broadcast %81 : vector<8x1xi1> to vector<8x128xi1>
    %83 = arith.truncf %77 : vector<8x128xf32> to vector<8x128xbf16>
    %c0_23 = arith.constant 0 : index
    %c0_24 = arith.constant 0 : index
    %84 = vector.load %arg4[%c0_23, %c0_24] : memref<128x512xbf16, #tpu.memory_space<vmem>>, vector<128x512xbf16>
    %cst_25 = arith.constant dense<0.000000e+00> : vector<8x512xf32>
    %85 = tpu.matmul %83, %84, %cst_25 {dimension_numbers = #tpu.dot_dimension_numbers<[1], [0], [0], [1], [0, 0, 1, 1], [], []>} : vector<8x128xbf16>, vector<128x512xbf16>, vector<8x512xf32> -> vector<8x512xf32>
    %c8 = arith.constant 8 : index
    %c0_26 = arith.constant 0 : index
    %86 = vector.load %arg0[%c8, %c0_26] : memref<80x512xf32, #tpu.memory_space<vmem>>, vector<8x512xf32>
    %87 = arith.truncf %45 : vector<8x128xf32> to vector<8x128xbf16>
    %c0_27 = arith.constant 0 : index
    %c0_28 = arith.constant 0 : index
    %88 = vector.load %arg2[%c0_27, %c0_28] : memref<128x512xbf16, #tpu.memory_space<vmem>>, vector<128x512xbf16>
    %cst_29 = arith.constant dense<0.000000e+00> : vector<8x512xf32>
    %89 = tpu.matmul %87, %88, %cst_29 {dimension_numbers = #tpu.dot_dimension_numbers<[1], [0], [0], [1], [0, 0, 1, 1], [], []>} : vector<8x128xbf16>, vector<128x512xbf16>, vector<8x512xf32> -> vector<8x512xf32>
    %90 = arith.addf %86, %89 : vector<8x512xf32>
    %91 = vector.extract_strided_slice %90 {offsets = [0, 0], sizes = [8, 128], strides = [1, 1]} : vector<8x512xf32> to vector<8x128xf32>
    %92 = arith.negf %91 : vector<8x128xf32>
    %93 = math.exp %92 : vector<8x128xf32>
    %cst_30 = arith.constant 1.000000e+00 : f32
    %94 = vector.broadcast %cst_30 : f32 to vector<8x128xf32>
    %95 = arith.addf %94, %93 : vector<8x128xf32>
    %96 = arith.divf %94, %95 : vector<8x128xf32>
    %97 = vector.extract_strided_slice %90 {offsets = [0, 128], sizes = [8, 128], strides = [1, 1]} : vector<8x512xf32> to vector<8x128xf32>
    %98 = arith.negf %97 : vector<8x128xf32>
    %99 = math.exp %98 : vector<8x128xf32>
    %cst_31 = arith.constant 1.000000e+00 : f32
    %100 = vector.broadcast %cst_31 : f32 to vector<8x128xf32>
    %101 = arith.addf %100, %99 : vector<8x128xf32>
    %102 = arith.divf %100, %101 : vector<8x128xf32>
    %103 = vector.extract_strided_slice %90 {offsets = [0, 256], sizes = [8, 128], strides = [1, 1]} : vector<8x512xf32> to vector<8x128xf32>
    %104 = math.tanh %103 : vector<8x128xf32>
    %105 = vector.extract_strided_slice %90 {offsets = [0, 384], sizes = [8, 128], strides = [1, 1]} : vector<8x512xf32> to vector<8x128xf32>
    %106 = arith.negf %105 : vector<8x128xf32>
    %107 = math.exp %106 : vector<8x128xf32>
    %cst_32 = arith.constant 1.000000e+00 : f32
    %108 = vector.broadcast %cst_32 : f32 to vector<8x128xf32>
    %109 = arith.addf %108, %107 : vector<8x128xf32>
    %110 = arith.divf %108, %109 : vector<8x128xf32>
    %111 = arith.mulf %102, %46 : vector<8x128xf32>
    %112 = arith.mulf %96, %104 : vector<8x128xf32>
    %113 = arith.addf %111, %112 : vector<8x128xf32>
    %114 = math.tanh %113 : vector<8x128xf32>
    %115 = arith.mulf %110, %114 : vector<8x128xf32>
    %116 = arith.select %82, %115, %45 : vector<8x128xi1>, vector<8x128xf32>
    %117 = arith.select %82, %113, %46 : vector<8x128xi1>, vector<8x128xf32>
    %118 = arith.truncf %116 : vector<8x128xf32> to vector<8x128xbf16>
    %c0_33 = arith.constant 0 : index
    %c0_34 = arith.constant 0 : index
    %119 = vector.load %arg3[%c0_33, %c0_34] : memref<128x512xbf16, #tpu.memory_space<vmem>>, vector<128x512xbf16>
    %cst_35 = arith.constant dense<0.000000e+00> : vector<8x512xf32>
    %120 = tpu.matmul %118, %119, %cst_35 {dimension_numbers = #tpu.dot_dimension_numbers<[1], [0], [0], [1], [0, 0, 1, 1], [], []>} : vector<8x128xbf16>, vector<128x512xbf16>, vector<8x512xf32> -> vector<8x512xf32>
    %121 = arith.addf %85, %120 : vector<8x512xf32>
    %122 = arith.addf %121, %3 : vector<8x512xf32>
    %123 = vector.extract_strided_slice %122 {offsets = [0, 0], sizes = [8, 128], strides = [1, 1]} : vector<8x512xf32> to vector<8x128xf32>
    %124 = arith.negf %123 : vector<8x128xf32>
    %125 = math.exp %124 : vector<8x128xf32>
    %cst_36 = arith.constant 1.000000e+00 : f32
    %126 = vector.broadcast %cst_36 : f32 to vector<8x128xf32>
    %127 = arith.addf %126, %125 : vector<8x128xf32>
    %128 = arith.divf %126, %127 : vector<8x128xf32>
    %129 = vector.extract_strided_slice %122 {offsets = [0, 128], sizes = [8, 128], strides = [1, 1]} : vector<8x512xf32> to vector<8x128xf32>
    %130 = arith.negf %129 : vector<8x128xf32>
    %131 = math.exp %130 : vector<8x128xf32>
    %cst_37 = arith.constant 1.000000e+00 : f32
    %132 = vector.broadcast %cst_37 : f32 to vector<8x128xf32>
    %133 = arith.addf %132, %131 : vector<8x128xf32>
    %134 = arith.divf %132, %133 : vector<8x128xf32>
    %135 = vector.extract_strided_slice %122 {offsets = [0, 256], sizes = [8, 128], strides = [1, 1]} : vector<8x512xf32> to vector<8x128xf32>
    %136 = math.tanh %135 : vector<8x128xf32>
    %137 = vector.extract_strided_slice %122 {offsets = [0, 384], sizes = [8, 128], strides = [1, 1]} : vector<8x512xf32> to vector<8x128xf32>
    %138 = arith.negf %137 : vector<8x128xf32>
    %139 = math.exp %138 : vector<8x128xf32>
    %cst_38 = arith.constant 1.000000e+00 : f32
    %140 = vector.broadcast %cst_38 : f32 to vector<8x128xf32>
    %141 = arith.addf %140, %139 : vector<8x128xf32>
    %142 = arith.divf %140, %141 : vector<8x128xf32>
    %143 = arith.mulf %134, %78 : vector<8x128xf32>
    %144 = arith.mulf %128, %136 : vector<8x128xf32>
    %145 = arith.addf %143, %144 : vector<8x128xf32>
    %146 = math.tanh %145 : vector<8x128xf32>
    %147 = arith.mulf %142, %146 : vector<8x128xf32>
    %148 = arith.select %82, %147, %77 : vector<8x128xi1>, vector<8x128xf32>
    %149 = arith.select %82, %145, %78 : vector<8x128xi1>, vector<8x128xf32>
    %c2_i32 = arith.constant 2 : i32
    %150 = vector.broadcast %c2_i32 : i32 to vector<8x1xi32>
    %151 = arith.cmpi sgt, %0, %150 : vector<8x1xi32>
    %152 = vector.shape_cast %151 : vector<8x1xi1> to vector<8x1xi1>
    %153 = vector.broadcast %152 : vector<8x1xi1> to vector<8x128xi1>
    %154 = arith.truncf %148 : vector<8x128xf32> to vector<8x128xbf16>
    %c0_39 = arith.constant 0 : index
    %c0_40 = arith.constant 0 : index
    %155 = vector.load %arg4[%c0_39, %c0_40] : memref<128x512xbf16, #tpu.memory_space<vmem>>, vector<128x512xbf16>
    %cst_41 = arith.constant dense<0.000000e+00> : vector<8x512xf32>
    %156 = tpu.matmul %154, %155, %cst_41 {dimension_numbers = #tpu.dot_dimension_numbers<[1], [0], [0], [1], [0, 0, 1, 1], [], []>} : vector<8x128xbf16>, vector<128x512xbf16>, vector<8x512xf32> -> vector<8x512xf32>
    %c16 = arith.constant 16 : index
    %c0_42 = arith.constant 0 : index
    %157 = vector.load %arg0[%c16, %c0_42] : memref<80x512xf32, #tpu.memory_space<vmem>>, vector<8x512xf32>
    %158 = arith.truncf %116 : vector<8x128xf32> to vector<8x128xbf16>
    %c0_43 = arith.constant 0 : index
    %c0_44 = arith.constant 0 : index
    %159 = vector.load %arg2[%c0_43, %c0_44] : memref<128x512xbf16, #tpu.memory_space<vmem>>, vector<128x512xbf16>
    %cst_45 = arith.constant dense<0.000000e+00> : vector<8x512xf32>
    %160 = tpu.matmul %158, %159, %cst_45 {dimension_numbers = #tpu.dot_dimension_numbers<[1], [0], [0], [1], [0, 0, 1, 1], [], []>} : vector<8x128xbf16>, vector<128x512xbf16>, vector<8x512xf32> -> vector<8x512xf32>
    %161 = arith.addf %157, %160 : vector<8x512xf32>
    %162 = vector.extract_strided_slice %161 {offsets = [0, 0], sizes = [8, 128], strides = [1, 1]} : vector<8x512xf32> to vector<8x128xf32>
    %163 = arith.negf %162 : vector<8x128xf32>
    %164 = math.exp %163 : vector<8x128xf32>
    %cst_46 = arith.constant 1.000000e+00 : f32
    %165 = vector.broadcast %cst_46 : f32 to vector<8x128xf32>
    %166 = arith.addf %165, %164 : vector<8x128xf32>
    %167 = arith.divf %165, %166 : vector<8x128xf32>
    %168 = vector.extract_strided_slice %161 {offsets = [0, 128], sizes = [8, 128], strides = [1, 1]} : vector<8x512xf32> to vector<8x128xf32>
    %169 = arith.negf %168 : vector<8x128xf32>
    %170 = math.exp %169 : vector<8x128xf32>
    %cst_47 = arith.constant 1.000000e+00 : f32
    %171 = vector.broadcast %cst_47 : f32 to vector<8x128xf32>
    %172 = arith.addf %171, %170 : vector<8x128xf32>
    %173 = arith.divf %171, %172 : vector<8x128xf32>
    %174 = vector.extract_strided_slice %161 {offsets = [0, 256], sizes = [8, 128], strides = [1, 1]} : vector<8x512xf32> to vector<8x128xf32>
    %175 = math.tanh %174 : vector<8x128xf32>
    %176 = vector.extract_strided_slice %161 {offsets = [0, 384], sizes = [8, 128], strides = [1, 1]} : vector<8x512xf32> to vector<8x128xf32>
    %177 = arith.negf %176 : vector<8x128xf32>
    %178 = math.exp %177 : vector<8x128xf32>
    %cst_48 = arith.constant 1.000000e+00 : f32
    %179 = vector.broadcast %cst_48 : f32 to vector<8x128xf32>
    %180 = arith.addf %179, %178 : vector<8x128xf32>
    %181 = arith.divf %179, %180 : vector<8x128xf32>
    %182 = arith.mulf %173, %117 : vector<8x128xf32>
    %183 = arith.mulf %167, %175 : vector<8x128xf32>
    %184 = arith.addf %182, %183 : vector<8x128xf32>
    %185 = math.tanh %184 : vector<8x128xf32>
    %186 = arith.mulf %181, %185 : vector<8x128xf32>
    %187 = arith.select %153, %186, %116 : vector<8x128xi1>, vector<8x128xf32>
    %188 = arith.select %153, %184, %117 : vector<8x128xi1>, vector<8x128xf32>
    %189 = arith.truncf %187 : vector<8x128xf32> to vector<8x128xbf16>
    %c0_49 = arith.constant 0 : index
    %c0_50 = arith.constant 0 : index
    %190 = vector.load %arg3[%c0_49, %c0_50] : memref<128x512xbf16, #tpu.memory_space<vmem>>, vector<128x512xbf16>
    %cst_51 = arith.constant dense<0.000000e+00> : vector<8x512xf32>
    %191 = tpu.matmul %189, %190, %cst_51 {dimension_numbers = #tpu.dot_dimension_numbers<[1], [0], [0], [1], [0, 0, 1, 1], [], []>} : vector<8x128xbf16>, vector<128x512xbf16>, vector<8x512xf32> -> vector<8x512xf32>
    %192 = arith.addf %156, %191 : vector<8x512xf32>
    %193 = arith.addf %192, %3 : vector<8x512xf32>
    %194 = vector.extract_strided_slice %193 {offsets = [0, 0], sizes = [8, 128], strides = [1, 1]} : vector<8x512xf32> to vector<8x128xf32>
    %195 = arith.negf %194 : vector<8x128xf32>
    %196 = math.exp %195 : vector<8x128xf32>
    %cst_52 = arith.constant 1.000000e+00 : f32
    %197 = vector.broadcast %cst_52 : f32 to vector<8x128xf32>
    %198 = arith.addf %197, %196 : vector<8x128xf32>
    %199 = arith.divf %197, %198 : vector<8x128xf32>
    %200 = vector.extract_strided_slice %193 {offsets = [0, 128], sizes = [8, 128], strides = [1, 1]} : vector<8x512xf32> to vector<8x128xf32>
    %201 = arith.negf %200 : vector<8x128xf32>
    %202 = math.exp %201 : vector<8x128xf32>
    %cst_53 = arith.constant 1.000000e+00 : f32
    %203 = vector.broadcast %cst_53 : f32 to vector<8x128xf32>
    %204 = arith.addf %203, %202 : vector<8x128xf32>
    %205 = arith.divf %203, %204 : vector<8x128xf32>
    %206 = vector.extract_strided_slice %193 {offsets = [0, 256], sizes = [8, 128], strides = [1, 1]} : vector<8x512xf32> to vector<8x128xf32>
    %207 = math.tanh %206 : vector<8x128xf32>
    %208 = vector.extract_strided_slice %193 {offsets = [0, 384], sizes = [8, 128], strides = [1, 1]} : vector<8x512xf32> to vector<8x128xf32>
    %209 = arith.negf %208 : vector<8x128xf32>
    %210 = math.exp %209 : vector<8x128xf32>
    %cst_54 = arith.constant 1.000000e+00 : f32
    %211 = vector.broadcast %cst_54 : f32 to vector<8x128xf32>
    %212 = arith.addf %211, %210 : vector<8x128xf32>
    %213 = arith.divf %211, %212 : vector<8x128xf32>
    %214 = arith.mulf %205, %149 : vector<8x128xf32>
    %215 = arith.mulf %199, %207 : vector<8x128xf32>
    %216 = arith.addf %214, %215 : vector<8x128xf32>
    %217 = math.tanh %216 : vector<8x128xf32>
    %218 = arith.mulf %213, %217 : vector<8x128xf32>
    %219 = arith.select %153, %218, %148 : vector<8x128xi1>, vector<8x128xf32>
    %220 = arith.select %153, %216, %149 : vector<8x128xi1>, vector<8x128xf32>
    %c3_i32 = arith.constant 3 : i32
    %221 = vector.broadcast %c3_i32 : i32 to vector<8x1xi32>
    %222 = arith.cmpi sgt, %0, %221 : vector<8x1xi32>
    %223 = vector.shape_cast %222 : vector<8x1xi1> to vector<8x1xi1>
    %224 = vector.broadcast %223 : vector<8x1xi1> to vector<8x128xi1>
    %225 = arith.truncf %219 : vector<8x128xf32> to vector<8x128xbf16>
    %c0_55 = arith.constant 0 : index
    %c0_56 = arith.constant 0 : index
    %226 = vector.load %arg4[%c0_55, %c0_56] : memref<128x512xbf16, #tpu.memory_space<vmem>>, vector<128x512xbf16>
    %cst_57 = arith.constant dense<0.000000e+00> : vector<8x512xf32>
    %227 = tpu.matmul %225, %226, %cst_57 {dimension_numbers = #tpu.dot_dimension_numbers<[1], [0], [0], [1], [0, 0, 1, 1], [], []>} : vector<8x128xbf16>, vector<128x512xbf16>, vector<8x512xf32> -> vector<8x512xf32>
    %c24 = arith.constant 24 : index
    %c0_58 = arith.constant 0 : index
    %228 = vector.load %arg0[%c24, %c0_58] : memref<80x512xf32, #tpu.memory_space<vmem>>, vector<8x512xf32>
    %229 = arith.truncf %187 : vector<8x128xf32> to vector<8x128xbf16>
    %c0_59 = arith.constant 0 : index
    %c0_60 = arith.constant 0 : index
    %230 = vector.load %arg2[%c0_59, %c0_60] : memref<128x512xbf16, #tpu.memory_space<vmem>>, vector<128x512xbf16>
    %cst_61 = arith.constant dense<0.000000e+00> : vector<8x512xf32>
    %231 = tpu.matmul %229, %230, %cst_61 {dimension_numbers = #tpu.dot_dimension_numbers<[1], [0], [0], [1], [0, 0, 1, 1], [], []>} : vector<8x128xbf16>, vector<128x512xbf16>, vector<8x512xf32> -> vector<8x512xf32>
    %232 = arith.addf %228, %231 : vector<8x512xf32>
    %233 = vector.extract_strided_slice %232 {offsets = [0, 0], sizes = [8, 128], strides = [1, 1]} : vector<8x512xf32> to vector<8x128xf32>
    %234 = arith.negf %233 : vector<8x128xf32>
    %235 = math.exp %234 : vector<8x128xf32>
    %cst_62 = arith.constant 1.000000e+00 : f32
    %236 = vector.broadcast %cst_62 : f32 to vector<8x128xf32>
    %237 = arith.addf %236, %235 : vector<8x128xf32>
    %238 = arith.divf %236, %237 : vector<8x128xf32>
    %239 = vector.extract_strided_slice %232 {offsets = [0, 128], sizes = [8, 128], strides = [1, 1]} : vector<8x512xf32> to vector<8x128xf32>
    %240 = arith.negf %239 : vector<8x128xf32>
    %241 = math.exp %240 : vector<8x128xf32>
    %cst_63 = arith.constant 1.000000e+00 : f32
    %242 = vector.broadcast %cst_63 : f32 to vector<8x128xf32>
    %243 = arith.addf %242, %241 : vector<8x128xf32>
    %244 = arith.divf %242, %243 : vector<8x128xf32>
    %245 = vector.extract_strided_slice %232 {offsets = [0, 256], sizes = [8, 128], strides = [1, 1]} : vector<8x512xf32> to vector<8x128xf32>
    %246 = math.tanh %245 : vector<8x128xf32>
    %247 = vector.extract_strided_slice %232 {offsets = [0, 384], sizes = [8, 128], strides = [1, 1]} : vector<8x512xf32> to vector<8x128xf32>
    %248 = arith.negf %247 : vector<8x128xf32>
    %249 = math.exp %248 : vector<8x128xf32>
    %cst_64 = arith.constant 1.000000e+00 : f32
    %250 = vector.broadcast %cst_64 : f32 to vector<8x128xf32>
    %251 = arith.addf %250, %249 : vector<8x128xf32>
    %252 = arith.divf %250, %251 : vector<8x128xf32>
    %253 = arith.mulf %244, %188 : vector<8x128xf32>
    %254 = arith.mulf %238, %246 : vector<8x128xf32>
    %255 = arith.addf %253, %254 : vector<8x128xf32>
    %256 = math.tanh %255 : vector<8x128xf32>
    %257 = arith.mulf %252, %256 : vector<8x128xf32>
    %258 = arith.select %224, %257, %187 : vector<8x128xi1>, vector<8x128xf32>
    %259 = arith.select %224, %255, %188 : vector<8x128xi1>, vector<8x128xf32>
    %260 = arith.truncf %258 : vector<8x128xf32> to vector<8x128xbf16>
    %c0_65 = arith.constant 0 : index
    %c0_66 = arith.constant 0 : index
    %261 = vector.load %arg3[%c0_65, %c0_66] : memref<128x512xbf16, #tpu.memory_space<vmem>>, vector<128x512xbf16>
    %cst_67 = arith.constant dense<0.000000e+00> : vector<8x512xf32>
    %262 = tpu.matmul %260, %261, %cst_67 {dimension_numbers = #tpu.dot_dimension_numbers<[1], [0], [0], [1], [0, 0, 1, 1], [], []>} : vector<8x128xbf16>, vector<128x512xbf16>, vector<8x512xf32> -> vector<8x512xf32>
    %263 = arith.addf %227, %262 : vector<8x512xf32>
    %264 = arith.addf %263, %3 : vector<8x512xf32>
    %265 = vector.extract_strided_slice %264 {offsets = [0, 0], sizes = [8, 128], strides = [1, 1]} : vector<8x512xf32> to vector<8x128xf32>
    %266 = arith.negf %265 : vector<8x128xf32>
    %267 = math.exp %266 : vector<8x128xf32>
    %cst_68 = arith.constant 1.000000e+00 : f32
    %268 = vector.broadcast %cst_68 : f32 to vector<8x128xf32>
    %269 = arith.addf %268, %267 : vector<8x128xf32>
    %270 = arith.divf %268, %269 : vector<8x128xf32>
    %271 = vector.extract_strided_slice %264 {offsets = [0, 128], sizes = [8, 128], strides = [1, 1]} : vector<8x512xf32> to vector<8x128xf32>
    %272 = arith.negf %271 : vector<8x128xf32>
    %273 = math.exp %272 : vector<8x128xf32>
    %cst_69 = arith.constant 1.000000e+00 : f32
    %274 = vector.broadcast %cst_69 : f32 to vector<8x128xf32>
    %275 = arith.addf %274, %273 : vector<8x128xf32>
    %276 = arith.divf %274, %275 : vector<8x128xf32>
    %277 = vector.extract_strided_slice %264 {offsets = [0, 256], sizes = [8, 128], strides = [1, 1]} : vector<8x512xf32> to vector<8x128xf32>
    %278 = math.tanh %277 : vector<8x128xf32>
    %279 = vector.extract_strided_slice %264 {offsets = [0, 384], sizes = [8, 128], strides = [1, 1]} : vector<8x512xf32> to vector<8x128xf32>
    %280 = arith.negf %279 : vector<8x128xf32>
    %281 = math.exp %280 : vector<8x128xf32>
    %cst_70 = arith.constant 1.000000e+00 : f32
    %282 = vector.broadcast %cst_70 : f32 to vector<8x128xf32>
    %283 = arith.addf %282, %281 : vector<8x128xf32>
    %284 = arith.divf %282, %283 : vector<8x128xf32>
    %285 = arith.mulf %276, %220 : vector<8x128xf32>
    %286 = arith.mulf %270, %278 : vector<8x128xf32>
    %287 = arith.addf %285, %286 : vector<8x128xf32>
    %288 = math.tanh %287 : vector<8x128xf32>
    %289 = arith.mulf %284, %288 : vector<8x128xf32>
    %290 = arith.select %224, %289, %219 : vector<8x128xi1>, vector<8x128xf32>
    %291 = arith.select %224, %287, %220 : vector<8x128xi1>, vector<8x128xf32>
    %c4_i32 = arith.constant 4 : i32
    %292 = vector.broadcast %c4_i32 : i32 to vector<8x1xi32>
    %293 = arith.cmpi sgt, %0, %292 : vector<8x1xi32>
    %294 = vector.shape_cast %293 : vector<8x1xi1> to vector<8x1xi1>
    %295 = vector.broadcast %294 : vector<8x1xi1> to vector<8x128xi1>
    %296 = arith.truncf %290 : vector<8x128xf32> to vector<8x128xbf16>
    %c0_71 = arith.constant 0 : index
    %c0_72 = arith.constant 0 : index
    %297 = vector.load %arg4[%c0_71, %c0_72] : memref<128x512xbf16, #tpu.memory_space<vmem>>, vector<128x512xbf16>
    %cst_73 = arith.constant dense<0.000000e+00> : vector<8x512xf32>
    %298 = tpu.matmul %296, %297, %cst_73 {dimension_numbers = #tpu.dot_dimension_numbers<[1], [0], [0], [1], [0, 0, 1, 1], [], []>} : vector<8x128xbf16>, vector<128x512xbf16>, vector<8x512xf32> -> vector<8x512xf32>
    %c32 = arith.constant 32 : index
    %c0_74 = arith.constant 0 : index
    %299 = vector.load %arg0[%c32, %c0_74] : memref<80x512xf32, #tpu.memory_space<vmem>>, vector<8x512xf32>
    %300 = arith.truncf %258 : vector<8x128xf32> to vector<8x128xbf16>
    %c0_75 = arith.constant 0 : index
    %c0_76 = arith.constant 0 : index
    %301 = vector.load %arg2[%c0_75, %c0_76] : memref<128x512xbf16, #tpu.memory_space<vmem>>, vector<128x512xbf16>
    %cst_77 = arith.constant dense<0.000000e+00> : vector<8x512xf32>
    %302 = tpu.matmul %300, %301, %cst_77 {dimension_numbers = #tpu.dot_dimension_numbers<[1], [0], [0], [1], [0, 0, 1, 1], [], []>} : vector<8x128xbf16>, vector<128x512xbf16>, vector<8x512xf32> -> vector<8x512xf32>
    %303 = arith.addf %299, %302 : vector<8x512xf32>
    %304 = vector.extract_strided_slice %303 {offsets = [0, 0], sizes = [8, 128], strides = [1, 1]} : vector<8x512xf32> to vector<8x128xf32>
    %305 = arith.negf %304 : vector<8x128xf32>
    %306 = math.exp %305 : vector<8x128xf32>
    %cst_78 = arith.constant 1.000000e+00 : f32
    %307 = vector.broadcast %cst_78 : f32 to vector<8x128xf32>
    %308 = arith.addf %307, %306 : vector<8x128xf32>
    %309 = arith.divf %307, %308 : vector<8x128xf32>
    %310 = vector.extract_strided_slice %303 {offsets = [0, 128], sizes = [8, 128], strides = [1, 1]} : vector<8x512xf32> to vector<8x128xf32>
    %311 = arith.negf %310 : vector<8x128xf32>
    %312 = math.exp %311 : vector<8x128xf32>
    %cst_79 = arith.constant 1.000000e+00 : f32
    %313 = vector.broadcast %cst_79 : f32 to vector<8x128xf32>
    %314 = arith.addf %313, %312 : vector<8x128xf32>
    %315 = arith.divf %313, %314 : vector<8x128xf32>
    %316 = vector.extract_strided_slice %303 {offsets = [0, 256], sizes = [8, 128], strides = [1, 1]} : vector<8x512xf32> to vector<8x128xf32>
    %317 = math.tanh %316 : vector<8x128xf32>
    %318 = vector.extract_strided_slice %303 {offsets = [0, 384], sizes = [8, 128], strides = [1, 1]} : vector<8x512xf32> to vector<8x128xf32>
    %319 = arith.negf %318 : vector<8x128xf32>
    %320 = math.exp %319 : vector<8x128xf32>
    %cst_80 = arith.constant 1.000000e+00 : f32
    %321 = vector.broadcast %cst_80 : f32 to vector<8x128xf32>
    %322 = arith.addf %321, %320 : vector<8x128xf32>
    %323 = arith.divf %321, %322 : vector<8x128xf32>
    %324 = arith.mulf %315, %259 : vector<8x128xf32>
    %325 = arith.mulf %309, %317 : vector<8x128xf32>
    %326 = arith.addf %324, %325 : vector<8x128xf32>
    %327 = math.tanh %326 : vector<8x128xf32>
    %328 = arith.mulf %323, %327 : vector<8x128xf32>
    %329 = arith.select %295, %328, %258 : vector<8x128xi1>, vector<8x128xf32>
    %330 = arith.select %295, %326, %259 : vector<8x128xi1>, vector<8x128xf32>
    %331 = arith.truncf %329 : vector<8x128xf32> to vector<8x128xbf16>
    %c0_81 = arith.constant 0 : index
    %c0_82 = arith.constant 0 : index
    %332 = vector.load %arg3[%c0_81, %c0_82] : memref<128x512xbf16, #tpu.memory_space<vmem>>, vector<128x512xbf16>
    %cst_83 = arith.constant dense<0.000000e+00> : vector<8x512xf32>
    %333 = tpu.matmul %331, %332, %cst_83 {dimension_numbers = #tpu.dot_dimension_numbers<[1], [0], [0], [1], [0, 0, 1, 1], [], []>} : vector<8x128xbf16>, vector<128x512xbf16>, vector<8x512xf32> -> vector<8x512xf32>
    %334 = arith.addf %298, %333 : vector<8x512xf32>
    %335 = arith.addf %334, %3 : vector<8x512xf32>
    %336 = vector.extract_strided_slice %335 {offsets = [0, 0], sizes = [8, 128], strides = [1, 1]} : vector<8x512xf32> to vector<8x128xf32>
    %337 = arith.negf %336 : vector<8x128xf32>
    %338 = math.exp %337 : vector<8x128xf32>
    %cst_84 = arith.constant 1.000000e+00 : f32
    %339 = vector.broadcast %cst_84 : f32 to vector<8x128xf32>
    %340 = arith.addf %339, %338 : vector<8x128xf32>
    %341 = arith.divf %339, %340 : vector<8x128xf32>
    %342 = vector.extract_strided_slice %335 {offsets = [0, 128], sizes = [8, 128], strides = [1, 1]} : vector<8x512xf32> to vector<8x128xf32>
    %343 = arith.negf %342 : vector<8x128xf32>
    %344 = math.exp %343 : vector<8x128xf32>
    %cst_85 = arith.constant 1.000000e+00 : f32
    %345 = vector.broadcast %cst_85 : f32 to vector<8x128xf32>
    %346 = arith.addf %345, %344 : vector<8x128xf32>
    %347 = arith.divf %345, %346 : vector<8x128xf32>
    %348 = vector.extract_strided_slice %335 {offsets = [0, 256], sizes = [8, 128], strides = [1, 1]} : vector<8x512xf32> to vector<8x128xf32>
    %349 = math.tanh %348 : vector<8x128xf32>
    %350 = vector.extract_strided_slice %335 {offsets = [0, 384], sizes = [8, 128], strides = [1, 1]} : vector<8x512xf32> to vector<8x128xf32>
    %351 = arith.negf %350 : vector<8x128xf32>
    %352 = math.exp %351 : vector<8x128xf32>
    %cst_86 = arith.constant 1.000000e+00 : f32
    %353 = vector.broadcast %cst_86 : f32 to vector<8x128xf32>
    %354 = arith.addf %353, %352 : vector<8x128xf32>
    %355 = arith.divf %353, %354 : vector<8x128xf32>
    %356 = arith.mulf %347, %291 : vector<8x128xf32>
    %357 = arith.mulf %341, %349 : vector<8x128xf32>
    %358 = arith.addf %356, %357 : vector<8x128xf32>
    %359 = math.tanh %358 : vector<8x128xf32>
    %360 = arith.mulf %355, %359 : vector<8x128xf32>
    %361 = arith.select %295, %360, %290 : vector<8x128xi1>, vector<8x128xf32>
    %362 = arith.select %295, %358, %291 : vector<8x128xi1>, vector<8x128xf32>
    %c5_i32 = arith.constant 5 : i32
    %363 = vector.broadcast %c5_i32 : i32 to vector<8x1xi32>
    %364 = arith.cmpi sgt, %0, %363 : vector<8x1xi32>
    %365 = vector.shape_cast %364 : vector<8x1xi1> to vector<8x1xi1>
    %366 = vector.broadcast %365 : vector<8x1xi1> to vector<8x128xi1>
    %367 = arith.truncf %361 : vector<8x128xf32> to vector<8x128xbf16>
    %c0_87 = arith.constant 0 : index
    %c0_88 = arith.constant 0 : index
    %368 = vector.load %arg4[%c0_87, %c0_88] : memref<128x512xbf16, #tpu.memory_space<vmem>>, vector<128x512xbf16>
    %cst_89 = arith.constant dense<0.000000e+00> : vector<8x512xf32>
    %369 = tpu.matmul %367, %368, %cst_89 {dimension_numbers = #tpu.dot_dimension_numbers<[1], [0], [0], [1], [0, 0, 1, 1], [], []>} : vector<8x128xbf16>, vector<128x512xbf16>, vector<8x512xf32> -> vector<8x512xf32>
    %c40 = arith.constant 40 : index
    %c0_90 = arith.constant 0 : index
    %370 = vector.load %arg0[%c40, %c0_90] : memref<80x512xf32, #tpu.memory_space<vmem>>, vector<8x512xf32>
    %371 = arith.truncf %329 : vector<8x128xf32> to vector<8x128xbf16>
    %c0_91 = arith.constant 0 : index
    %c0_92 = arith.constant 0 : index
    %372 = vector.load %arg2[%c0_91, %c0_92] : memref<128x512xbf16, #tpu.memory_space<vmem>>, vector<128x512xbf16>
    %cst_93 = arith.constant dense<0.000000e+00> : vector<8x512xf32>
    %373 = tpu.matmul %371, %372, %cst_93 {dimension_numbers = #tpu.dot_dimension_numbers<[1], [0], [0], [1], [0, 0, 1, 1], [], []>} : vector<8x128xbf16>, vector<128x512xbf16>, vector<8x512xf32> -> vector<8x512xf32>
    %374 = arith.addf %370, %373 : vector<8x512xf32>
    %375 = vector.extract_strided_slice %374 {offsets = [0, 0], sizes = [8, 128], strides = [1, 1]} : vector<8x512xf32> to vector<8x128xf32>
    %376 = arith.negf %375 : vector<8x128xf32>
    %377 = math.exp %376 : vector<8x128xf32>
    %cst_94 = arith.constant 1.000000e+00 : f32
    %378 = vector.broadcast %cst_94 : f32 to vector<8x128xf32>
    %379 = arith.addf %378, %377 : vector<8x128xf32>
    %380 = arith.divf %378, %379 : vector<8x128xf32>
    %381 = vector.extract_strided_slice %374 {offsets = [0, 128], sizes = [8, 128], strides = [1, 1]} : vector<8x512xf32> to vector<8x128xf32>
    %382 = arith.negf %381 : vector<8x128xf32>
    %383 = math.exp %382 : vector<8x128xf32>
    %cst_95 = arith.constant 1.000000e+00 : f32
    %384 = vector.broadcast %cst_95 : f32 to vector<8x128xf32>
    %385 = arith.addf %384, %383 : vector<8x128xf32>
    %386 = arith.divf %384, %385 : vector<8x128xf32>
    %387 = vector.extract_strided_slice %374 {offsets = [0, 256], sizes = [8, 128], strides = [1, 1]} : vector<8x512xf32> to vector<8x128xf32>
    %388 = math.tanh %387 : vector<8x128xf32>
    %389 = vector.extract_strided_slice %374 {offsets = [0, 384], sizes = [8, 128], strides = [1, 1]} : vector<8x512xf32> to vector<8x128xf32>
    %390 = arith.negf %389 : vector<8x128xf32>
    %391 = math.exp %390 : vector<8x128xf32>
    %cst_96 = arith.constant 1.000000e+00 : f32
    %392 = vector.broadcast %cst_96 : f32 to vector<8x128xf32>
    %393 = arith.addf %392, %391 : vector<8x128xf32>
    %394 = arith.divf %392, %393 : vector<8x128xf32>
    %395 = arith.mulf %386, %330 : vector<8x128xf32>
    %396 = arith.mulf %380, %388 : vector<8x128xf32>
    %397 = arith.addf %395, %396 : vector<8x128xf32>
    %398 = math.tanh %397 : vector<8x128xf32>
    %399 = arith.mulf %394, %398 : vector<8x128xf32>
    %400 = arith.select %366, %399, %329 : vector<8x128xi1>, vector<8x128xf32>
    %401 = arith.select %366, %397, %330 : vector<8x128xi1>, vector<8x128xf32>
    %402 = arith.truncf %400 : vector<8x128xf32> to vector<8x128xbf16>
    %c0_97 = arith.constant 0 : index
    %c0_98 = arith.constant 0 : index
    %403 = vector.load %arg3[%c0_97, %c0_98] : memref<128x512xbf16, #tpu.memory_space<vmem>>, vector<128x512xbf16>
    %cst_99 = arith.constant dense<0.000000e+00> : vector<8x512xf32>
    %404 = tpu.matmul %402, %403, %cst_99 {dimension_numbers = #tpu.dot_dimension_numbers<[1], [0], [0], [1], [0, 0, 1, 1], [], []>} : vector<8x128xbf16>, vector<128x512xbf16>, vector<8x512xf32> -> vector<8x512xf32>
    %405 = arith.addf %369, %404 : vector<8x512xf32>
    %406 = arith.addf %405, %3 : vector<8x512xf32>
    %407 = vector.extract_strided_slice %406 {offsets = [0, 0], sizes = [8, 128], strides = [1, 1]} : vector<8x512xf32> to vector<8x128xf32>
    %408 = arith.negf %407 : vector<8x128xf32>
    %409 = math.exp %408 : vector<8x128xf32>
    %cst_100 = arith.constant 1.000000e+00 : f32
    %410 = vector.broadcast %cst_100 : f32 to vector<8x128xf32>
    %411 = arith.addf %410, %409 : vector<8x128xf32>
    %412 = arith.divf %410, %411 : vector<8x128xf32>
    %413 = vector.extract_strided_slice %406 {offsets = [0, 128], sizes = [8, 128], strides = [1, 1]} : vector<8x512xf32> to vector<8x128xf32>
    %414 = arith.negf %413 : vector<8x128xf32>
    %415 = math.exp %414 : vector<8x128xf32>
    %cst_101 = arith.constant 1.000000e+00 : f32
    %416 = vector.broadcast %cst_101 : f32 to vector<8x128xf32>
    %417 = arith.addf %416, %415 : vector<8x128xf32>
    %418 = arith.divf %416, %417 : vector<8x128xf32>
    %419 = vector.extract_strided_slice %406 {offsets = [0, 256], sizes = [8, 128], strides = [1, 1]} : vector<8x512xf32> to vector<8x128xf32>
    %420 = math.tanh %419 : vector<8x128xf32>
    %421 = vector.extract_strided_slice %406 {offsets = [0, 384], sizes = [8, 128], strides = [1, 1]} : vector<8x512xf32> to vector<8x128xf32>
    %422 = arith.negf %421 : vector<8x128xf32>
    %423 = math.exp %422 : vector<8x128xf32>
    %cst_102 = arith.constant 1.000000e+00 : f32
    %424 = vector.broadcast %cst_102 : f32 to vector<8x128xf32>
    %425 = arith.addf %424, %423 : vector<8x128xf32>
    %426 = arith.divf %424, %425 : vector<8x128xf32>
    %427 = arith.mulf %418, %362 : vector<8x128xf32>
    %428 = arith.mulf %412, %420 : vector<8x128xf32>
    %429 = arith.addf %427, %428 : vector<8x128xf32>
    %430 = math.tanh %429 : vector<8x128xf32>
    %431 = arith.mulf %426, %430 : vector<8x128xf32>
    %432 = arith.select %366, %431, %361 : vector<8x128xi1>, vector<8x128xf32>
    %433 = arith.select %366, %429, %362 : vector<8x128xi1>, vector<8x128xf32>
    %c6_i32 = arith.constant 6 : i32
    %434 = vector.broadcast %c6_i32 : i32 to vector<8x1xi32>
    %435 = arith.cmpi sgt, %0, %434 : vector<8x1xi32>
    %436 = vector.shape_cast %435 : vector<8x1xi1> to vector<8x1xi1>
    %437 = vector.broadcast %436 : vector<8x1xi1> to vector<8x128xi1>
    %438 = arith.truncf %432 : vector<8x128xf32> to vector<8x128xbf16>
    %c0_103 = arith.constant 0 : index
    %c0_104 = arith.constant 0 : index
    %439 = vector.load %arg4[%c0_103, %c0_104] : memref<128x512xbf16, #tpu.memory_space<vmem>>, vector<128x512xbf16>
    %cst_105 = arith.constant dense<0.000000e+00> : vector<8x512xf32>
    %440 = tpu.matmul %438, %439, %cst_105 {dimension_numbers = #tpu.dot_dimension_numbers<[1], [0], [0], [1], [0, 0, 1, 1], [], []>} : vector<8x128xbf16>, vector<128x512xbf16>, vector<8x512xf32> -> vector<8x512xf32>
    %c48 = arith.constant 48 : index
    %c0_106 = arith.constant 0 : index
    %441 = vector.load %arg0[%c48, %c0_106] : memref<80x512xf32, #tpu.memory_space<vmem>>, vector<8x512xf32>
    %442 = arith.truncf %400 : vector<8x128xf32> to vector<8x128xbf16>
    %c0_107 = arith.constant 0 : index
    %c0_108 = arith.constant 0 : index
    %443 = vector.load %arg2[%c0_107, %c0_108] : memref<128x512xbf16, #tpu.memory_space<vmem>>, vector<128x512xbf16>
    %cst_109 = arith.constant dense<0.000000e+00> : vector<8x512xf32>
    %444 = tpu.matmul %442, %443, %cst_109 {dimension_numbers = #tpu.dot_dimension_numbers<[1], [0], [0], [1], [0, 0, 1, 1], [], []>} : vector<8x128xbf16>, vector<128x512xbf16>, vector<8x512xf32> -> vector<8x512xf32>
    %445 = arith.addf %441, %444 : vector<8x512xf32>
    %446 = vector.extract_strided_slice %445 {offsets = [0, 0], sizes = [8, 128], strides = [1, 1]} : vector<8x512xf32> to vector<8x128xf32>
    %447 = arith.negf %446 : vector<8x128xf32>
    %448 = math.exp %447 : vector<8x128xf32>
    %cst_110 = arith.constant 1.000000e+00 : f32
    %449 = vector.broadcast %cst_110 : f32 to vector<8x128xf32>
    %450 = arith.addf %449, %448 : vector<8x128xf32>
    %451 = arith.divf %449, %450 : vector<8x128xf32>
    %452 = vector.extract_strided_slice %445 {offsets = [0, 128], sizes = [8, 128], strides = [1, 1]} : vector<8x512xf32> to vector<8x128xf32>
    %453 = arith.negf %452 : vector<8x128xf32>
    %454 = math.exp %453 : vector<8x128xf32>
    %cst_111 = arith.constant 1.000000e+00 : f32
    %455 = vector.broadcast %cst_111 : f32 to vector<8x128xf32>
    %456 = arith.addf %455, %454 : vector<8x128xf32>
    %457 = arith.divf %455, %456 : vector<8x128xf32>
    %458 = vector.extract_strided_slice %445 {offsets = [0, 256], sizes = [8, 128], strides = [1, 1]} : vector<8x512xf32> to vector<8x128xf32>
    %459 = math.tanh %458 : vector<8x128xf32>
    %460 = vector.extract_strided_slice %445 {offsets = [0, 384], sizes = [8, 128], strides = [1, 1]} : vector<8x512xf32> to vector<8x128xf32>
    %461 = arith.negf %460 : vector<8x128xf32>
    %462 = math.exp %461 : vector<8x128xf32>
    %cst_112 = arith.constant 1.000000e+00 : f32
    %463 = vector.broadcast %cst_112 : f32 to vector<8x128xf32>
    %464 = arith.addf %463, %462 : vector<8x128xf32>
    %465 = arith.divf %463, %464 : vector<8x128xf32>
    %466 = arith.mulf %457, %401 : vector<8x128xf32>
    %467 = arith.mulf %451, %459 : vector<8x128xf32>
    %468 = arith.addf %466, %467 : vector<8x128xf32>
    %469 = math.tanh %468 : vector<8x128xf32>
    %470 = arith.mulf %465, %469 : vector<8x128xf32>
    %471 = arith.select %437, %470, %400 : vector<8x128xi1>, vector<8x128xf32>
    %472 = arith.select %437, %468, %401 : vector<8x128xi1>, vector<8x128xf32>
    %473 = arith.truncf %471 : vector<8x128xf32> to vector<8x128xbf16>
    %c0_113 = arith.constant 0 : index
    %c0_114 = arith.constant 0 : index
    %474 = vector.load %arg3[%c0_113, %c0_114] : memref<128x512xbf16, #tpu.memory_space<vmem>>, vector<128x512xbf16>
    %cst_115 = arith.constant dense<0.000000e+00> : vector<8x512xf32>
    %475 = tpu.matmul %473, %474, %cst_115 {dimension_numbers = #tpu.dot_dimension_numbers<[1], [0], [0], [1], [0, 0, 1, 1], [], []>} : vector<8x128xbf16>, vector<128x512xbf16>, vector<8x512xf32> -> vector<8x512xf32>
    %476 = arith.addf %440, %475 : vector<8x512xf32>
    %477 = arith.addf %476, %3 : vector<8x512xf32>
    %478 = vector.extract_strided_slice %477 {offsets = [0, 0], sizes = [8, 128], strides = [1, 1]} : vector<8x512xf32> to vector<8x128xf32>
    %479 = arith.negf %478 : vector<8x128xf32>
    %480 = math.exp %479 : vector<8x128xf32>
    %cst_116 = arith.constant 1.000000e+00 : f32
    %481 = vector.broadcast %cst_116 : f32 to vector<8x128xf32>
    %482 = arith.addf %481, %480 : vector<8x128xf32>
    %483 = arith.divf %481, %482 : vector<8x128xf32>
    %484 = vector.extract_strided_slice %477 {offsets = [0, 128], sizes = [8, 128], strides = [1, 1]} : vector<8x512xf32> to vector<8x128xf32>
    %485 = arith.negf %484 : vector<8x128xf32>
    %486 = math.exp %485 : vector<8x128xf32>
    %cst_117 = arith.constant 1.000000e+00 : f32
    %487 = vector.broadcast %cst_117 : f32 to vector<8x128xf32>
    %488 = arith.addf %487, %486 : vector<8x128xf32>
    %489 = arith.divf %487, %488 : vector<8x128xf32>
    %490 = vector.extract_strided_slice %477 {offsets = [0, 256], sizes = [8, 128], strides = [1, 1]} : vector<8x512xf32> to vector<8x128xf32>
    %491 = math.tanh %490 : vector<8x128xf32>
    %492 = vector.extract_strided_slice %477 {offsets = [0, 384], sizes = [8, 128], strides = [1, 1]} : vector<8x512xf32> to vector<8x128xf32>
    %493 = arith.negf %492 : vector<8x128xf32>
    %494 = math.exp %493 : vector<8x128xf32>
    %cst_118 = arith.constant 1.000000e+00 : f32
    %495 = vector.broadcast %cst_118 : f32 to vector<8x128xf32>
    %496 = arith.addf %495, %494 : vector<8x128xf32>
    %497 = arith.divf %495, %496 : vector<8x128xf32>
    %498 = arith.mulf %489, %433 : vector<8x128xf32>
    %499 = arith.mulf %483, %491 : vector<8x128xf32>
    %500 = arith.addf %498, %499 : vector<8x128xf32>
    %501 = math.tanh %500 : vector<8x128xf32>
    %502 = arith.mulf %497, %501 : vector<8x128xf32>
    %503 = arith.select %437, %502, %432 : vector<8x128xi1>, vector<8x128xf32>
    %504 = arith.select %437, %500, %433 : vector<8x128xi1>, vector<8x128xf32>
    %c7_i32 = arith.constant 7 : i32
    %505 = vector.broadcast %c7_i32 : i32 to vector<8x1xi32>
    %506 = arith.cmpi sgt, %0, %505 : vector<8x1xi32>
    %507 = vector.shape_cast %506 : vector<8x1xi1> to vector<8x1xi1>
    %508 = vector.broadcast %507 : vector<8x1xi1> to vector<8x128xi1>
    %509 = arith.truncf %503 : vector<8x128xf32> to vector<8x128xbf16>
    %c0_119 = arith.constant 0 : index
    %c0_120 = arith.constant 0 : index
    %510 = vector.load %arg4[%c0_119, %c0_120] : memref<128x512xbf16, #tpu.memory_space<vmem>>, vector<128x512xbf16>
    %cst_121 = arith.constant dense<0.000000e+00> : vector<8x512xf32>
    %511 = tpu.matmul %509, %510, %cst_121 {dimension_numbers = #tpu.dot_dimension_numbers<[1], [0], [0], [1], [0, 0, 1, 1], [], []>} : vector<8x128xbf16>, vector<128x512xbf16>, vector<8x512xf32> -> vector<8x512xf32>
    %c56 = arith.constant 56 : index
    %c0_122 = arith.constant 0 : index
    %512 = vector.load %arg0[%c56, %c0_122] : memref<80x512xf32, #tpu.memory_space<vmem>>, vector<8x512xf32>
    %513 = arith.truncf %471 : vector<8x128xf32> to vector<8x128xbf16>
    %c0_123 = arith.constant 0 : index
    %c0_124 = arith.constant 0 : index
    %514 = vector.load %arg2[%c0_123, %c0_124] : memref<128x512xbf16, #tpu.memory_space<vmem>>, vector<128x512xbf16>
    %cst_125 = arith.constant dense<0.000000e+00> : vector<8x512xf32>
    %515 = tpu.matmul %513, %514, %cst_125 {dimension_numbers = #tpu.dot_dimension_numbers<[1], [0], [0], [1], [0, 0, 1, 1], [], []>} : vector<8x128xbf16>, vector<128x512xbf16>, vector<8x512xf32> -> vector<8x512xf32>
    %516 = arith.addf %512, %515 : vector<8x512xf32>
    %517 = vector.extract_strided_slice %516 {offsets = [0, 0], sizes = [8, 128], strides = [1, 1]} : vector<8x512xf32> to vector<8x128xf32>
    %518 = arith.negf %517 : vector<8x128xf32>
    %519 = math.exp %518 : vector<8x128xf32>
    %cst_126 = arith.constant 1.000000e+00 : f32
    %520 = vector.broadcast %cst_126 : f32 to vector<8x128xf32>
    %521 = arith.addf %520, %519 : vector<8x128xf32>
    %522 = arith.divf %520, %521 : vector<8x128xf32>
    %523 = vector.extract_strided_slice %516 {offsets = [0, 128], sizes = [8, 128], strides = [1, 1]} : vector<8x512xf32> to vector<8x128xf32>
    %524 = arith.negf %523 : vector<8x128xf32>
    %525 = math.exp %524 : vector<8x128xf32>
    %cst_127 = arith.constant 1.000000e+00 : f32
    %526 = vector.broadcast %cst_127 : f32 to vector<8x128xf32>
    %527 = arith.addf %526, %525 : vector<8x128xf32>
    %528 = arith.divf %526, %527 : vector<8x128xf32>
    %529 = vector.extract_strided_slice %516 {offsets = [0, 256], sizes = [8, 128], strides = [1, 1]} : vector<8x512xf32> to vector<8x128xf32>
    %530 = math.tanh %529 : vector<8x128xf32>
    %531 = vector.extract_strided_slice %516 {offsets = [0, 384], sizes = [8, 128], strides = [1, 1]} : vector<8x512xf32> to vector<8x128xf32>
    %532 = arith.negf %531 : vector<8x128xf32>
    %533 = math.exp %532 : vector<8x128xf32>
    %cst_128 = arith.constant 1.000000e+00 : f32
    %534 = vector.broadcast %cst_128 : f32 to vector<8x128xf32>
    %535 = arith.addf %534, %533 : vector<8x128xf32>
    %536 = arith.divf %534, %535 : vector<8x128xf32>
    %537 = arith.mulf %528, %472 : vector<8x128xf32>
    %538 = arith.mulf %522, %530 : vector<8x128xf32>
    %539 = arith.addf %537, %538 : vector<8x128xf32>
    %540 = math.tanh %539 : vector<8x128xf32>
    %541 = arith.mulf %536, %540 : vector<8x128xf32>
    %542 = arith.select %508, %541, %471 : vector<8x128xi1>, vector<8x128xf32>
    %543 = arith.select %508, %539, %472 : vector<8x128xi1>, vector<8x128xf32>
    %544 = arith.truncf %542 : vector<8x128xf32> to vector<8x128xbf16>
    %c0_129 = arith.constant 0 : index
    %c0_130 = arith.constant 0 : index
    %545 = vector.load %arg3[%c0_129, %c0_130] : memref<128x512xbf16, #tpu.memory_space<vmem>>, vector<128x512xbf16>
    %cst_131 = arith.constant dense<0.000000e+00> : vector<8x512xf32>
    %546 = tpu.matmul %544, %545, %cst_131 {dimension_numbers = #tpu.dot_dimension_numbers<[1], [0], [0], [1], [0, 0, 1, 1], [], []>} : vector<8x128xbf16>, vector<128x512xbf16>, vector<8x512xf32> -> vector<8x512xf32>
    %547 = arith.addf %511, %546 : vector<8x512xf32>
    %548 = arith.addf %547, %3 : vector<8x512xf32>
    %549 = vector.extract_strided_slice %548 {offsets = [0, 0], sizes = [8, 128], strides = [1, 1]} : vector<8x512xf32> to vector<8x128xf32>
    %550 = arith.negf %549 : vector<8x128xf32>
    %551 = math.exp %550 : vector<8x128xf32>
    %cst_132 = arith.constant 1.000000e+00 : f32
    %552 = vector.broadcast %cst_132 : f32 to vector<8x128xf32>
    %553 = arith.addf %552, %551 : vector<8x128xf32>
    %554 = arith.divf %552, %553 : vector<8x128xf32>
    %555 = vector.extract_strided_slice %548 {offsets = [0, 128], sizes = [8, 128], strides = [1, 1]} : vector<8x512xf32> to vector<8x128xf32>
    %556 = arith.negf %555 : vector<8x128xf32>
    %557 = math.exp %556 : vector<8x128xf32>
    %cst_133 = arith.constant 1.000000e+00 : f32
    %558 = vector.broadcast %cst_133 : f32 to vector<8x128xf32>
    %559 = arith.addf %558, %557 : vector<8x128xf32>
    %560 = arith.divf %558, %559 : vector<8x128xf32>
    %561 = vector.extract_strided_slice %548 {offsets = [0, 256], sizes = [8, 128], strides = [1, 1]} : vector<8x512xf32> to vector<8x128xf32>
    %562 = math.tanh %561 : vector<8x128xf32>
    %563 = vector.extract_strided_slice %548 {offsets = [0, 384], sizes = [8, 128], strides = [1, 1]} : vector<8x512xf32> to vector<8x128xf32>
    %564 = arith.negf %563 : vector<8x128xf32>
    %565 = math.exp %564 : vector<8x128xf32>
    %cst_134 = arith.constant 1.000000e+00 : f32
    %566 = vector.broadcast %cst_134 : f32 to vector<8x128xf32>
    %567 = arith.addf %566, %565 : vector<8x128xf32>
    %568 = arith.divf %566, %567 : vector<8x128xf32>
    %569 = arith.mulf %560, %504 : vector<8x128xf32>
    %570 = arith.mulf %554, %562 : vector<8x128xf32>
    %571 = arith.addf %569, %570 : vector<8x128xf32>
    %572 = math.tanh %571 : vector<8x128xf32>
    %573 = arith.mulf %568, %572 : vector<8x128xf32>
    %574 = arith.select %508, %573, %503 : vector<8x128xi1>, vector<8x128xf32>
    %575 = arith.select %508, %571, %504 : vector<8x128xi1>, vector<8x128xf32>
    %c8_i32 = arith.constant 8 : i32
    %576 = vector.broadcast %c8_i32 : i32 to vector<8x1xi32>
    %577 = arith.cmpi sgt, %0, %576 : vector<8x1xi32>
    %578 = vector.shape_cast %577 : vector<8x1xi1> to vector<8x1xi1>
    %579 = vector.broadcast %578 : vector<8x1xi1> to vector<8x128xi1>
    %580 = arith.truncf %574 : vector<8x128xf32> to vector<8x128xbf16>
    %c0_135 = arith.constant 0 : index
    %c0_136 = arith.constant 0 : index
    %581 = vector.load %arg4[%c0_135, %c0_136] : memref<128x512xbf16, #tpu.memory_space<vmem>>, vector<128x512xbf16>
    %cst_137 = arith.constant dense<0.000000e+00> : vector<8x512xf32>
    %582 = tpu.matmul %580, %581, %cst_137 {dimension_numbers = #tpu.dot_dimension_numbers<[1], [0], [0], [1], [0, 0, 1, 1], [], []>} : vector<8x128xbf16>, vector<128x512xbf16>, vector<8x512xf32> -> vector<8x512xf32>
    %c64 = arith.constant 64 : index
    %c0_138 = arith.constant 0 : index
    %583 = vector.load %arg0[%c64, %c0_138] : memref<80x512xf32, #tpu.memory_space<vmem>>, vector<8x512xf32>
    %584 = arith.truncf %542 : vector<8x128xf32> to vector<8x128xbf16>
    %c0_139 = arith.constant 0 : index
    %c0_140 = arith.constant 0 : index
    %585 = vector.load %arg2[%c0_139, %c0_140] : memref<128x512xbf16, #tpu.memory_space<vmem>>, vector<128x512xbf16>
    %cst_141 = arith.constant dense<0.000000e+00> : vector<8x512xf32>
    %586 = tpu.matmul %584, %585, %cst_141 {dimension_numbers = #tpu.dot_dimension_numbers<[1], [0], [0], [1], [0, 0, 1, 1], [], []>} : vector<8x128xbf16>, vector<128x512xbf16>, vector<8x512xf32> -> vector<8x512xf32>
    %587 = arith.addf %583, %586 : vector<8x512xf32>
    %588 = vector.extract_strided_slice %587 {offsets = [0, 0], sizes = [8, 128], strides = [1, 1]} : vector<8x512xf32> to vector<8x128xf32>
    %589 = arith.negf %588 : vector<8x128xf32>
    %590 = math.exp %589 : vector<8x128xf32>
    %cst_142 = arith.constant 1.000000e+00 : f32
    %591 = vector.broadcast %cst_142 : f32 to vector<8x128xf32>
    %592 = arith.addf %591, %590 : vector<8x128xf32>
    %593 = arith.divf %591, %592 : vector<8x128xf32>
    %594 = vector.extract_strided_slice %587 {offsets = [0, 128], sizes = [8, 128], strides = [1, 1]} : vector<8x512xf32> to vector<8x128xf32>
    %595 = arith.negf %594 : vector<8x128xf32>
    %596 = math.exp %595 : vector<8x128xf32>
    %cst_143 = arith.constant 1.000000e+00 : f32
    %597 = vector.broadcast %cst_143 : f32 to vector<8x128xf32>
    %598 = arith.addf %597, %596 : vector<8x128xf32>
    %599 = arith.divf %597, %598 : vector<8x128xf32>
    %600 = vector.extract_strided_slice %587 {offsets = [0, 256], sizes = [8, 128], strides = [1, 1]} : vector<8x512xf32> to vector<8x128xf32>
    %601 = math.tanh %600 : vector<8x128xf32>
    %602 = vector.extract_strided_slice %587 {offsets = [0, 384], sizes = [8, 128], strides = [1, 1]} : vector<8x512xf32> to vector<8x128xf32>
    %603 = arith.negf %602 : vector<8x128xf32>
    %604 = math.exp %603 : vector<8x128xf32>
    %cst_144 = arith.constant 1.000000e+00 : f32
    %605 = vector.broadcast %cst_144 : f32 to vector<8x128xf32>
    %606 = arith.addf %605, %604 : vector<8x128xf32>
    %607 = arith.divf %605, %606 : vector<8x128xf32>
    %608 = arith.mulf %599, %543 : vector<8x128xf32>
    %609 = arith.mulf %593, %601 : vector<8x128xf32>
    %610 = arith.addf %608, %609 : vector<8x128xf32>
    %611 = math.tanh %610 : vector<8x128xf32>
    %612 = arith.mulf %607, %611 : vector<8x128xf32>
    %613 = arith.select %579, %612, %542 : vector<8x128xi1>, vector<8x128xf32>
    %614 = arith.select %579, %610, %543 : vector<8x128xi1>, vector<8x128xf32>
    %615 = arith.truncf %613 : vector<8x128xf32> to vector<8x128xbf16>
    %c0_145 = arith.constant 0 : index
    %c0_146 = arith.constant 0 : index
    %616 = vector.load %arg3[%c0_145, %c0_146] : memref<128x512xbf16, #tpu.memory_space<vmem>>, vector<128x512xbf16>
    %cst_147 = arith.constant dense<0.000000e+00> : vector<8x512xf32>
    %617 = tpu.matmul %615, %616, %cst_147 {dimension_numbers = #tpu.dot_dimension_numbers<[1], [0], [0], [1], [0, 0, 1, 1], [], []>} : vector<8x128xbf16>, vector<128x512xbf16>, vector<8x512xf32> -> vector<8x512xf32>
    %618 = arith.addf %582, %617 : vector<8x512xf32>
    %619 = arith.addf %618, %3 : vector<8x512xf32>
    %620 = vector.extract_strided_slice %619 {offsets = [0, 0], sizes = [8, 128], strides = [1, 1]} : vector<8x512xf32> to vector<8x128xf32>
    %621 = arith.negf %620 : vector<8x128xf32>
    %622 = math.exp %621 : vector<8x128xf32>
    %cst_148 = arith.constant 1.000000e+00 : f32
    %623 = vector.broadcast %cst_148 : f32 to vector<8x128xf32>
    %624 = arith.addf %623, %622 : vector<8x128xf32>
    %625 = arith.divf %623, %624 : vector<8x128xf32>
    %626 = vector.extract_strided_slice %619 {offsets = [0, 128], sizes = [8, 128], strides = [1, 1]} : vector<8x512xf32> to vector<8x128xf32>
    %627 = arith.negf %626 : vector<8x128xf32>
    %628 = math.exp %627 : vector<8x128xf32>
    %cst_149 = arith.constant 1.000000e+00 : f32
    %629 = vector.broadcast %cst_149 : f32 to vector<8x128xf32>
    %630 = arith.addf %629, %628 : vector<8x128xf32>
    %631 = arith.divf %629, %630 : vector<8x128xf32>
    %632 = vector.extract_strided_slice %619 {offsets = [0, 256], sizes = [8, 128], strides = [1, 1]} : vector<8x512xf32> to vector<8x128xf32>
    %633 = math.tanh %632 : vector<8x128xf32>
    %634 = vector.extract_strided_slice %619 {offsets = [0, 384], sizes = [8, 128], strides = [1, 1]} : vector<8x512xf32> to vector<8x128xf32>
    %635 = arith.negf %634 : vector<8x128xf32>
    %636 = math.exp %635 : vector<8x128xf32>
    %cst_150 = arith.constant 1.000000e+00 : f32
    %637 = vector.broadcast %cst_150 : f32 to vector<8x128xf32>
    %638 = arith.addf %637, %636 : vector<8x128xf32>
    %639 = arith.divf %637, %638 : vector<8x128xf32>
    %640 = arith.mulf %631, %575 : vector<8x128xf32>
    %641 = arith.mulf %625, %633 : vector<8x128xf32>
    %642 = arith.addf %640, %641 : vector<8x128xf32>
    %643 = math.tanh %642 : vector<8x128xf32>
    %644 = arith.mulf %639, %643 : vector<8x128xf32>
    %645 = arith.select %579, %644, %574 : vector<8x128xi1>, vector<8x128xf32>
    %646 = arith.select %579, %642, %575 : vector<8x128xi1>, vector<8x128xf32>
    %c9_i32 = arith.constant 9 : i32
    %647 = vector.broadcast %c9_i32 : i32 to vector<8x1xi32>
    %648 = arith.cmpi sgt, %0, %647 : vector<8x1xi32>
    %649 = vector.shape_cast %648 : vector<8x1xi1> to vector<8x1xi1>
    %650 = vector.broadcast %649 : vector<8x1xi1> to vector<8x128xi1>
    %651 = arith.truncf %645 : vector<8x128xf32> to vector<8x128xbf16>
    %c0_151 = arith.constant 0 : index
    %c0_152 = arith.constant 0 : index
    %652 = vector.load %arg4[%c0_151, %c0_152] : memref<128x512xbf16, #tpu.memory_space<vmem>>, vector<128x512xbf16>
    %cst_153 = arith.constant dense<0.000000e+00> : vector<8x512xf32>
    %653 = tpu.matmul %651, %652, %cst_153 {dimension_numbers = #tpu.dot_dimension_numbers<[1], [0], [0], [1], [0, 0, 1, 1], [], []>} : vector<8x128xbf16>, vector<128x512xbf16>, vector<8x512xf32> -> vector<8x512xf32>
    %c72 = arith.constant 72 : index
    %c0_154 = arith.constant 0 : index
    %654 = vector.load %arg0[%c72, %c0_154] : memref<80x512xf32, #tpu.memory_space<vmem>>, vector<8x512xf32>
    %655 = arith.truncf %613 : vector<8x128xf32> to vector<8x128xbf16>
    %c0_155 = arith.constant 0 : index
    %c0_156 = arith.constant 0 : index
    %656 = vector.load %arg2[%c0_155, %c0_156] : memref<128x512xbf16, #tpu.memory_space<vmem>>, vector<128x512xbf16>
    %cst_157 = arith.constant dense<0.000000e+00> : vector<8x512xf32>
    %657 = tpu.matmul %655, %656, %cst_157 {dimension_numbers = #tpu.dot_dimension_numbers<[1], [0], [0], [1], [0, 0, 1, 1], [], []>} : vector<8x128xbf16>, vector<128x512xbf16>, vector<8x512xf32> -> vector<8x512xf32>
    %658 = arith.addf %654, %657 : vector<8x512xf32>
    %659 = vector.extract_strided_slice %658 {offsets = [0, 0], sizes = [8, 128], strides = [1, 1]} : vector<8x512xf32> to vector<8x128xf32>
    %660 = arith.negf %659 : vector<8x128xf32>
    %661 = math.exp %660 : vector<8x128xf32>
    %cst_158 = arith.constant 1.000000e+00 : f32
    %662 = vector.broadcast %cst_158 : f32 to vector<8x128xf32>
    %663 = arith.addf %662, %661 : vector<8x128xf32>
    %664 = arith.divf %662, %663 : vector<8x128xf32>
    %665 = vector.extract_strided_slice %658 {offsets = [0, 128], sizes = [8, 128], strides = [1, 1]} : vector<8x512xf32> to vector<8x128xf32>
    %666 = arith.negf %665 : vector<8x128xf32>
    %667 = math.exp %666 : vector<8x128xf32>
    %cst_159 = arith.constant 1.000000e+00 : f32
    %668 = vector.broadcast %cst_159 : f32 to vector<8x128xf32>
    %669 = arith.addf %668, %667 : vector<8x128xf32>
    %670 = arith.divf %668, %669 : vector<8x128xf32>
    %671 = vector.extract_strided_slice %658 {offsets = [0, 256], sizes = [8, 128], strides = [1, 1]} : vector<8x512xf32> to vector<8x128xf32>
    %672 = math.tanh %671 : vector<8x128xf32>
    %673 = vector.extract_strided_slice %658 {offsets = [0, 384], sizes = [8, 128], strides = [1, 1]} : vector<8x512xf32> to vector<8x128xf32>
    %674 = arith.negf %673 : vector<8x128xf32>
    %675 = math.exp %674 : vector<8x128xf32>
    %cst_160 = arith.constant 1.000000e+00 : f32
    %676 = vector.broadcast %cst_160 : f32 to vector<8x128xf32>
    %677 = arith.addf %676, %675 : vector<8x128xf32>
    %678 = arith.divf %676, %677 : vector<8x128xf32>
    %679 = arith.mulf %670, %614 : vector<8x128xf32>
    %680 = arith.mulf %664, %672 : vector<8x128xf32>
    %681 = arith.addf %679, %680 : vector<8x128xf32>
    %682 = math.tanh %681 : vector<8x128xf32>
    %683 = arith.mulf %678, %682 : vector<8x128xf32>
    %684 = arith.select %650, %683, %613 : vector<8x128xi1>, vector<8x128xf32>
    %685 = arith.truncf %684 : vector<8x128xf32> to vector<8x128xbf16>
    %c0_161 = arith.constant 0 : index
    %c0_162 = arith.constant 0 : index
    %686 = vector.load %arg3[%c0_161, %c0_162] : memref<128x512xbf16, #tpu.memory_space<vmem>>, vector<128x512xbf16>
    %cst_163 = arith.constant dense<0.000000e+00> : vector<8x512xf32>
    %687 = tpu.matmul %685, %686, %cst_163 {dimension_numbers = #tpu.dot_dimension_numbers<[1], [0], [0], [1], [0, 0, 1, 1], [], []>} : vector<8x128xbf16>, vector<128x512xbf16>, vector<8x512xf32> -> vector<8x512xf32>
    %688 = arith.addf %653, %687 : vector<8x512xf32>
    %689 = arith.addf %688, %3 : vector<8x512xf32>
    %690 = vector.extract_strided_slice %689 {offsets = [0, 0], sizes = [8, 128], strides = [1, 1]} : vector<8x512xf32> to vector<8x128xf32>
    %691 = arith.negf %690 : vector<8x128xf32>
    %692 = math.exp %691 : vector<8x128xf32>
    %cst_164 = arith.constant 1.000000e+00 : f32
    %693 = vector.broadcast %cst_164 : f32 to vector<8x128xf32>
    %694 = arith.addf %693, %692 : vector<8x128xf32>
    %695 = arith.divf %693, %694 : vector<8x128xf32>
    %696 = vector.extract_strided_slice %689 {offsets = [0, 128], sizes = [8, 128], strides = [1, 1]} : vector<8x512xf32> to vector<8x128xf32>
    %697 = arith.negf %696 : vector<8x128xf32>
    %698 = math.exp %697 : vector<8x128xf32>
    %cst_165 = arith.constant 1.000000e+00 : f32
    %699 = vector.broadcast %cst_165 : f32 to vector<8x128xf32>
    %700 = arith.addf %699, %698 : vector<8x128xf32>
    %701 = arith.divf %699, %700 : vector<8x128xf32>
    %702 = vector.extract_strided_slice %689 {offsets = [0, 256], sizes = [8, 128], strides = [1, 1]} : vector<8x512xf32> to vector<8x128xf32>
    %703 = math.tanh %702 : vector<8x128xf32>
    %704 = vector.extract_strided_slice %689 {offsets = [0, 384], sizes = [8, 128], strides = [1, 1]} : vector<8x512xf32> to vector<8x128xf32>
    %705 = arith.negf %704 : vector<8x128xf32>
    %706 = math.exp %705 : vector<8x128xf32>
    %cst_166 = arith.constant 1.000000e+00 : f32
    %707 = vector.broadcast %cst_166 : f32 to vector<8x128xf32>
    %708 = arith.addf %707, %706 : vector<8x128xf32>
    %709 = arith.divf %707, %708 : vector<8x128xf32>
    %710 = arith.mulf %701, %646 : vector<8x128xf32>
    %711 = arith.mulf %695, %703 : vector<8x128xf32>
    %712 = arith.addf %710, %711 : vector<8x128xf32>
    %713 = math.tanh %712 : vector<8x128xf32>
    %714 = arith.mulf %709, %713 : vector<8x128xf32>
    %715 = arith.select %650, %714, %645 : vector<8x128xi1>, vector<8x128xf32>
    %716 = arith.truncf %715 : vector<8x128xf32> to vector<8x128xbf16>
    %c0_167 = arith.constant 0 : index
    %c0_168 = arith.constant 0 : index
    %717 = vector.load %arg6[%c0_167, %c0_168] : memref<128x128xbf16, #tpu.memory_space<vmem>>, vector<128x128xbf16>
    %cst_169 = arith.constant dense<0.000000e+00> : vector<8x128xf32>
    %718 = tpu.matmul %716, %717, %cst_169 {dimension_numbers = #tpu.dot_dimension_numbers<[1], [0], [0], [1], [0, 0, 1, 1], [], []>} : vector<8x128xbf16>, vector<128x128xbf16>, vector<8x128xf32> -> vector<8x128xf32>
    %c0_170 = arith.constant 0 : index
    %c0_171 = arith.constant 0 : index
    %719 = vector.load %arg7[%c0_170, %c0_171] : memref<1x128xf32, #tpu.memory_space<vmem>>, vector<1x128xf32>
    %720 = vector.broadcast %719 : vector<1x128xf32> to vector<8x128xf32>
    %721 = arith.addf %718, %720 : vector<8x128xf32>
    %c0_172 = arith.constant 0 : index
    %c0_173 = arith.constant 0 : index
    %722 = vector.load %arg8[%c0_172, %c0_173] : memref<8x128xf32, #tpu.memory_space<vmem>>, vector<8x128xf32>
    tpu.vector_store %arg8[%c0_172, %c0_173], %721 {strides = array<i32>} : memref<8x128xf32, #tpu.memory_space<vmem>>, vector<8x128xf32>,
    return
  }
}

</mosaic_0001>

<llo_original>
// kernel: tpu_custom_call.1
$region0: #{tpu_custom_call.1}
  #allocation0 [shape = 'u32[]', space=smem, size = 0x4, offset = 0x4, fixed_abs, tag = 'smem constant byte address 0x4 - core index']
  #allocation1 [shape = 'u32[144,128]{1,0:T(1,128)}', space=vmem, size = 0x12000, scoped, tag = 'internal scratch']
  %s0 = inlined_call_operand.hbm [shape: f32[80,512], index: 0, kind: input, shape index: {}]
  %s1 = inlined_call_operand.vmem [shape: s32[8,1], index: 1, kind: input, shape index: {}]
  %s2 = inlined_call_operand.hbm [shape: bf16[128,512], index: 2, kind: input, shape index: {}]
  %s3 = inlined_call_operand.hbm [shape: bf16[128,512], index: 3, kind: input, shape index: {}]
  %s4 = inlined_call_operand.hbm [shape: bf16[128,512], index: 4, kind: input, shape index: {}]
  %s5 = inlined_call_operand.vmem [shape: f32[1,512], index: 5, kind: input, shape index: {}]
  %s6 = inlined_call_operand.hbm [shape: bf16[128,128], index: 6, kind: input, shape index: {}]
  %s7 = inlined_call_operand.vmem [shape: f32[1,128], index: 7, kind: input, shape index: {}]
  %s8 = inlined_call_operand.hbm [shape: f32[8,128], index: 8, kind: output, shape index: {}]
  %s9 = sld [smem:[#allocation0]]
  $region62: #{tpu_custom_call.1} parent=0
    _
  %s11 = ssub.s32 1, %s9
  %s12 = scalar_select 0, %s11, %s9
  $region1: #{tpu_custom_call.1} parent=0
    #allocation2 [shape = 'u8[163840]{0}', space=vmem, size = 0x28000, scoped, tag = 'input window, operand 0, single buffered']
    #allocation3 [shape = 's32[1]{0}', space=sflag, size = 0x4, scoped, tag = 'scoped memory for tpu_custom_call.1']
    #allocation4 [shape = 's32[1]{0}', space=sflag, size = 0x4, scoped, tag = 'scoped memory for tpu_custom_call.1']
    #allocation5 [shape = 'u8[131072]{0}', space=vmem, size = 0x20000, scoped, tag = 'input window, operand 2, single buffered']
    #allocation6 [shape = 's32[1]{0}', space=sflag, size = 0x4, scoped, tag = 'scoped memory for tpu_custom_call.1']
    #allocation7 [shape = 'u8[131072]{0}', space=vmem, size = 0x20000, scoped, tag = 'input window, operand 3, single buffered']
    #allocation8 [shape = 'u8[131072]{0}', space=vmem, size = 0x20000, scoped, tag = 'input window, operand 4, single buffered']
    #allocation9 [shape = 's32[1]{0}', space=sflag, size = 0x4, scoped, tag = 'scoped memory for tpu_custom_call.1']
    #allocation10 [shape = 'u8[32768]{0}', space=vmem, size = 0x8000, scoped, tag = 'input window, operand 6, single buffered']
    #allocation11 [shape = 'u8[4096]{0}', space=vmem, size = 0x1000, scoped, tag = 'output window, operand 0, single buffered']
    %13 = vsyncpa [#allocation3], 0
    %14 = vsyncpa [#allocation6], 0
    %15 = vsyncpa [#allocation9], 0
    %16 = vsyncpa [#allocation4], 0
    // Predicated region
    $region2: #{tpu_custom_call.1} parent=1 // pred_check
      _
    $region3: #{tpu_custom_call.1} parent=1 // pred_check_branch
      %18 = sbr.rel (0) target = $region5
    $region4: #{tpu_custom_call.1} parent=1 // pred_region
      %s20 = ssub.s32 5120, 5120
      %21 = vsyncadd [#allocation3], %s20
      %s22 = sshll.u32 [#allocation2], 4
      %s23 = int_to_ptr.vmem [resolvable:$true] %s22
      %28 = dma.hbm_to_vmem [thread:$0]  %s0, 5120, %s23, [#allocation3], 512, 512, 32
    $region5: #{tpu_custom_call.1} parent=1 // pred_fallthru
      _
    // Predicated region
    $region6: #{tpu_custom_call.1} parent=1 // pred_check
      _
    $region7: #{tpu_custom_call.1} parent=1 // pred_check_branch
      %30 = sbr.rel (0) target = $region9
    $region8: #{tpu_custom_call.1} parent=1 // pred_region
      _
    $region9: #{tpu_custom_call.1} parent=1 // pred_fallthru
      _
    // Predicated region
    $region10: #{tpu_custom_call.1} parent=1 // pred_check
      _
    $region11: #{tpu_custom_call.1} parent=1 // pred_check_branch
      %32 = sbr.rel (0) target = $region13
    $region12: #{tpu_custom_call.1} parent=1 // pred_region
      %s34 = ssub.s32 4096, 4096
      %35 = vsyncadd [#allocation6], %s34
      %s36 = sshll.u32 [#allocation5], 4
      %s37 = int_to_ptr.vmem [resolvable:$true] %s36
      %42 = dma.hbm_to_vmem [thread:$0]  %s2, 4096, %s37, [#allocation6], 256, 256, 16
    $region13: #{tpu_custom_call.1} parent=1 // pred_fallthru
      _
    // Predicated region
    $region14: #{tpu_custom_call.1} parent=1 // pred_check
      _
    $region15: #{tpu_custom_call.1} parent=1 // pred_check_branch
      %44 = sbr.rel (0) target = $region17
    $region16: #{tpu_custom_call.1} parent=1 // pred_region
      %s46 = ssub.s32 4096, 4096
      %47 = vsyncadd [#allocation6], %s46
      %s48 = sshll.u32 [#allocation7], 4
      %s49 = int_to_ptr.vmem [resolvable:$true] %s48
      %54 = dma.hbm_to_vmem [thread:$0]  %s3, 4096, %s49, [#allocation6], 256, 256, 16
    $region17: #{tpu_custom_call.1} parent=1 // pred_fallthru
      _
    // Predicated region
    $region18: #{tpu_custom_call.1} parent=1 // pred_check
      _
    $region19: #{tpu_custom_call.1} parent=1 // pred_check_branch
      %56 = sbr.rel (0) target = $region21
    $region20: #{tpu_custom_call.1} parent=1 // pred_region
      %s58 = ssub.s32 4096, 4096
      %59 = vsyncadd [#allocation9], %s58
      %s60 = sshll.u32 [#allocation8], 4
      %s61 = int_to_ptr.vmem [resolvable:$true] %s60
      %66 = dma.hbm_to_vmem [thread:$0]  %s4, 4096, %s61, [#allocation9], 256, 256, 16
    $region21: #{tpu_custom_call.1} parent=1 // pred_fallthru
      _
    // Predicated region
    $region22: #{tpu_custom_call.1} parent=1 // pred_check
      _
    $region23: #{tpu_custom_call.1} parent=1 // pred_check_branch
      %68 = sbr.rel (0) target = $region25
    $region24: #{tpu_custom_call.1} parent=1 // pred_region
      _
    $region25: #{tpu_custom_call.1} parent=1 // pred_fallthru
      _
    // Predicated region
    $region26: #{tpu_custom_call.1} parent=1 // pred_check
      _
    $region27: #{tpu_custom_call.1} parent=1 // pred_check_branch
      %70 = sbr.rel (0) target = $region29
    $region28: #{tpu_custom_call.1} parent=1 // pred_region
      %s72 = ssub.s32 1024, 1024
      %73 = vsyncadd [#allocation9], %s72
      %s74 = sshll.u32 [#allocation10], 4
      %s75 = int_to_ptr.vmem [resolvable:$true] %s74
      %80 = dma.hbm_to_vmem [thread:$0]  %s6, 1024, %s75, [#allocation9], 64, 64, 4
    $region29: #{tpu_custom_call.1} parent=1 // pred_fallthru
      _
    // Predicated region
    $region30: #{tpu_custom_call.1} parent=1 // pred_check
      _
    $region31: #{tpu_custom_call.1} parent=1 // pred_check_branch
      %82 = sbr.rel (0) target = $region33
    $region32: #{tpu_custom_call.1} parent=1 // pred_region
      _
    $region33: #{tpu_custom_call.1} parent=1 // pred_fallthru
      _
    // Predicated region
    $region34: #{tpu_custom_call.1} parent=1 // pred_check
      _
    $region35: #{tpu_custom_call.1} parent=1 // pred_check_branch
      %84 = sbr.rel (0) target = $region37
    $region36: #{tpu_custom_call.1} parent=1 // pred_region
      %85 = dma.done [#allocation3], 5120
    $region37: #{tpu_custom_call.1} parent=1 // pred_fallthru
      _
    // Predicated region
    $region38: #{tpu_custom_call.1} parent=1 // pred_check
      _
    $region39: #{tpu_custom_call.1} parent=1 // pred_check_branch
      %87 = sbr.rel (0) target = $region41
    $region40: #{tpu_custom_call.1} parent=1 // pred_region
      %88 = dma.done [#allocation6], 4096
    $region41: #{tpu_custom_call.1} parent=1 // pred_fallthru
      _
    // Predicated region
    $region42: #{tpu_custom_call.1} parent=1 // pred_check
      _
    $region43: #{tpu_custom_call.1} parent=1 // pred_check_branch
      %90 = sbr.rel (0) target = $region45
    $region44: #{tpu_custom_call.1} parent=1 // pred_region
      %91 = dma.done [#allocation6], 4096
    $region45: #{tpu_custom_call.1} parent=1 // pred_fallthru
      _
    // Predicated region
    $region46: #{tpu_custom_call.1} parent=1 // pred_check
      _
    $region47: #{tpu_custom_call.1} parent=1 // pred_check_branch
      %93 = sbr.rel (0) target = $region49
    $region48: #{tpu_custom_call.1} parent=1 // pred_region
      %94 = dma.done [#allocation9], 4096
    $region49: #{tpu_custom_call.1} parent=1 // pred_fallthru
      _
    // Predicated region
    $region50: #{tpu_custom_call.1} parent=1 // pred_check
      _
    $region51: #{tpu_custom_call.1} parent=1 // pred_check_branch
      %96 = sbr.rel (0) target = $region53
    $region52: #{tpu_custom_call.1} parent=1 // pred_region
      %97 = dma.done [#allocation9], 1024
    $region53: #{tpu_custom_call.1} parent=1 // pred_fallthru
      _
    %v99 = vld [vmem:[%s1] sm:$0xff]
    %v100 = vld [vmem:[%s5] sm:$0xf]
    %v102 = vlaneseq
    %v103 = vshrl.u32 %v102, 7
    %v104 = vsub.s32 0, %v103
    %v105 = vrot.slane %v100, %v104
    %v106 = vlaneseq
    %v107 = vshrl.u32 %v106, 7
    %v108 = vsub.s32 1, %v107
    %v109 = vrot.slane %v100, %v108
    %v110 = vlaneseq
    %v111 = vshrl.u32 %v110, 7
    %v112 = vsub.s32 2, %v111
    %v113 = vrot.slane %v100, %v112
    %v114 = vlaneseq
    %v115 = vshrl.u32 %v114, 7
    %v116 = vsub.s32 3, %v115
    %v117 = vrot.slane %v100, %v116
    %vm122 = vcmp.gt.s32.totalorder %v99, 0
    %v123 = vsel %vm122, 1, 0
    %124 = vset.pattern.permute.xlu0 0
    %125 = vperm.xlu0 %124, %v123
    %v126 = vpop.permute.xlu0 %125
    %vm127 = vcmp.eq.s32.totalorder %v126, 1
    %v128 = vld [vmem:[#allocation8] sm:$0xff]
    %v129 = vld [vmem:[#allocation8 + $0x8] sm:$0xff]
    %v130 = vld [vmem:[#allocation8 + $0x10] sm:$0xff]
    %v131 = vld [vmem:[#allocation8 + $0x18] sm:$0xff]
    %v132 = vld [vmem:[#allocation8 + $0x20] sm:$0xff]
    %v133 = vld [vmem:[#allocation8 + $0x28] sm:$0xff]
    %v134 = vld [vmem:[#allocation8 + $0x30] sm:$0xff]
    %v135 = vld [vmem:[#allocation8 + $0x38] sm:$0xff]
    %v136 = vld [vmem:[#allocation8 + $0x40] sm:$0xff]
    %v137 = vld [vmem:[#allocation8 + $0x48] sm:$0xff]
    %v138 = vld [vmem:[#allocation8 + $0x50] sm:$0xff]
    %v139 = vld [vmem:[#allocation8 + $0x58] sm:$0xff]
    %v140 = vld [vmem:[#allocation8 + $0x60] sm:$0xff]
    %v141 = vld [vmem:[#allocation8 + $0x68] sm:$0xff]
    %v142 = vld [vmem:[#allocation8 + $0x70] sm:$0xff]
    %v143 = vld [vmem:[#allocation8 + $0x78] sm:$0xff]
    %v144 = vld [vmem:[#allocation8 + $0x80] sm:$0xff]
    %v145 = vld [vmem:[#allocation8 + $0x88] sm:$0xff]
    %v146 = vld [vmem:[#allocation8 + $0x90] sm:$0xff]
    %v147 = vld [vmem:[#allocation8 + $0x98] sm:$0xff]
    %v148 = vld [vmem:[#allocation8 + $0xa0] sm:$0xff]
    %v149 = vld [vmem:[#allocation8 + $0xa8] sm:$0xff]
    %v150 = vld [vmem:[#allocation8 + $0xb0] sm:$0xff]
    %v151 = vld [vmem:[#allocation8 + $0xb8] sm:$0xff]
    %v152 = vld [vmem:[#allocation8 + $0xc0] sm:$0xff]
    %v153 = vld [vmem:[#allocation8 + $0xc8] sm:$0xff]
    %v154 = vld [vmem:[#allocation8 + $0xd0] sm:$0xff]
    %v155 = vld [vmem:[#allocation8 + $0xd8] sm:$0xff]
    %v156 = vld [vmem:[#allocation8 + $0xe0] sm:$0xff]
    %v157 = vld [vmem:[#allocation8 + $0xe8] sm:$0xff]
    %v158 = vld [vmem:[#allocation8 + $0xf0] sm:$0xff]
    %v159 = vld [vmem:[#allocation8 + $0xf8] sm:$0xff]
    %v160 = vld [vmem:[#allocation2] sm:$0xff]
    %v161 = vld [vmem:[#allocation2 + $0x8] sm:$0xff]
    %v162 = vld [vmem:[#allocation2 + $0x10] sm:$0xff]
    %v163 = vld [vmem:[#allocation2 + $0x18] sm:$0xff]
    %v164 = vld [vmem:[#allocation5] sm:$0xff]
    %v165 = vld [vmem:[#allocation5 + $0x8] sm:$0xff]
    %v166 = vld [vmem:[#allocation5 + $0x10] sm:$0xff]
    %v167 = vld [vmem:[#allocation5 + $0x18] sm:$0xff]
    %v168 = vld [vmem:[#allocation5 + $0x20] sm:$0xff]
    %v169 = vld [vmem:[#allocation5 + $0x28] sm:$0xff]
    %v170 = vld [vmem:[#allocation5 + $0x30] sm:$0xff]
    %v171 = vld [vmem:[#allocation5 + $0x38] sm:$0xff]
    %v172 = vld [vmem:[#allocation5 + $0x40] sm:$0xff]
    %v173 = vld [vmem:[#allocation5 + $0x48] sm:$0xff]
    %v174 = vld [vmem:[#allocation5 + $0x50] sm:$0xff]
    %v175 = vld [vmem:[#allocation5 + $0x58] sm:$0xff]
    %v176 = vld [vmem:[#allocation5 + $0x60] sm:$0xff]
    %v177 = vld [vmem:[#allocation5 + $0x68] sm:$0xff]
    %v178 = vld [vmem:[#allocation5 + $0x70] sm:$0xff]
    %v179 = vld [vmem:[#allocation5 + $0x78] sm:$0xff]
    %v180 = vld [vmem:[#allocation5 + $0x80] sm:$0xff]
    %v181 = vld [vmem:[#allocation5 + $0x88] sm:$0xff]
    %v182 = vld [vmem:[#allocation5 + $0x90] sm:$0xff]
    %v183 = vld [vmem:[#allocation5 + $0x98] sm:$0xff]
    %v184 = vld [vmem:[#allocation5 + $0xa0] sm:$0xff]
    %v185 = vld [vmem:[#allocation5 + $0xa8] sm:$0xff]
    %v186 = vld [vmem:[#allocation5 + $0xb0] sm:$0xff]
    %v187 = vld [vmem:[#allocation5 + $0xb8] sm:$0xff]
    %v188 = vld [vmem:[#allocation5 + $0xc0] sm:$0xff]
    %v189 = vld [vmem:[#allocation5 + $0xc8] sm:$0xff]
    %v190 = vld [vmem:[#allocation5 + $0xd0] sm:$0xff]
    %v191 = vld [vmem:[#allocation5 + $0xd8] sm:$0xff]
    %v192 = vld [vmem:[#allocation5 + $0xe0] sm:$0xff]
    %v193 = vld [vmem:[#allocation5 + $0xe8] sm:$0xff]
    %v194 = vld [vmem:[#allocation5 + $0xf0] sm:$0xff]
    %v195 = vld [vmem:[#allocation5 + $0xf8] sm:$0xff]
    %v228 = vunpack.c.l.b16 %v164
    %v229 = vunpack.c.h.b16 %v164
    %v230 = vunpack.c.l.b16 %v165
    %v231 = vunpack.c.h.b16 %v165
    %v232 = vunpack.c.l.b16 %v166
    %v233 = vunpack.c.h.b16 %v166
    %v234 = vunpack.c.l.b16 %v167
    %v235 = vunpack.c.h.b16 %v167
    %v236 = vunpack.c.l.b16 %v168
    %v237 = vunpack.c.h.b16 %v168
    %v238 = vunpack.c.l.b16 %v169
    %v239 = vunpack.c.h.b16 %v169
    %v240 = vunpack.c.l.b16 %v170
    %v241 = vunpack.c.h.b16 %v170
    %v242 = vunpack.c.l.b16 %v171
    %v243 = vunpack.c.h.b16 %v171
    %v244 = vunpack.c.l.b16 %v172
    %v245 = vunpack.c.h.b16 %v172
    %v246 = vunpack.c.l.b16 %v173
    %v247 = vunpack.c.h.b16 %v173
    %v248 = vunpack.c.l.b16 %v174
    %v249 = vunpack.c.h.b16 %v174
    %v250 = vunpack.c.l.b16 %v175
    %v251 = vunpack.c.h.b16 %v175
    %v252 = vunpack.c.l.b16 %v176
    %v253 = vunpack.c.h.b16 %v176
    %v254 = vunpack.c.l.b16 %v177
    %v255 = vunpack.c.h.b16 %v177
    %v256 = vunpack.c.l.b16 %v178
    %v257 = vunpack.c.h.b16 %v178
    %v258 = vunpack.c.l.b16 %v179
    %v259 = vunpack.c.h.b16 %v179
    %v260 = vunpack.c.l.b16 %v180
    %v261 = vunpack.c.h.b16 %v180
    %v262 = vunpack.c.l.b16 %v181
    %v263 = vunpack.c.h.b16 %v181
    %v264 = vunpack.c.l.b16 %v182
    %v265 = vunpack.c.h.b16 %v182
    %v266 = vunpack.c.l.b16 %v183
    %v267 = vunpack.c.h.b16 %v183
    %v268 = vunpack.c.l.b16 %v184
    %v269 = vunpack.c.h.b16 %v184
    %v270 = vunpack.c.l.b16 %v185
    %v271 = vunpack.c.h.b16 %v185
    %v272 = vunpack.c.l.b16 %v186
    %v273 = vunpack.c.h.b16 %v186
    %v274 = vunpack.c.l.b16 %v187
    %v275 = vunpack.c.h.b16 %v187
    %v276 = vunpack.c.l.b16 %v188
    %v277 = vunpack.c.h.b16 %v188
    %v278 = vunpack.c.l.b16 %v189
    %v279 = vunpack.c.h.b16 %v189
    %v280 = vunpack.c.l.b16 %v190
    %v281 = vunpack.c.h.b16 %v190
    %v282 = vunpack.c.l.b16 %v191
    %v283 = vunpack.c.h.b16 %v191
    %v284 = vunpack.c.l.b16 %v192
    %v285 = vunpack.c.h.b16 %v192
    %v286 = vunpack.c.l.b16 %v193
    %v287 = vunpack.c.h.b16 %v193
    %v288 = vunpack.c.l.b16 %v194
    %v289 = vunpack.c.h.b16 %v194
    %v290 = vunpack.c.l.b16 %v195
    %v291 = vunpack.c.h.b16 %v195
    %v292 = vpack.c.b16 %v232, %v228
    %v293 = vpack.c.b16 %v233, %v229
    %v294 = vpack.c.b16 %v234, %v230
    %v295 = vpack.c.b16 %v235, %v231
    %v296 = vpack.c.b16 %v240, %v236
    %v297 = vpack.c.b16 %v241, %v237
    %v298 = vpack.c.b16 %v242, %v238
    %v299 = vpack.c.b16 %v243, %v239
    %v300 = vpack.c.b16 %v248, %v244
    %v301 = vpack.c.b16 %v249, %v245
    %v302 = vpack.c.b16 %v250, %v246
    %v303 = vpack.c.b16 %v251, %v247
    %v304 = vpack.c.b16 %v256, %v252
    %v305 = vpack.c.b16 %v257, %v253
    %v306 = vpack.c.b16 %v258, %v254
    %v307 = vpack.c.b16 %v259, %v255
    %v308 = vpack.c.b16 %v264, %v260
    %v309 = vpack.c.b16 %v265, %v261
    %v310 = vpack.c.b16 %v266, %v262
    %v311 = vpack.c.b16 %v267, %v263
    %v312 = vpack.c.b16 %v272, %v268
    %v313 = vpack.c.b16 %v273, %v269
    %v314 = vpack.c.b16 %v274, %v270
    %v315 = vpack.c.b16 %v275, %v271
    %v316 = vpack.c.b16 %v280, %v276
    %v317 = vpack.c.b16 %v281, %v277
    %v318 = vpack.c.b16 %v282, %v278
    %v319 = vpack.c.b16 %v283, %v279
    %v320 = vpack.c.b16 %v288, %v284
    %v321 = vpack.c.b16 %v289, %v285
    %v322 = vpack.c.b16 %v290, %v286
    %v323 = vpack.c.b16 %v291, %v287
    %356 = vmatprep.subr.bf16.mxu0 %v293
    %357 = vmatpush1.bf16.msra.mxu0 %v292
    %358 = vmatprep.subr.bf16.mxu0 %v297
    %359 = vmatpush1.bf16.msra.mxu0 %v296
    %360 = vmatprep.subr.bf16.mxu0 %v301
    %361 = vmatpush1.bf16.msra.mxu0 %v300
    %362 = vmatprep.subr.bf16.mxu0 %v305
    %363 = vmatpush1.bf16.msra.mxu0 %v304
    %364 = vmatprep.subr.bf16.mxu0 %v309
    %365 = vmatpush1.bf16.msra.mxu0 %v308
    %366 = vmatprep.subr.bf16.mxu0 %v313
    %367 = vmatpush1.bf16.msra.mxu0 %v312
    %368 = vmatprep.subr.bf16.mxu0 %v317
    %369 = vmatpush1.bf16.msra.mxu0 %v316
    %370 = vmatprep.subr.bf16.mxu0 %v321
    %371 = vmatpush1.bf16.msra.mxu0 %v320
    %372 = vmatprep.subr.bf16.mxu0 0
    %373 = vmatpush1.bf16.msra.mxu0 0
    %374 = vmatprep.subr.bf16.mxu0 0
    %375 = vmatpush1.bf16.msra.mxu0 0
    %376 = vmatprep.subr.bf16.mxu0 0
    %377 = vmatpush1.bf16.msra.mxu0 0
    %378 = vmatprep.subr.bf16.mxu0 0
    %379 = vmatpush1.bf16.msra.mxu0 0
    %380 = vmatprep.subr.bf16.mxu0 0
    %381 = vmatpush1.bf16.msra.mxu0 0
    %382 = vmatprep.subr.bf16.mxu0 0
    %383 = vmatpush1.bf16.msra.mxu0 0
    %384 = vmatprep.subr.bf16.mxu0 0
    %385 = vmatpush1.bf16.msra.mxu0 0
    %386 = vmatprep.subr.bf16.mxu0 0
    %387 = vmatpush1.bf16.msra.mxu0 0
    %388 = vmatprep.mubr.bf16.mxu0 0
    %389 = vmatmul.mubr.bf16.gmra.mrb[0].mxu0 0
    %v390 = vpop.f32.mrb[0].mxu0
    %v391 = vadd.f32 0.0, %v390
    %v392 = vpop.f32.mrb[0].mxu0
    %v393 = vadd.f32 0.0, %v392
    %v394 = vpop.f32.mrb[0].mxu0
    %v395 = vpop.f32.mrb[0].mxu0
    %396 = vdwg.mxu0
    %397 = vmatprep.subr.bf16.mxu0 %v295
    %398 = vmatpush1.bf16.msra.mxu0 %v294
    %399 = vmatprep.subr.bf16.mxu0 %v299
    %400 = vmatpush1.bf16.msra.mxu0 %v298
    %401 = vmatprep.subr.bf16.mxu0 %v303
    %402 = vmatpush1.bf16.msra.mxu0 %v302
    %403 = vmatprep.subr.bf16.mxu0 %v307
    %404 = vmatpush1.bf16.msra.mxu0 %v306
    %405 = vmatprep.subr.bf16.mxu0 %v311
    %406 = vmatpush1.bf16.msra.mxu0 %v310
    %407 = vmatprep.subr.bf16.mxu0 %v315
    %408 = vmatpush1.bf16.msra.mxu0 %v314
    %409 = vmatprep.subr.bf16.mxu0 %v319
    %410 = vmatpush1.bf16.msra.mxu0 %v318
    %411 = vmatprep.subr.bf16.mxu0 %v323
    %412 = vmatpush1.bf16.msra.mxu0 %v322
    %413 = vmatprep.subr.bf16.mxu0 0
    %414 = vmatpush1.bf16.msra.mxu0 0
    %415 = vmatprep.subr.bf16.mxu0 0
    %416 = vmatpush1.bf16.msra.mxu0 0
    %417 = vmatprep.subr.bf16.mxu0 0
    %418 = vmatpush1.bf16.msra.mxu0 0
    %419 = vmatprep.subr.bf16.mxu0 0
    %420 = vmatpush1.bf16.msra.mxu0 0
    %421 = vmatprep.subr.bf16.mxu0 0
    %422 = vmatpush1.bf16.msra.mxu0 0
    %423 = vmatprep.subr.bf16.mxu0 0
    %424 = vmatpush1.bf16.msra.mxu0 0
    %425 = vmatprep.subr.bf16.mxu0 0
    %426 = vmatpush1.bf16.msra.mxu0 0
    %427 = vmatprep.subr.bf16.mxu0 0
    %428 = vmatpush1.bf16.msra.mxu0 0
    %429 = vmatprep.mubr.bf16.mxu0 0
    %430 = vmatmul.mubr.bf16.gmra.mrb[0].mxu0 0
    %v431 = vpop.f32.mrb[0].mxu0
    %v432 = vadd.f32 0.0, %v431
    %v433 = vpop.f32.mrb[0].mxu0
    %v434 = vadd.f32 0.0, %v433
    %v435 = vpop.f32.mrb[0].mxu0
    %v436 = vpop.f32.mrb[0].mxu0
    %437 = vdwg.mxu0
    %v438 = vadd.f32 %v160, %v391
    %v439 = vadd.f32 %v161, %v393
    %v440 = vadd.f32 %v162, %v432
    %v441 = vadd.f32 %v163, %v434
    %v442 = vxor.u32 %v438, 2147483648
    %v443 = vmul.f32 %v442, 1.442695
    %v444 = vpow.pop %v443
    %v445 = vadd.f32 %v444, 1.0
    %v446 = vrcp.pop %v445
    %v447 = vmul.f32 1.0, %v446
    %v448 = vxor.u32 %v439, 2147483648
    %v449 = vmul.f32 %v448, 1.442695
    %v450 = vpow.pop %v449
    %v451 = vadd.f32 %v450, 1.0
    %v452 = vrcp.pop %v451
    %v453 = vmul.f32 1.0, %v452
    %v454 = vtanh.pop %v440
    %v455 = vxor.u32 %v441, 2147483648
    %v456 = vmul.f32 %v455, 1.442695
    %v457 = vpow.pop %v456
    %v458 = vadd.f32 %v457, 1.0
    %v459 = vrcp.pop %v458
    %v460 = vmul.f32 1.0, %v459
    %v461 = vmul.f32 %v453, 0.0
    %v462 = vmul.f32 %v447, %v454
    %v463 = vadd.f32 %v461, %v462
    %v464 = vtanh.pop %v463
    %v465 = vmul.f32 %v460, %v464
    %v466 = vsel %vm127, %v465, 0.0
    %v467 = vsel %vm127, %v463, 0.0
    %v468 = vpack.c.bf16 %v466, %v466
    %v469 = vld [vmem:[#allocation7] sm:$0xff]
    %v470 = vld [vmem:[#allocation7 + $0x8] sm:$0xff]
    %v471 = vld [vmem:[#allocation7 + $0x10] sm:$0xff]
    %v472 = vld [vmem:[#allocation7 + $0x18] sm:$0xff]
    %v473 = vld [vmem:[#allocation7 + $0x20] sm:$0xff]
    %v474 = vld [vmem:[#allocation7 + $0x28] sm:$0xff]
    %v475 = vld [vmem:[#allocation7 + $0x30] sm:$0xff]
    %v476 = vld [vmem:[#allocation7 + $0x38] sm:$0xff]
    %v477 = vld [vmem:[#allocation7 + $0x40] sm:$0xff]
    %v478 = vld [vmem:[#allocation7 + $0x48] sm:$0xff]
    %v479 = vld [vmem:[#allocation7 + $0x50] sm:$0xff]
    %v480 = vld [vmem:[#allocation7 + $0x58] sm:$0xff]
    %v481 = vld [vmem:[#allocation7 + $0x60] sm:$0xff]
    %v482 = vld [vmem:[#allocation7 + $0x68] sm:$0xff]
    %v483 = vld [vmem:[#allocation7 + $0x70] sm:$0xff]
    %v484 = vld [vmem:[#allocation7 + $0x78] sm:$0xff]
    %v485 = vld [vmem:[#allocation7 + $0x80] sm:$0xff]
    %v486 = vld [vmem:[#allocation7 + $0x88] sm:$0xff]
    %v487 = vld [vmem:[#allocation7 + $0x90] sm:$0xff]
    %v488 = vld [vmem:[#allocation7 + $0x98] sm:$0xff]
    %v489 = vld [vmem:[#allocation7 + $0xa0] sm:$0xff]
    %v490 = vld [vmem:[#allocation7 + $0xa8] sm:$0xff]
    %v491 = vld [vmem:[#allocation7 + $0xb0] sm:$0xff]
    %v492 = vld [vmem:[#allocation7 + $0xb8] sm:$0xff]
    %v493 = vld [vmem:[#allocation7 + $0xc0] sm:$0xff]
    %v494 = vld [vmem:[#allocation7 + $0xc8] sm:$0xff]
    %v495 = vld [vmem:[#allocation7 + $0xd0] sm:$0xff]
    %v496 = vld [vmem:[#allocation7 + $0xd8] sm:$0xff]
    %v497 = vld [vmem:[#allocation7 + $0xe0] sm:$0xff]
    %v498 = vld [vmem:[#allocation7 + $0xe8] sm:$0xff]
    %v499 = vld [vmem:[#allocation7 + $0xf0] sm:$0xff]
    %v500 = vld [vmem:[#allocation7 + $0xf8] sm:$0xff]
    %v533 = vunpack.c.l.b16 %v469
    %v534 = vunpack.c.h.b16 %v469
    %v535 = vunpack.c.l.b16 %v470
    %v536 = vunpack.c.h.b16 %v470
    %v537 = vunpack.c.l.b16 %v471
    %v538 = vunpack.c.h.b16 %v471
    %v539 = vunpack.c.l.b16 %v472
    %v540 = vunpack.c.h.b16 %v472
    %v541 = vunpack.c.l.b16 %v473
    %v542 = vunpack.c.h.b16 %v473
    %v543 = vunpack.c.l.b16 %v474
    %v544 = vunpack.c.h.b16 %v474
    %v545 = vunpack.c.l.b16 %v475
    %v546 = vunpack.c.h.b16 %v475
    %v547 = vunpack.c.l.b16 %v476
    %v548 = vunpack.c.h.b16 %v476
    %v549 = vunpack.c.l.b16 %v477
    %v550 = vunpack.c.h.b16 %v477
    %v551 = vunpack.c.l.b16 %v478
    %v552 = vunpack.c.h.b16 %v478
    %v553 = vunpack.c.l.b16 %v479
    %v554 = vunpack.c.h.b16 %v479
    %v555 = vunpack.c.l.b16 %v480
    %v556 = vunpack.c.h.b16 %v480
    %v557 = vunpack.c.l.b16 %v481
    %v558 = vunpack.c.h.b16 %v481
    %v559 = vunpack.c.l.b16 %v482
    %v560 = vunpack.c.h.b16 %v482
    %v561 = vunpack.c.l.b16 %v483
    %v562 = vunpack.c.h.b16 %v483
    %v563 = vunpack.c.l.b16 %v484
    %v564 = vunpack.c.h.b16 %v484
    %v565 = vunpack.c.l.b16 %v485
    %v566 = vunpack.c.h.b16 %v485
    %v567 = vunpack.c.l.b16 %v486
    %v568 = vunpack.c.h.b16 %v486
    %v569 = vunpack.c.l.b16 %v487
    %v570 = vunpack.c.h.b16 %v487
    %v571 = vunpack.c.l.b16 %v488
    %v572 = vunpack.c.h.b16 %v488
    %v573 = vunpack.c.l.b16 %v489
    %v574 = vunpack.c.h.b16 %v489
    %v575 = vunpack.c.l.b16 %v490
    %v576 = vunpack.c.h.b16 %v490
    %v577 = vunpack.c.l.b16 %v491
    %v578 = vunpack.c.h.b16 %v491
    %v579 = vunpack.c.l.b16 %v492
    %v580 = vunpack.c.h.b16 %v492
    %v581 = vunpack.c.l.b16 %v493
    %v582 = vunpack.c.h.b16 %v493
    %v583 = vunpack.c.l.b16 %v494
    %v584 = vunpack.c.h.b16 %v494
    %v585 = vunpack.c.l.b16 %v495
    %v586 = vunpack.c.h.b16 %v495
    %v587 = vunpack.c.l.b16 %v496
    %v588 = vunpack.c.h.b16 %v496
    %v589 = vunpack.c.l.b16 %v497
    %v590 = vunpack.c.h.b16 %v497
    %v591 = vunpack.c.l.b16 %v498
    %v592 = vunpack.c.h.b16 %v498
    %v593 = vunpack.c.l.b16 %v499
    %v594 = vunpack.c.h.b16 %v499
    %v595 = vunpack.c.l.b16 %v500
    %v596 = vunpack.c.h.b16 %v500
    %v597 = vpack.c.b16 %v537, %v533
    %v598 = vpack.c.b16 %v538, %v534
    %v599 = vpack.c.b16 %v539, %v535
    %v600 = vpack.c.b16 %v540, %v536
    %v601 = vpack.c.b16 %v545, %v541
    %v602 = vpack.c.b16 %v546, %v542
    %v603 = vpack.c.b16 %v547, %v543
    %v604 = vpack.c.b16 %v548, %v544
    %v605 = vpack.c.b16 %v553, %v549
    %v606 = vpack.c.b16 %v554, %v550
    %v607 = vpack.c.b16 %v555, %v551
    %v608 = vpack.c.b16 %v556, %v552
    %v609 = vpack.c.b16 %v561, %v557
    %v610 = vpack.c.b16 %v562, %v558
    %v611 = vpack.c.b16 %v563, %v559
    %v612 = vpack.c.b16 %v564, %v560
    %v613 = vpack.c.b16 %v569, %v565
    %v614 = vpack.c.b16 %v570, %v566
    %v615 = vpack.c.b16 %v571, %v567
    %v616 = vpack.c.b16 %v572, %v568
    %v617 = vpack.c.b16 %v577, %v573
    %v618 = vpack.c.b16 %v578, %v574
    %v619 = vpack.c.b16 %v579, %v575
    %v620 = vpack.c.b16 %v580, %v576
    %v621 = vpack.c.b16 %v585, %v581
    %v622 = vpack.c.b16 %v586, %v582
    %v623 = vpack.c.b16 %v587, %v583
    %v624 = vpack.c.b16 %v588, %v584
    %v625 = vpack.c.b16 %v593, %v589
    %v626 = vpack.c.b16 %v594, %v590
    %v627 = vpack.c.b16 %v595, %v591
    %v628 = vpack.c.b16 %v596, %v592
    %661 = vmatprep.subr.bf16.mxu0 %v598
    %662 = vmatpush1.bf16.msra.mxu0 %v597
    %663 = vmatprep.subr.bf16.mxu0 %v602
    %664 = vmatpush1.bf16.msra.mxu0 %v601
    %665 = vmatprep.subr.bf16.mxu0 %v606
    %666 = vmatpush1.bf16.msra.mxu0 %v605
    %667 = vmatprep.subr.bf16.mxu0 %v610
    %668 = vmatpush1.bf16.msra.mxu0 %v609
    %669 = vmatprep.subr.bf16.mxu0 %v614
    %670 = vmatpush1.bf16.msra.mxu0 %v613
    %671 = vmatprep.subr.bf16.mxu0 %v618
    %672 = vmatpush1.bf16.msra.mxu0 %v617
    %673 = vmatprep.subr.bf16.mxu0 %v622
    %674 = vmatpush1.bf16.msra.mxu0 %v621
    %675 = vmatprep.subr.bf16.mxu0 %v626
    %676 = vmatpush1.bf16.msra.mxu0 %v625
    %677 = vmatprep.subr.bf16.mxu0 0
    %678 = vmatpush1.bf16.msra.mxu0 0
    %679 = vmatprep.subr.bf16.mxu0 0
    %680 = vmatpush1.bf16.msra.mxu0 0
    %681 = vmatprep.subr.bf16.mxu0 0
    %682 = vmatpush1.bf16.msra.mxu0 0
    %683 = vmatprep.subr.bf16.mxu0 0
    %684 = vmatpush1.bf16.msra.mxu0 0
    %685 = vmatprep.subr.bf16.mxu0 0
    %686 = vmatpush1.bf16.msra.mxu0 0
    %687 = vmatprep.subr.bf16.mxu0 0
    %688 = vmatpush1.bf16.msra.mxu0 0
    %689 = vmatprep.subr.bf16.mxu0 0
    %690 = vmatpush1.bf16.msra.mxu0 0
    %691 = vmatprep.subr.bf16.mxu0 0
    %692 = vmatpush1.bf16.msra.mxu0 0
    %693 = vmatprep.mubr.bf16.mxu0 0
    %694 = vmatmul.mubr.bf16.gmra.mrb[0].mxu0 %v468
    %v695 = vpop.f32.mrb[0].mxu0
    %v696 = vadd.f32 0.0, %v695
    %v697 = vpop.f32.mrb[0].mxu0
    %v698 = vadd.f32 0.0, %v697
    %v699 = vpop.f32.mrb[0].mxu0
    %v700 = vpop.f32.mrb[0].mxu0
    %701 = vdwg.mxu0
    %702 = vmatprep.subr.bf16.mxu0 %v600
    %703 = vmatpush1.bf16.msra.mxu0 %v599
    %704 = vmatprep.subr.bf16.mxu0 %v604
    %705 = vmatpush1.bf16.msra.mxu0 %v603
    %706 = vmatprep.subr.bf16.mxu0 %v608
    %707 = vmatpush1.bf16.msra.mxu0 %v607
    %708 = vmatprep.subr.bf16.mxu0 %v612
    %709 = vmatpush1.bf16.msra.mxu0 %v611
    %710 = vmatprep.subr.bf16.mxu0 %v616
    %711 = vmatpush1.bf16.msra.mxu0 %v615
    %712 = vmatprep.subr.bf16.mxu0 %v620
    %713 = vmatpush1.bf16.msra.mxu0 %v619
    %714 = vmatprep.subr.bf16.mxu0 %v624
    %715 = vmatpush1.bf16.msra.mxu0 %v623
    %716 = vmatprep.subr.bf16.mxu0 %v628
    %717 = vmatpush1.bf16.msra.mxu0 %v627
    %718 = vmatprep.subr.bf16.mxu0 0
    %719 = vmatpush1.bf16.msra.mxu0 0
    %720 = vmatprep.subr.bf16.mxu0 0
    %721 = vmatpush1.bf16.msra.mxu0 0
    %722 = vmatprep.subr.bf16.mxu0 0
    %723 = vmatpush1.bf16.msra.mxu0 0
    %724 = vmatprep.subr.bf16.mxu0 0
    %725 = vmatpush1.bf16.msra.mxu0 0
    %726 = vmatprep.subr.bf16.mxu0 0
    %727 = vmatpush1.bf16.msra.mxu0 0
    %728 = vmatprep.subr.bf16.mxu0 0
    %729 = vmatpush1.bf16.msra.mxu0 0
    %730 = vmatprep.subr.bf16.mxu0 0
    %731 = vmatpush1.bf16.msra.mxu0 0
    %732 = vmatprep.subr.bf16.mxu0 0
    %733 = vmatpush1.bf16.msra.mxu0 0
    %734 = vmatprep.mubr.bf16.mxu0 0
    %735 = vmatmul.mubr.bf16.gmra.mrb[0].mxu0 %v468
    %v736 = vpop.f32.mrb[0].mxu0
    %v737 = vadd.f32 0.0, %v736
    %v738 = vpop.f32.mrb[0].mxu0
    %v739 = vadd.f32 0.0, %v738
    %v740 = vpop.f32.mrb[0].mxu0
    %v741 = vpop.f32.mrb[0].mxu0
    %742 = vdwg.mxu0
    %v775 = vunpack.c.l.b16 %v128
    %v776 = vunpack.c.h.b16 %v128
    %v777 = vunpack.c.l.b16 %v129
    %v778 = vunpack.c.h.b16 %v129
    %v779 = vunpack.c.l.b16 %v130
    %v780 = vunpack.c.h.b16 %v130
    %v781 = vunpack.c.l.b16 %v131
    %v782 = vunpack.c.h.b16 %v131
    %v783 = vunpack.c.l.b16 %v132
    %v784 = vunpack.c.h.b16 %v132
    %v785 = vunpack.c.l.b16 %v133
    %v786 = vunpack.c.h.b16 %v133
    %v787 = vunpack.c.l.b16 %v134
    %v788 = vunpack.c.h.b16 %v134
    %v789 = vunpack.c.l.b16 %v135
    %v790 = vunpack.c.h.b16 %v135
    %v791 = vunpack.c.l.b16 %v136
    %v792 = vunpack.c.h.b16 %v136
    %v793 = vunpack.c.l.b16 %v137
    %v794 = vunpack.c.h.b16 %v137
    %v795 = vunpack.c.l.b16 %v138
    %v796 = vunpack.c.h.b16 %v138
    %v797 = vunpack.c.l.b16 %v139
    %v798 = vunpack.c.h.b16 %v139
    %v799 = vunpack.c.l.b16 %v140
    %v800 = vunpack.c.h.b16 %v140
    %v801 = vunpack.c.l.b16 %v141
    %v802 = vunpack.c.h.b16 %v141
    %v803 = vunpack.c.l.b16 %v142
    %v804 = vunpack.c.h.b16 %v142
    %v805 = vunpack.c.l.b16 %v143
    %v806 = vunpack.c.h.b16 %v143
    %v807 = vunpack.c.l.b16 %v144
    %v808 = vunpack.c.h.b16 %v144
    %v809 = vunpack.c.l.b16 %v145
    %v810 = vunpack.c.h.b16 %v145
    %v811 = vunpack.c.l.b16 %v146
    %v812 = vunpack.c.h.b16 %v146
    %v813 = vunpack.c.l.b16 %v147
    %v814 = vunpack.c.h.b16 %v147
    %v815 = vunpack.c.l.b16 %v148
    %v816 = vunpack.c.h.b16 %v148
    %v817 = vunpack.c.l.b16 %v149
    %v818 = vunpack.c.h.b16 %v149
    %v819 = vunpack.c.l.b16 %v150
    %v820 = vunpack.c.h.b16 %v150
    %v821 = vunpack.c.l.b16 %v151
    %v822 = vunpack.c.h.b16 %v151
    %v823 = vunpack.c.l.b16 %v152
    %v824 = vunpack.c.h.b16 %v152
    %v825 = vunpack.c.l.b16 %v153
    %v826 = vunpack.c.h.b16 %v153
    %v827 = vunpack.c.l.b16 %v154
    %v828 = vunpack.c.h.b16 %v154
    %v829 = vunpack.c.l.b16 %v155
    %v830 = vunpack.c.h.b16 %v155
    %v831 = vunpack.c.l.b16 %v156
    %v832 = vunpack.c.h.b16 %v156
    %v833 = vunpack.c.l.b16 %v157
    %v834 = vunpack.c.h.b16 %v157
    %v835 = vunpack.c.l.b16 %v158
    %v836 = vunpack.c.h.b16 %v158
    %v837 = vunpack.c.l.b16 %v159
    %v838 = vunpack.c.h.b16 %v159
    %v839 = vpack.c.b16 %v779, %v775
    %v840 = vpack.c.b16 %v780, %v776
    %v841 = vpack.c.b16 %v781, %v777
    %v842 = vpack.c.b16 %v782, %v778
    %v843 = vpack.c.b16 %v787, %v783
    %v844 = vpack.c.b16 %v788, %v784
    %v845 = vpack.c.b16 %v789, %v785
    %v846 = vpack.c.b16 %v790, %v786
    %v847 = vpack.c.b16 %v795, %v791
    %v848 = vpack.c.b16 %v796, %v792
    %v849 = vpack.c.b16 %v797, %v793
    %v850 = vpack.c.b16 %v798, %v794
    %v851 = vpack.c.b16 %v803, %v799
    %v852 = vpack.c.b16 %v804, %v800
    %v853 = vpack.c.b16 %v805, %v801
    %v854 = vpack.c.b16 %v806, %v802
    %v855 = vpack.c.b16 %v811, %v807
    %v856 = vpack.c.b16 %v812, %v808
    %v857 = vpack.c.b16 %v813, %v809
    %v858 = vpack.c.b16 %v814, %v810
    %v859 = vpack.c.b16 %v819, %v815
    %v860 = vpack.c.b16 %v820, %v816
    %v861 = vpack.c.b16 %v821, %v817
    %v862 = vpack.c.b16 %v822, %v818
    %v863 = vpack.c.b16 %v827, %v823
    %v864 = vpack.c.b16 %v828, %v824
    %v865 = vpack.c.b16 %v829, %v825
    %v866 = vpack.c.b16 %v830, %v826
    %v867 = vpack.c.b16 %v835, %v831
    %v868 = vpack.c.b16 %v836, %v832
    %v869 = vpack.c.b16 %v837, %v833
    %v870 = vpack.c.b16 %v838, %v834
    %903 = vmatprep.subr.bf16.mxu0 %v840
    %904 = vmatpush1.bf16.msra.mxu0 %v839
    %905 = vmatprep.subr.bf16.mxu0 %v844
    %906 = vmatpush1.bf16.msra.mxu0 %v843
    %907 = vmatprep.subr.bf16.mxu0 %v848
    %908 = vmatpush1.bf16.msra.mxu0 %v847
    %909 = vmatprep.subr.bf16.mxu0 %v852
    %910 = vmatpush1.bf16.msra.mxu0 %v851
    %911 = vmatprep.subr.bf16.mxu0 %v856
    %912 = vmatpush1.bf16.msra.mxu0 %v855
    %913 = vmatprep.subr.bf16.mxu0 %v860
    %914 = vmatpush1.bf16.msra.mxu0 %v859
    %915 = vmatprep.subr.bf16.mxu0 %v864
    %916 = vmatpush1.bf16.msra.mxu0 %v863
    %917 = vmatprep.subr.bf16.mxu0 %v868
    %918 = vmatpush1.bf16.msra.mxu0 %v867
    %919 = vmatprep.subr.bf16.mxu0 0
    %920 = vmatpush1.bf16.msra.mxu0 0
    %921 = vmatprep.subr.bf16.mxu0 0
    %922 = vmatpush1.bf16.msra.mxu0 0
    %923 = vmatprep.subr.bf16.mxu0 0
    %924 = vmatpush1.bf16.msra.mxu0 0
    %925 = vmatprep.subr.bf16.mxu0 0
    %926 = vmatpush1.bf16.msra.mxu0 0
    %927 = vmatprep.subr.bf16.mxu0 0
    %928 = vmatpush1.bf16.msra.mxu0 0
    %929 = vmatprep.subr.bf16.mxu0 0
    %930 = vmatpush1.bf16.msra.mxu0 0
    %931 = vmatprep.subr.bf16.mxu0 0
    %932 = vmatpush1.bf16.msra.mxu0 0
    %933 = vmatprep.subr.bf16.mxu0 0
    %934 = vmatpush1.bf16.msra.mxu0 0
    %935 = vmatprep.mubr.bf16.mxu0 0
    %936 = vmatmul.mubr.bf16.gmra.mrb[0].mxu0 0
    %v937 = vpop.f32.mrb[0].mxu0
    %v938 = vadd.f32 %v696, %v937
    %v939 = vpop.f32.mrb[0].mxu0
    %v940 = vadd.f32 %v698, %v939
    %v941 = vpop.f32.mrb[0].mxu0
    %v942 = vpop.f32.mrb[0].mxu0
    %943 = vdwg.mxu0
    %944 = vmatprep.subr.bf16.mxu0 %v842
    %945 = vmatpush1.bf16.msra.mxu0 %v841
    %946 = vmatprep.subr.bf16.mxu0 %v846
    %947 = vmatpush1.bf16.msra.mxu0 %v845
    %948 = vmatprep.subr.bf16.mxu0 %v850
    %949 = vmatpush1.bf16.msra.mxu0 %v849
    %950 = vmatprep.subr.bf16.mxu0 %v854
    %951 = vmatpush1.bf16.msra.mxu0 %v853
    %952 = vmatprep.subr.bf16.mxu0 %v858
    %953 = vmatpush1.bf16.msra.mxu0 %v857
    %954 = vmatprep.subr.bf16.mxu0 %v862
    %955 = vmatpush1.bf16.msra.mxu0 %v861
    %956 = vmatprep.subr.bf16.mxu0 %v866
    %957 = vmatpush1.bf16.msra.mxu0 %v865
    %958 = vmatprep.subr.bf16.mxu0 %v870
    %959 = vmatpush1.bf16.msra.mxu0 %v869
    %960 = vmatprep.subr.bf16.mxu0 0
    %961 = vmatpush1.bf16.msra.mxu0 0
    %962 = vmatprep.subr.bf16.mxu0 0
    %963 = vmatpush1.bf16.msra.mxu0 0
    %964 = vmatprep.subr.bf16.mxu0 0
    %965 = vmatpush1.bf16.msra.mxu0 0
    %966 = vmatprep.subr.bf16.mxu0 0
    %967 = vmatpush1.bf16.msra.mxu0 0
    %968 = vmatprep.subr.bf16.mxu0 0
    %969 = vmatpush1.bf16.msra.mxu0 0
    %970 = vmatprep.subr.bf16.mxu0 0
    %971 = vmatpush1.bf16.msra.mxu0 0
    %972 = vmatprep.subr.bf16.mxu0 0
    %973 = vmatpush1.bf16.msra.mxu0 0
    %974 = vmatprep.subr.bf16.mxu0 0
    %975 = vmatpush1.bf16.msra.mxu0 0
    %976 = vmatprep.mubr.bf16.mxu0 0
    %977 = vmatmul.mubr.bf16.gmra.mrb[0].mxu0 0
    %v978 = vpop.f32.mrb[0].mxu0
    %v979 = vadd.f32 %v737, %v978
    %v980 = vpop.f32.mrb[0].mxu0
    %v981 = vadd.f32 %v739, %v980
    %v982 = vpop.f32.mrb[0].mxu0
    %v983 = vpop.f32.mrb[0].mxu0
    %984 = vdwg.mxu0
    %v985 = vadd.f32 %v938, %v105
    %v986 = vadd.f32 %v940, %v109
    %v987 = vadd.f32 %v979, %v113
    %v988 = vadd.f32 %v981, %v117
    %v989 = vxor.u32 %v985, 2147483648
    %v990 = vmul.f32 %v989, 1.442695
    %v991 = vpow.pop %v990
    %v992 = vadd.f32 %v991, 1.0
    %v993 = vrcp.pop %v992
    %v994 = vmul.f32 1.0, %v993
    %v995 = vxor.u32 %v986, 2147483648
    %v996 = vmul.f32 %v995, 1.442695
    %v997 = vpow.pop %v996
    %v998 = vadd.f32 %v997, 1.0
    %v999 = vrcp.pop %v998
    %v1000 = vmul.f32 1.0, %v999
    %v1001 = vtanh.pop %v987
    %v1002 = vxor.u32 %v988, 2147483648
    %v1003 = vmul.f32 %v1002, 1.442695
    %v1004 = vpow.pop %v1003
    %v1005 = vadd.f32 %v1004, 1.0
    %v1006 = vrcp.pop %v1005
    %v1007 = vmul.f32 1.0, %v1006
    %v1008 = vmul.f32 %v1000, 0.0
    %v1009 = vmul.f32 %v994, %v1001
    %v1010 = vadd.f32 %v1008, %v1009
    %v1011 = vtanh.pop %v1010
    %v1012 = vmul.f32 %v1007, %v1011
    %v1013 = vsel %vm127, %v1012, 0.0
    %v1014 = vsel %vm127, %v1010, 0.0
    %vm1015 = vcmp.gt.s32.totalorder %v99, 1
    %v1016 = vsel %vm1015, 1, 0
    %1017 = vset.pattern.permute.xlu0 0
    %1018 = vperm.xlu0 %1017, %v1016
    %v1019 = vpop.permute.xlu0 %1018
    %vm1020 = vcmp.eq.s32.totalorder %v1019, 1
    %v1021 = vpack.c.bf16 %v1013, %v1013
    %v1022 = vld [vmem:[#allocation2 + $0x20] sm:$0xff]
    %v1023 = vld [vmem:[#allocation2 + $0x28] sm:$0xff]
    %v1024 = vld [vmem:[#allocation2 + $0x30] sm:$0xff]
    %v1025 = vld [vmem:[#allocation2 + $0x38] sm:$0xff]
    %1026 = vmatprep.subr.bf16.mxu0 %v293
    %1027 = vmatpush1.bf16.msra.mxu0 %v292
    %1028 = vmatprep.subr.bf16.mxu0 %v297
    %1029 = vmatpush1.bf16.msra.mxu0 %v296
    %1030 = vmatprep.subr.bf16.mxu0 %v301
    %1031 = vmatpush1.bf16.msra.mxu0 %v300
    %1032 = vmatprep.subr.bf16.mxu0 %v305
    %1033 = vmatpush1.bf16.msra.mxu0 %v304
    %1034 = vmatprep.subr.bf16.mxu0 %v309
    %1035 = vmatpush1.bf16.msra.mxu0 %v308
    %1036 = vmatprep.subr.bf16.mxu0 %v313
    %1037 = vmatpush1.bf16.msra.mxu0 %v312
    %1038 = vmatprep.subr.bf16.mxu0 %v317
    %1039 = vmatpush1.bf16.msra.mxu0 %v316
    %1040 = vmatprep.subr.bf16.mxu0 %v321
    %1041 = vmatpush1.bf16.msra.mxu0 %v320
    %1042 = vmatprep.subr.bf16.mxu0 0
    %1043 = vmatpush1.bf16.msra.mxu0 0
    %1044 = vmatprep.subr.bf16.mxu0 0
    %1045 = vmatpush1.bf16.msra.mxu0 0
    %1046 = vmatprep.subr.bf16.mxu0 0
    %1047 = vmatpush1.bf16.msra.mxu0 0
    %1048 = vmatprep.subr.bf16.mxu0 0
    %1049 = vmatpush1.bf16.msra.mxu0 0
    %1050 = vmatprep.subr.bf16.mxu0 0
    %1051 = vmatpush1.bf16.msra.mxu0 0
    %1052 = vmatprep.subr.bf16.mxu0 0
    %1053 = vmatpush1.bf16.msra.mxu0 0
    %1054 = vmatprep.subr.bf16.mxu0 0
    %1055 = vmatpush1.bf16.msra.mxu0 0
    %1056 = vmatprep.subr.bf16.mxu0 0
    %1057 = vmatpush1.bf16.msra.mxu0 0
    %1058 = vmatprep.mubr.bf16.mxu0 0
    %1059 = vmatmul.mubr.bf16.gmra.mrb[0].mxu0 %v468
    %v1060 = vpop.f32.mrb[0].mxu0
    %v1061 = vadd.f32 0.0, %v1060
    %v1062 = vpop.f32.mrb[0].mxu0
    %v1063 = vadd.f32 0.0, %v1062
    %v1064 = vpop.f32.mrb[0].mxu0
    %v1065 = vpop.f32.mrb[0].mxu0
    %1066 = vdwg.mxu0
    %1067 = vmatprep.subr.bf16.mxu0 %v295
    %1068 = vmatpush1.bf16.msra.mxu0 %v294
    %1069 = vmatprep.subr.bf16.mxu0 %v299
    %1070 = vmatpush1.bf16.msra.mxu0 %v298
    %1071 = vmatprep.subr.bf16.mxu0 %v303
    %1072 = vmatpush1.bf16.msra.mxu0 %v302
    %1073 = vmatprep.subr.bf16.mxu0 %v307
    %1074 = vmatpush1.bf16.msra.mxu0 %v306
    %1075 = vmatprep.subr.bf16.mxu0 %v311
    %1076 = vmatpush1.bf16.msra.mxu0 %v310
    %1077 = vmatprep.subr.bf16.mxu0 %v315
    %1078 = vmatpush1.bf16.msra.mxu0 %v314
    %1079 = vmatprep.subr.bf16.mxu0 %v319
    %1080 = vmatpush1.bf16.msra.mxu0 %v318
    %1081 = vmatprep.subr.bf16.mxu0 %v323
    %1082 = vmatpush1.bf16.msra.mxu0 %v322
    %1083 = vmatprep.subr.bf16.mxu0 0
    %1084 = vmatpush1.bf16.msra.mxu0 0
    %1085 = vmatprep.subr.bf16.mxu0 0
    %1086 = vmatpush1.bf16.msra.mxu0 0
    %1087 = vmatprep.subr.bf16.mxu0 0
    %1088 = vmatpush1.bf16.msra.mxu0 0
    %1089 = vmatprep.subr.bf16.mxu0 0
    %1090 = vmatpush1.bf16.msra.mxu0 0
    %1091 = vmatprep.subr.bf16.mxu0 0
    %1092 = vmatpush1.bf16.msra.mxu0 0
    %1093 = vmatprep.subr.bf16.mxu0 0
    %1094 = vmatpush1.bf16.msra.mxu0 0
    %1095 = vmatprep.subr.bf16.mxu0 0
    %1096 = vmatpush1.bf16.msra.mxu0 0
    %1097 = vmatprep.subr.bf16.mxu0 0
    %1098 = vmatpush1.bf16.msra.mxu0 0
    %1099 = vmatprep.mubr.bf16.mxu0 0
    %1100 = vmatmul.mubr.bf16.gmra.mrb[0].mxu0 %v468
    %v1101 = vpop.f32.mrb[0].mxu0
    %v1102 = vadd.f32 0.0, %v1101
    %v1103 = vpop.f32.mrb[0].mxu0
    %v1104 = vadd.f32 0.0, %v1103
    %v1105 = vpop.f32.mrb[0].mxu0
    %v1106 = vpop.f32.mrb[0].mxu0
    %1107 = vdwg.mxu0
    %v1108 = vadd.f32 %v1022, %v1061
    %v1109 = vadd.f32 %v1023, %v1063
    %v1110 = vadd.f32 %v1024, %v1102
    %v1111 = vadd.f32 %v1025, %v1104
    %v1112 = vxor.u32 %v1108, 2147483648
    %v1113 = vmul.f32 %v1112, 1.442695
    %v1114 = vpow.pop %v1113
    %v1115 = vadd.f32 %v1114, 1.0
    %v1116 = vrcp.pop %v1115
    %v1117 = vmul.f32 1.0, %v1116
    %v1118 = vxor.u32 %v1109, 2147483648
    %v1119 = vmul.f32 %v1118, 1.442695
    %v1120 = vpow.pop %v1119
    %v1121 = vadd.f32 %v1120, 1.0
    %v1122 = vrcp.pop %v1121
    %v1123 = vmul.f32 1.0, %v1122
    %v1124 = vtanh.pop %v1110
    %v1125 = vxor.u32 %v1111, 2147483648
    %v1126 = vmul.f32 %v1125, 1.442695
    %v1127 = vpow.pop %v1126
    %v1128 = vadd.f32 %v1127, 1.0
    %v1129 = vrcp.pop %v1128
    %v1130 = vmul.f32 1.0, %v1129
    %v1131 = vmul.f32 %v1123, %v467
    %v1132 = vmul.f32 %v1117, %v1124
    %v1133 = vadd.f32 %v1131, %v1132
    %v1134 = vtanh.pop %v1133
    %v1135 = vmul.f32 %v1130, %v1134
    %v1136 = vsel %vm1020, %v1135, %v466
    %v1137 = vsel %vm1020, %v1133, %v467
    %v1138 = vpack.c.bf16 %v1136, %v1136
    %1139 = vmatprep.subr.bf16.mxu0 %v598
    %1140 = vmatpush1.bf16.msra.mxu0 %v597
    %1141 = vmatprep.subr.bf16.mxu0 %v602
    %1142 = vmatpush1.bf16.msra.mxu0 %v601
    %1143 = vmatprep.subr.bf16.mxu0 %v606
    %1144 = vmatpush1.bf16.msra.mxu0 %v605
    %1145 = vmatprep.subr.bf16.mxu0 %v610
    %1146 = vmatpush1.bf16.msra.mxu0 %v609
    %1147 = vmatprep.subr.bf16.mxu0 %v614
    %1148 = vmatpush1.bf16.msra.mxu0 %v613
    %1149 = vmatprep.subr.bf16.mxu0 %v618
    %1150 = vmatpush1.bf16.msra.mxu0 %v617
    %1151 = vmatprep.subr.bf16.mxu0 %v622
    %1152 = vmatpush1.bf16.msra.mxu0 %v621
    %1153 = vmatprep.subr.bf16.mxu0 %v626
    %1154 = vmatpush1.bf16.msra.mxu0 %v625
    %1155 = vmatprep.subr.bf16.mxu0 0
    %1156 = vmatpush1.bf16.msra.mxu0 0
    %1157 = vmatprep.subr.bf16.mxu0 0
    %1158 = vmatpush1.bf16.msra.mxu0 0
    %1159 = vmatprep.subr.bf16.mxu0 0
    %1160 = vmatpush1.bf16.msra.mxu0 0
    %1161 = vmatprep.subr.bf16.mxu0 0
    %1162 = vmatpush1.bf16.msra.mxu0 0
    %1163 = vmatprep.subr.bf16.mxu0 0
    %1164 = vmatpush1.bf16.msra.mxu0 0
    %1165 = vmatprep.subr.bf16.mxu0 0
    %1166 = vmatpush1.bf16.msra.mxu0 0
    %1167 = vmatprep.subr.bf16.mxu0 0
    %1168 = vmatpush1.bf16.msra.mxu0 0
    %1169 = vmatprep.subr.bf16.mxu0 0
    %1170 = vmatpush1.bf16.msra.mxu0 0
    %1171 = vmatprep.mubr.bf16.mxu0 0
    %1172 = vmatmul.mubr.bf16.gmra.mrb[0].mxu0 %v1138
    %v1173 = vpop.f32.mrb[0].mxu0
    %v1174 = vadd.f32 0.0, %v1173
    %v1175 = vpop.f32.mrb[0].mxu0
    %v1176 = vadd.f32 0.0, %v1175
    %v1177 = vpop.f32.mrb[0].mxu0
    %v1178 = vpop.f32.mrb[0].mxu0
    %1179 = vdwg.mxu0
    %1180 = vmatprep.subr.bf16.mxu0 %v600
    %1181 = vmatpush1.bf16.msra.mxu0 %v599
    %1182 = vmatprep.subr.bf16.mxu0 %v604
    %1183 = vmatpush1.bf16.msra.mxu0 %v603
    %1184 = vmatprep.subr.bf16.mxu0 %v608
    %1185 = vmatpush1.bf16.msra.mxu0 %v607
    %1186 = vmatprep.subr.bf16.mxu0 %v612
    %1187 = vmatpush1.bf16.msra.mxu0 %v611
    %1188 = vmatprep.subr.bf16.mxu0 %v616
    %1189 = vmatpush1.bf16.msra.mxu0 %v615
    %1190 = vmatprep.subr.bf16.mxu0 %v620
    %1191 = vmatpush1.bf16.msra.mxu0 %v619
    %1192 = vmatprep.subr.bf16.mxu0 %v624
    %1193 = vmatpush1.bf16.msra.mxu0 %v623
    %1194 = vmatprep.subr.bf16.mxu0 %v628
    %1195 = vmatpush1.bf16.msra.mxu0 %v627
    %1196 = vmatprep.subr.bf16.mxu0 0
    %1197 = vmatpush1.bf16.msra.mxu0 0
    %1198 = vmatprep.subr.bf16.mxu0 0
    %1199 = vmatpush1.bf16.msra.mxu0 0
    %1200 = vmatprep.subr.bf16.mxu0 0
    %1201 = vmatpush1.bf16.msra.mxu0 0
    %1202 = vmatprep.subr.bf16.mxu0 0
    %1203 = vmatpush1.bf16.msra.mxu0 0
    %1204 = vmatprep.subr.bf16.mxu0 0
    %1205 = vmatpush1.bf16.msra.mxu0 0
    %1206 = vmatprep.subr.bf16.mxu0 0
    %1207 = vmatpush1.bf16.msra.mxu0 0
    %1208 = vmatprep.subr.bf16.mxu0 0
    %1209 = vmatpush1.bf16.msra.mxu0 0
    %1210 = vmatprep.subr.bf16.mxu0 0
    %1211 = vmatpush1.bf16.msra.mxu0 0
    %1212 = vmatprep.mubr.bf16.mxu0 0
    %1213 = vmatmul.mubr.bf16.gmra.mrb[0].mxu0 %v1138
    %v1214 = vpop.f32.mrb[0].mxu0
    %v1215 = vadd.f32 0.0, %v1214
    %v1216 = vpop.f32.mrb[0].mxu0
    %v1217 = vadd.f32 0.0, %v1216
    %v1218 = vpop.f32.mrb[0].mxu0
    %v1219 = vpop.f32.mrb[0].mxu0
    %1220 = vdwg.mxu0
    %1221 = vmatprep.subr.bf16.mxu0 %v840
    %1222 = vmatpush1.bf16.msra.mxu0 %v839
    %1223 = vmatprep.subr.bf16.mxu0 %v844
    %1224 = vmatpush1.bf16.msra.mxu0 %v843
    %1225 = vmatprep.subr.bf16.mxu0 %v848
    %1226 = vmatpush1.bf16.msra.mxu0 %v847
    %1227 = vmatprep.subr.bf16.mxu0 %v852
    %1228 = vmatpush1.bf16.msra.mxu0 %v851
    %1229 = vmatprep.subr.bf16.mxu0 %v856
    %1230 = vmatpush1.bf16.msra.mxu0 %v855
    %1231 = vmatprep.subr.bf16.mxu0 %v860
    %1232 = vmatpush1.bf16.msra.mxu0 %v859
    %1233 = vmatprep.subr.bf16.mxu0 %v864
    %1234 = vmatpush1.bf16.msra.mxu0 %v863
    %1235 = vmatprep.subr.bf16.mxu0 %v868
    %1236 = vmatpush1.bf16.msra.mxu0 %v867
    %1237 = vmatprep.subr.bf16.mxu0 0
    %1238 = vmatpush1.bf16.msra.mxu0 0
    %1239 = vmatprep.subr.bf16.mxu0 0
    %1240 = vmatpush1.bf16.msra.mxu0 0
    %1241 = vmatprep.subr.bf16.mxu0 0
    %1242 = vmatpush1.bf16.msra.mxu0 0
    %1243 = vmatprep.subr.bf16.mxu0 0
    %1244 = vmatpush1.bf16.msra.mxu0 0
    %1245 = vmatprep.subr.bf16.mxu0 0
    %1246 = vmatpush1.bf16.msra.mxu0 0
    %1247 = vmatprep.subr.bf16.mxu0 0
    %1248 = vmatpush1.bf16.msra.mxu0 0
    %1249 = vmatprep.subr.bf16.mxu0 0
    %1250 = vmatpush1.bf16.msra.mxu0 0
    %1251 = vmatprep.subr.bf16.mxu0 0
    %1252 = vmatpush1.bf16.msra.mxu0 0
    %1253 = vmatprep.mubr.bf16.mxu0 0
    %1254 = vmatmul.mubr.bf16.gmra.mrb[0].mxu0 %v1021
    %v1255 = vpop.f32.mrb[0].mxu0
    %v1256 = vadd.f32 %v1174, %v1255
    %v1257 = vpop.f32.mrb[0].mxu0
    %v1258 = vadd.f32 %v1176, %v1257
    %v1259 = vpop.f32.mrb[0].mxu0
    %v1260 = vpop.f32.mrb[0].mxu0
    %1261 = vdwg.mxu0
    %1262 = vmatprep.subr.bf16.mxu0 %v842
    %1263 = vmatpush1.bf16.msra.mxu0 %v841
    %1264 = vmatprep.subr.bf16.mxu0 %v846
    %1265 = vmatpush1.bf16.msra.mxu0 %v845
    %1266 = vmatprep.subr.bf16.mxu0 %v850
    %1267 = vmatpush1.bf16.msra.mxu0 %v849
    %1268 = vmatprep.subr.bf16.mxu0 %v854
    %1269 = vmatpush1.bf16.msra.mxu0 %v853
    %1270 = vmatprep.subr.bf16.mxu0 %v858
    %1271 = vmatpush1.bf16.msra.mxu0 %v857
    %1272 = vmatprep.subr.bf16.mxu0 %v862
    %1273 = vmatpush1.bf16.msra.mxu0 %v861
    %1274 = vmatprep.subr.bf16.mxu0 %v866
    %1275 = vmatpush1.bf16.msra.mxu0 %v865
    %1276 = vmatprep.subr.bf16.mxu0 %v870
    %1277 = vmatpush1.bf16.msra.mxu0 %v869
    %1278 = vmatprep.subr.bf16.mxu0 0
    %1279 = vmatpush1.bf16.msra.mxu0 0
    %1280 = vmatprep.subr.bf16.mxu0 0
    %1281 = vmatpush1.bf16.msra.mxu0 0
    %1282 = vmatprep.subr.bf16.mxu0 0
    %1283 = vmatpush1.bf16.msra.mxu0 0
    %1284 = vmatprep.subr.bf16.mxu0 0
    %1285 = vmatpush1.bf16.msra.mxu0 0
    %1286 = vmatprep.subr.bf16.mxu0 0
    %1287 = vmatpush1.bf16.msra.mxu0 0
    %1288 = vmatprep.subr.bf16.mxu0 0
    %1289 = vmatpush1.bf16.msra.mxu0 0
    %1290 = vmatprep.subr.bf16.mxu0 0
    %1291 = vmatpush1.bf16.msra.mxu0 0
    %1292 = vmatprep.subr.bf16.mxu0 0
    %1293 = vmatpush1.bf16.msra.mxu0 0
    %1294 = vmatprep.mubr.bf16.mxu0 0
    %1295 = vmatmul.mubr.bf16.gmra.mrb[0].mxu0 %v1021
    %v1296 = vpop.f32.mrb[0].mxu0
    %v1297 = vadd.f32 %v1215, %v1296
    %v1298 = vpop.f32.mrb[0].mxu0
    %v1299 = vadd.f32 %v1217, %v1298
    %v1300 = vpop.f32.mrb[0].mxu0
    %v1301 = vpop.f32.mrb[0].mxu0
    %1302 = vdwg.mxu0
    %v1303 = vadd.f32 %v1256, %v105
    %v1304 = vadd.f32 %v1258, %v109
    %v1305 = vadd.f32 %v1297, %v113
    %v1306 = vadd.f32 %v1299, %v117
    %v1307 = vxor.u32 %v1303, 2147483648
    %v1308 = vmul.f32 %v1307, 1.442695
    %v1309 = vpow.pop %v1308
    %v1310 = vadd.f32 %v1309, 1.0
    %v1311 = vrcp.pop %v1310
    %v1312 = vmul.f32 1.0, %v1311
    %v1313 = vxor.u32 %v1304, 2147483648
    %v1314 = vmul.f32 %v1313, 1.442695
    %v1315 = vpow.pop %v1314
    %v1316 = vadd.f32 %v1315, 1.0
    %v1317 = vrcp.pop %v1316
    %v1318 = vmul.f32 1.0, %v1317
    %v1319 = vtanh.pop %v1305
    %v1320 = vxor.u32 %v1306, 2147483648
    %v1321 = vmul.f32 %v1320, 1.442695
    %v1322 = vpow.pop %v1321
    %v1323 = vadd.f32 %v1322, 1.0
    %v1324 = vrcp.pop %v1323
    %v1325 = vmul.f32 1.0, %v1324
    %v1326 = vmul.f32 %v1318, %v1014
    %v1327 = vmul.f32 %v1312, %v1319
    %v1328 = vadd.f32 %v1326, %v1327
    %v1329 = vtanh.pop %v1328
    %v1330 = vmul.f32 %v1325, %v1329
    %v1331 = vsel %vm1020, %v1330, %v1013
    %v1332 = vsel %vm1020, %v1328, %v1014
    %vm1333 = vcmp.gt.s32.totalorder %v99, 2
    %v1334 = vsel %vm1333, 1, 0
    %1335 = vset.pattern.permute.xlu0 0
    %1336 = vperm.xlu0 %1335, %v1334
    %v1337 = vpop.permute.xlu0 %1336
    %vm1338 = vcmp.eq.s32.totalorder %v1337, 1
    %v1339 = vpack.c.bf16 %v1331, %v1331
    %v1340 = vld [vmem:[#allocation2 + $0x40] sm:$0xff]
    %v1341 = vld [vmem:[#allocation2 + $0x48] sm:$0xff]
    %v1342 = vld [vmem:[#allocation2 + $0x50] sm:$0xff]
    %v1343 = vld [vmem:[#allocation2 + $0x58] sm:$0xff]
    %1344 = vmatprep.subr.bf16.mxu0 %v293
    %1345 = vmatpush1.bf16.msra.mxu0 %v292
    %1346 = vmatprep.subr.bf16.mxu0 %v297
    %1347 = vmatpush1.bf16.msra.mxu0 %v296
    %1348 = vmatprep.subr.bf16.mxu0 %v301
    %1349 = vmatpush1.bf16.msra.mxu0 %v300
    %1350 = vmatprep.subr.bf16.mxu0 %v305
    %1351 = vmatpush1.bf16.msra.mxu0 %v304
    %1352 = vmatprep.subr.bf16.mxu0 %v309
    %1353 = vmatpush1.bf16.msra.mxu0 %v308
    %1354 = vmatprep.subr.bf16.mxu0 %v313
    %1355 = vmatpush1.bf16.msra.mxu0 %v312
    %1356 = vmatprep.subr.bf16.mxu0 %v317
    %1357 = vmatpush1.bf16.msra.mxu0 %v316
    %1358 = vmatprep.subr.bf16.mxu0 %v321
    %1359 = vmatpush1.bf16.msra.mxu0 %v320
    %1360 = vmatprep.subr.bf16.mxu0 0
    %1361 = vmatpush1.bf16.msra.mxu0 0
    %1362 = vmatprep.subr.bf16.mxu0 0
    %1363 = vmatpush1.bf16.msra.mxu0 0
    %1364 = vmatprep.subr.bf16.mxu0 0
    %1365 = vmatpush1.bf16.msra.mxu0 0
    %1366 = vmatprep.subr.bf16.mxu0 0
    %1367 = vmatpush1.bf16.msra.mxu0 0
    %1368 = vmatprep.subr.bf16.mxu0 0
    %1369 = vmatpush1.bf16.msra.mxu0 0
    %1370 = vmatprep.subr.bf16.mxu0 0
    %1371 = vmatpush1.bf16.msra.mxu0 0
    %1372 = vmatprep.subr.bf16.mxu0 0
    %1373 = vmatpush1.bf16.msra.mxu0 0
    %1374 = vmatprep.subr.bf16.mxu0 0
    %1375 = vmatpush1.bf16.msra.mxu0 0
    %1376 = vmatprep.mubr.bf16.mxu0 0
    %1377 = vmatmul.mubr.bf16.gmra.mrb[0].mxu0 %v1138
    %v1378 = vpop.f32.mrb[0].mxu0
    %v1379 = vadd.f32 0.0, %v1378
    %v1380 = vpop.f32.mrb[0].mxu0
    %v1381 = vadd.f32 0.0, %v1380
    %v1382 = vpop.f32.mrb[0].mxu0
    %v1383 = vpop.f32.mrb[0].mxu0
    %1384 = vdwg.mxu0
    %1385 = vmatprep.subr.bf16.mxu0 %v295
    %1386 = vmatpush1.bf16.msra.mxu0 %v294
    %1387 = vmatprep.subr.bf16.mxu0 %v299
    %1388 = vmatpush1.bf16.msra.mxu0 %v298
    %1389 = vmatprep.subr.bf16.mxu0 %v303
    %1390 = vmatpush1.bf16.msra.mxu0 %v302
    %1391 = vmatprep.subr.bf16.mxu0 %v307
    %1392 = vmatpush1.bf16.msra.mxu0 %v306
    %1393 = vmatprep.subr.bf16.mxu0 %v311
    %1394 = vmatpush1.bf16.msra.mxu0 %v310
    %1395 = vmatprep.subr.bf16.mxu0 %v315
    %1396 = vmatpush1.bf16.msra.mxu0 %v314
    %1397 = vmatprep.subr.bf16.mxu0 %v319
    %1398 = vmatpush1.bf16.msra.mxu0 %v318
    %1399 = vmatprep.subr.bf16.mxu0 %v323
    %1400 = vmatpush1.bf16.msra.mxu0 %v322
    %1401 = vmatprep.subr.bf16.mxu0 0
    %1402 = vmatpush1.bf16.msra.mxu0 0
    %1403 = vmatprep.subr.bf16.mxu0 0
    %1404 = vmatpush1.bf16.msra.mxu0 0
    %1405 = vmatprep.subr.bf16.mxu0 0
    %1406 = vmatpush1.bf16.msra.mxu0 0
    %1407 = vmatprep.subr.bf16.mxu0 0
    %1408 = vmatpush1.bf16.msra.mxu0 0
    %1409 = vmatprep.subr.bf16.mxu0 0
    %1410 = vmatpush1.bf16.msra.mxu0 0
    %1411 = vmatprep.subr.bf16.mxu0 0
    %1412 = vmatpush1.bf16.msra.mxu0 0
    %1413 = vmatprep.subr.bf16.mxu0 0
    %1414 = vmatpush1.bf16.msra.mxu0 0
    %1415 = vmatprep.subr.bf16.mxu0 0
    %1416 = vmatpush1.bf16.msra.mxu0 0
    %1417 = vmatprep.mubr.bf16.mxu0 0
    %1418 = vmatmul.mubr.bf16.gmra.mrb[0].mxu0 %v1138
    %v1419 = vpop.f32.mrb[0].mxu0
    %v1420 = vadd.f32 0.0, %v1419
    %v1421 = vpop.f32.mrb[0].mxu0
    %v1422 = vadd.f32 0.0, %v1421
    %v1423 = vpop.f32.mrb[0].mxu0
    %v1424 = vpop.f32.mrb[0].mxu0
    %1425 = vdwg.mxu0
    %v1426 = vadd.f32 %v1340, %v1379
    %v1427 = vadd.f32 %v1341, %v1381
    %v1428 = vadd.f32 %v1342, %v1420
    %v1429 = vadd.f32 %v1343, %v1422
    %v1430 = vxor.u32 %v1426, 2147483648
    %v1431 = vmul.f32 %v1430, 1.442695
    %v1432 = vpow.pop %v1431
    %v1433 = vadd.f32 %v1432, 1.0
    %v1434 = vrcp.pop %v1433
    %v1435 = vmul.f32 1.0, %v1434
    %v1436 = vxor.u32 %v1427, 2147483648
    %v1437 = vmul.f32 %v1436, 1.442695
    %v1438 = vpow.pop %v1437
    %v1439 = vadd.f32 %v1438, 1.0
    %v1440 = vrcp.pop %v1439
    %v1441 = vmul.f32 1.0, %v1440
    %v1442 = vtanh.pop %v1428
    %v1443 = vxor.u32 %v1429, 2147483648
    %v1444 = vmul.f32 %v1443, 1.442695
    %v1445 = vpow.pop %v1444
    %v1446 = vadd.f32 %v1445, 1.0
    %v1447 = vrcp.pop %v1446
    %v1448 = vmul.f32 1.0, %v1447
    %v1449 = vmul.f32 %v1441, %v1137
    %v1450 = vmul.f32 %v1435, %v1442
    %v1451 = vadd.f32 %v1449, %v1450
    %v1452 = vtanh.pop %v1451
    %v1453 = vmul.f32 %v1448, %v1452
    %v1454 = vsel %vm1338, %v1453, %v1136
    %v1455 = vsel %vm1338, %v1451, %v1137
    %v1456 = vpack.c.bf16 %v1454, %v1454
    %1457 = vmatprep.subr.bf16.mxu0 %v598
    %1458 = vmatpush1.bf16.msra.mxu0 %v597
    %1459 = vmatprep.subr.bf16.mxu0 %v602
    %1460 = vmatpush1.bf16.msra.mxu0 %v601
    %1461 = vmatprep.subr.bf16.mxu0 %v606
    %1462 = vmatpush1.bf16.msra.mxu0 %v605
    %1463 = vmatprep.subr.bf16.mxu0 %v610
    %1464 = vmatpush1.bf16.msra.mxu0 %v609
    %1465 = vmatprep.subr.bf16.mxu0 %v614
    %1466 = vmatpush1.bf16.msra.mxu0 %v613
    %1467 = vmatprep.subr.bf16.mxu0 %v618
    %1468 = vmatpush1.bf16.msra.mxu0 %v617
    %1469 = vmatprep.subr.bf16.mxu0 %v622
    %1470 = vmatpush1.bf16.msra.mxu0 %v621
    %1471 = vmatprep.subr.bf16.mxu0 %v626
    %1472 = vmatpush1.bf16.msra.mxu0 %v625
    %1473 = vmatprep.subr.bf16.mxu0 0
    %1474 = vmatpush1.bf16.msra.mxu0 0
    %1475 = vmatprep.subr.bf16.mxu0 0
    %1476 = vmatpush1.bf16.msra.mxu0 0
    %1477 = vmatprep.subr.bf16.mxu0 0
    %1478 = vmatpush1.bf16.msra.mxu0 0
    %1479 = vmatprep.subr.bf16.mxu0 0
    %1480 = vmatpush1.bf16.msra.mxu0 0
    %1481 = vmatprep.subr.bf16.mxu0 0
    %1482 = vmatpush1.bf16.msra.mxu0 0
    %1483 = vmatprep.subr.bf16.mxu0 0
    %1484 = vmatpush1.bf16.msra.mxu0 0
    %1485 = vmatprep.subr.bf16.mxu0 0
    %1486 = vmatpush1.bf16.msra.mxu0 0
    %1487 = vmatprep.subr.bf16.mxu0 0
    %1488 = vmatpush1.bf16.msra.mxu0 0
    %1489 = vmatprep.mubr.bf16.mxu0 0
    %1490 = vmatmul.mubr.bf16.gmra.mrb[0].mxu0 %v1456
    %v1491 = vpop.f32.mrb[0].mxu0
    %v1492 = vadd.f32 0.0, %v1491
    %v1493 = vpop.f32.mrb[0].mxu0
    %v1494 = vadd.f32 0.0, %v1493
    %v1495 = vpop.f32.mrb[0].mxu0
    %v1496 = vpop.f32.mrb[0].mxu0
    %1497 = vdwg.mxu0
    %1498 = vmatprep.subr.bf16.mxu0 %v600
    %1499 = vmatpush1.bf16.msra.mxu0 %v599
    %1500 = vmatprep.subr.bf16.mxu0 %v604
    %1501 = vmatpush1.bf16.msra.mxu0 %v603
    %1502 = vmatprep.subr.bf16.mxu0 %v608
    %1503 = vmatpush1.bf16.msra.mxu0 %v607
    %1504 = vmatprep.subr.bf16.mxu0 %v612
    %1505 = vmatpush1.bf16.msra.mxu0 %v611
    %1506 = vmatprep.subr.bf16.mxu0 %v616
    %1507 = vmatpush1.bf16.msra.mxu0 %v615
    %1508 = vmatprep.subr.bf16.mxu0 %v620
    %1509 = vmatpush1.bf16.msra.mxu0 %v619
    %1510 = vmatprep.subr.bf16.mxu0 %v624
    %1511 = vmatpush1.bf16.msra.mxu0 %v623
    %1512 = vmatprep.subr.bf16.mxu0 %v628
    %1513 = vmatpush1.bf16.msra.mxu0 %v627
    %1514 = vmatprep.subr.bf16.mxu0 0
    %1515 = vmatpush1.bf16.msra.mxu0 0
    %1516 = vmatprep.subr.bf16.mxu0 0
    %1517 = vmatpush1.bf16.msra.mxu0 0
    %1518 = vmatprep.subr.bf16.mxu0 0
    %1519 = vmatpush1.bf16.msra.mxu0 0
    %1520 = vmatprep.subr.bf16.mxu0 0
    %1521 = vmatpush1.bf16.msra.mxu0 0
    %1522 = vmatprep.subr.bf16.mxu0 0
    %1523 = vmatpush1.bf16.msra.mxu0 0
    %1524 = vmatprep.subr.bf16.mxu0 0
    %1525 = vmatpush1.bf16.msra.mxu0 0
    %1526 = vmatprep.subr.bf16.mxu0 0
    %1527 = vmatpush1.bf16.msra.mxu0 0
    %1528 = vmatprep.subr.bf16.mxu0 0
    %1529 = vmatpush1.bf16.msra.mxu0 0
    %1530 = vmatprep.mubr.bf16.mxu0 0
    %1531 = vmatmul.mubr.bf16.gmra.mrb[0].mxu0 %v1456
    %v1532 = vpop.f32.mrb[0].mxu0
    %v1533 = vadd.f32 0.0, %v1532
    %v1534 = vpop.f32.mrb[0].mxu0
    %v1535 = vadd.f32 0.0, %v1534
    %v1536 = vpop.f32.mrb[0].mxu0
    %v1537 = vpop.f32.mrb[0].mxu0
    %1538 = vdwg.mxu0
    %1539 = vmatprep.subr.bf16.mxu0 %v840
    %1540 = vmatpush1.bf16.msra.mxu0 %v839
    %1541 = vmatprep.subr.bf16.mxu0 %v844
    %1542 = vmatpush1.bf16.msra.mxu0 %v843
    %1543 = vmatprep.subr.bf16.mxu0 %v848
    %1544 = vmatpush1.bf16.msra.mxu0 %v847
    %1545 = vmatprep.subr.bf16.mxu0 %v852
    %1546 = vmatpush1.bf16.msra.mxu0 %v851
    %1547 = vmatprep.subr.bf16.mxu0 %v856
    %1548 = vmatpush1.bf16.msra.mxu0 %v855
    %1549 = vmatprep.subr.bf16.mxu0 %v860
    %1550 = vmatpush1.bf16.msra.mxu0 %v859
    %1551 = vmatprep.subr.bf16.mxu0 %v864
    %1552 = vmatpush1.bf16.msra.mxu0 %v863
    %1553 = vmatprep.subr.bf16.mxu0 %v868
    %1554 = vmatpush1.bf16.msra.mxu0 %v867
    %1555 = vmatprep.subr.bf16.mxu0 0
    %1556 = vmatpush1.bf16.msra.mxu0 0
    %1557 = vmatprep.subr.bf16.mxu0 0
    %1558 = vmatpush1.bf16.msra.mxu0 0
    %1559 = vmatprep.subr.bf16.mxu0 0
    %1560 = vmatpush1.bf16.msra.mxu0 0
    %1561 = vmatprep.subr.bf16.mxu0 0
    %1562 = vmatpush1.bf16.msra.mxu0 0
    %1563 = vmatprep.subr.bf16.mxu0 0
    %1564 = vmatpush1.bf16.msra.mxu0 0
    %1565 = vmatprep.subr.bf16.mxu0 0
    %1566 = vmatpush1.bf16.msra.mxu0 0
    %1567 = vmatprep.subr.bf16.mxu0 0
    %1568 = vmatpush1.bf16.msra.mxu0 0
    %1569 = vmatprep.subr.bf16.mxu0 0
    %1570 = vmatpush1.bf16.msra.mxu0 0
    %1571 = vmatprep.mubr.bf16.mxu0 0
    %1572 = vmatmul.mubr.bf16.gmra.mrb[0].mxu0 %v1339
    %v1573 = vpop.f32.mrb[0].mxu0
    %v1574 = vadd.f32 %v1492, %v1573
    %v1575 = vpop.f32.mrb[0].mxu0
    %v1576 = vadd.f32 %v1494, %v1575
    %v1577 = vpop.f32.mrb[0].mxu0
    %v1578 = vpop.f32.mrb[0].mxu0
    %1579 = vdwg.mxu0
    %1580 = vmatprep.subr.bf16.mxu0 %v842
    %1581 = vmatpush1.bf16.msra.mxu0 %v841
    %1582 = vmatprep.subr.bf16.mxu0 %v846
    %1583 = vmatpush1.bf16.msra.mxu0 %v845
    %1584 = vmatprep.subr.bf16.mxu0 %v850
    %1585 = vmatpush1.bf16.msra.mxu0 %v849
    %1586 = vmatprep.subr.bf16.mxu0 %v854
    %1587 = vmatpush1.bf16.msra.mxu0 %v853
    %1588 = vmatprep.subr.bf16.mxu0 %v858
    %1589 = vmatpush1.bf16.msra.mxu0 %v857
    %1590 = vmatprep.subr.bf16.mxu0 %v862
    %1591 = vmatpush1.bf16.msra.mxu0 %v861
    %1592 = vmatprep.subr.bf16.mxu0 %v866
    %1593 = vmatpush1.bf16.msra.mxu0 %v865
    %1594 = vmatprep.subr.bf16.mxu0 %v870
    %1595 = vmatpush1.bf16.msra.mxu0 %v869
    %1596 = vmatprep.subr.bf16.mxu0 0
    %1597 = vmatpush1.bf16.msra.mxu0 0
    %1598 = vmatprep.subr.bf16.mxu0 0
    %1599 = vmatpush1.bf16.msra.mxu0 0
    %1600 = vmatprep.subr.bf16.mxu0 0
    %1601 = vmatpush1.bf16.msra.mxu0 0
    %1602 = vmatprep.subr.bf16.mxu0 0
    %1603 = vmatpush1.bf16.msra.mxu0 0
    %1604 = vmatprep.subr.bf16.mxu0 0
    %1605 = vmatpush1.bf16.msra.mxu0 0
    %1606 = vmatprep.subr.bf16.mxu0 0
    %1607 = vmatpush1.bf16.msra.mxu0 0
    %1608 = vmatprep.subr.bf16.mxu0 0
    %1609 = vmatpush1.bf16.msra.mxu0 0
    %1610 = vmatprep.subr.bf16.mxu0 0
    %1611 = vmatpush1.bf16.msra.mxu0 0
    %1612 = vmatprep.mubr.bf16.mxu0 0
    %1613 = vmatmul.mubr.bf16.gmra.mrb[0].mxu0 %v1339
    %v1614 = vpop.f32.mrb[0].mxu0
    %v1615 = vadd.f32 %v1533, %v1614
    %v1616 = vpop.f32.mrb[0].mxu0
    %v1617 = vadd.f32 %v1535, %v1616
    %v1618 = vpop.f32.mrb[0].mxu0
    %v1619 = vpop.f32.mrb[0].mxu0
    %1620 = vdwg.mxu0
    %v1621 = vadd.f32 %v1574, %v105
    %v1622 = vadd.f32 %v1576, %v109
    %v1623 = vadd.f32 %v1615, %v113
    %v1624 = vadd.f32 %v1617, %v117
    %v1625 = vxor.u32 %v1621, 2147483648
    %v1626 = vmul.f32 %v1625, 1.442695
    %v1627 = vpow.pop %v1626
    %v1628 = vadd.f32 %v1627, 1.0
    %v1629 = vrcp.pop %v1628
    %v1630 = vmul.f32 1.0, %v1629
    %v1631 = vxor.u32 %v1622, 2147483648
    %v1632 = vmul.f32 %v1631, 1.442695
    %v1633 = vpow.pop %v1632
    %v1634 = vadd.f32 %v1633, 1.0
    %v1635 = vrcp.pop %v1634
    %v1636 = vmul.f32 1.0, %v1635
    %v1637 = vtanh.pop %v1623
    %v1638 = vxor.u32 %v1624, 2147483648
    %v1639 = vmul.f32 %v1638, 1.442695
    %v1640 = vpow.pop %v1639
    %v1641 = vadd.f32 %v1640, 1.0
    %v1642 = vrcp.pop %v1641
    %v1643 = vmul.f32 1.0, %v1642
    %v1644 = vmul.f32 %v1636, %v1332
    %v1645 = vmul.f32 %v1630, %v1637
    %v1646 = vadd.f32 %v1644, %v1645
    %v1647 = vtanh.pop %v1646
    %v1648 = vmul.f32 %v1643, %v1647
    %v1649 = vsel %vm1338, %v1648, %v1331
    %v1650 = vsel %vm1338, %v1646, %v1332
    %vm1651 = vcmp.gt.s32.totalorder %v99, 3
    %v1652 = vsel %vm1651, 1, 0
    %1653 = vset.pattern.permute.xlu0 0
    %1654 = vperm.xlu0 %1653, %v1652
    %v1655 = vpop.permute.xlu0 %1654
    %vm1656 = vcmp.eq.s32.totalorder %v1655, 1
    %v1657 = vpack.c.bf16 %v1649, %v1649
    %v1658 = vld [vmem:[#allocation2 + $0x60] sm:$0xff]
    %v1659 = vld [vmem:[#allocation2 + $0x68] sm:$0xff]
    %v1660 = vld [vmem:[#allocation2 + $0x70] sm:$0xff]
    %v1661 = vld [vmem:[#allocation2 + $0x78] sm:$0xff]
    %1662 = vmatprep.subr.bf16.mxu0 %v293
    %1663 = vmatpush1.bf16.msra.mxu0 %v292
    %1664 = vmatprep.subr.bf16.mxu0 %v297
    %1665 = vmatpush1.bf16.msra.mxu0 %v296
    %1666 = vmatprep.subr.bf16.mxu0 %v301
    %1667 = vmatpush1.bf16.msra.mxu0 %v300
    %1668 = vmatprep.subr.bf16.mxu0 %v305
    %1669 = vmatpush1.bf16.msra.mxu0 %v304
    %1670 = vmatprep.subr.bf16.mxu0 %v309
    %1671 = vmatpush1.bf16.msra.mxu0 %v308
    %1672 = vmatprep.subr.bf16.mxu0 %v313
    %1673 = vmatpush1.bf16.msra.mxu0 %v312
    %1674 = vmatprep.subr.bf16.mxu0 %v317
    %1675 = vmatpush1.bf16.msra.mxu0 %v316
    %1676 = vmatprep.subr.bf16.mxu0 %v321
    %1677 = vmatpush1.bf16.msra.mxu0 %v320
    %1678 = vmatprep.subr.bf16.mxu0 0
    %1679 = vmatpush1.bf16.msra.mxu0 0
    %1680 = vmatprep.subr.bf16.mxu0 0
    %1681 = vmatpush1.bf16.msra.mxu0 0
    %1682 = vmatprep.subr.bf16.mxu0 0
    %1683 = vmatpush1.bf16.msra.mxu0 0
    %1684 = vmatprep.subr.bf16.mxu0 0
    %1685 = vmatpush1.bf16.msra.mxu0 0
    %1686 = vmatprep.subr.bf16.mxu0 0
    %1687 = vmatpush1.bf16.msra.mxu0 0
    %1688 = vmatprep.subr.bf16.mxu0 0
    %1689 = vmatpush1.bf16.msra.mxu0 0
    %1690 = vmatprep.subr.bf16.mxu0 0
    %1691 = vmatpush1.bf16.msra.mxu0 0
    %1692 = vmatprep.subr.bf16.mxu0 0
    %1693 = vmatpush1.bf16.msra.mxu0 0
    %1694 = vmatprep.mubr.bf16.mxu0 0
    %1695 = vmatmul.mubr.bf16.gmra.mrb[0].mxu0 %v1456
    %v1696 = vpop.f32.mrb[0].mxu0
    %v1697 = vadd.f32 0.0, %v1696
    %v1698 = vpop.f32.mrb[0].mxu0
    %v1699 = vadd.f32 0.0, %v1698
    %v1700 = vpop.f32.mrb[0].mxu0
    %v1701 = vpop.f32.mrb[0].mxu0
    %1702 = vdwg.mxu0
    %1703 = vmatprep.subr.bf16.mxu0 %v295
    %1704 = vmatpush1.bf16.msra.mxu0 %v294
    %1705 = vmatprep.subr.bf16.mxu0 %v299
    %1706 = vmatpush1.bf16.msra.mxu0 %v298
    %1707 = vmatprep.subr.bf16.mxu0 %v303
    %1708 = vmatpush1.bf16.msra.mxu0 %v302
    %1709 = vmatprep.subr.bf16.mxu0 %v307
    %1710 = vmatpush1.bf16.msra.mxu0 %v306
    %1711 = vmatprep.subr.bf16.mxu0 %v311
    %1712 = vmatpush1.bf16.msra.mxu0 %v310
    %1713 = vmatprep.subr.bf16.mxu0 %v315
    %1714 = vmatpush1.bf16.msra.mxu0 %v314
    %1715 = vmatprep.subr.bf16.mxu0 %v319
    %1716 = vmatpush1.bf16.msra.mxu0 %v318
    %1717 = vmatprep.subr.bf16.mxu0 %v323
    %1718 = vmatpush1.bf16.msra.mxu0 %v322
    %1719 = vmatprep.subr.bf16.mxu0 0
    %1720 = vmatpush1.bf16.msra.mxu0 0
    %1721 = vmatprep.subr.bf16.mxu0 0
    %1722 = vmatpush1.bf16.msra.mxu0 0
    %1723 = vmatprep.subr.bf16.mxu0 0
    %1724 = vmatpush1.bf16.msra.mxu0 0
    %1725 = vmatprep.subr.bf16.mxu0 0
    %1726 = vmatpush1.bf16.msra.mxu0 0
    %1727 = vmatprep.subr.bf16.mxu0 0
    %1728 = vmatpush1.bf16.msra.mxu0 0
    %1729 = vmatprep.subr.bf16.mxu0 0
    %1730 = vmatpush1.bf16.msra.mxu0 0
    %1731 = vmatprep.subr.bf16.mxu0 0
    %1732 = vmatpush1.bf16.msra.mxu0 0
    %1733 = vmatprep.subr.bf16.mxu0 0
    %1734 = vmatpush1.bf16.msra.mxu0 0
    %1735 = vmatprep.mubr.bf16.mxu0 0
    %1736 = vmatmul.mubr.bf16.gmra.mrb[0].mxu0 %v1456
    %v1737 = vpop.f32.mrb[0].mxu0
    %v1738 = vadd.f32 0.0, %v1737
    %v1739 = vpop.f32.mrb[0].mxu0
    %v1740 = vadd.f32 0.0, %v1739
    %v1741 = vpop.f32.mrb[0].mxu0
    %v1742 = vpop.f32.mrb[0].mxu0
    %1743 = vdwg.mxu0
    %v1744 = vadd.f32 %v1658, %v1697
    %v1745 = vadd.f32 %v1659, %v1699
    %v1746 = vadd.f32 %v1660, %v1738
    %v1747 = vadd.f32 %v1661, %v1740
    %v1748 = vxor.u32 %v1744, 2147483648
    %v1749 = vmul.f32 %v1748, 1.442695
    %v1750 = vpow.pop %v1749
    %v1751 = vadd.f32 %v1750, 1.0
    %v1752 = vrcp.pop %v1751
    %v1753 = vmul.f32 1.0, %v1752
    %v1754 = vxor.u32 %v1745, 2147483648
    %v1755 = vmul.f32 %v1754, 1.442695
    %v1756 = vpow.pop %v1755
    %v1757 = vadd.f32 %v1756, 1.0
    %v1758 = vrcp.pop %v1757
    %v1759 = vmul.f32 1.0, %v1758
    %v1760 = vtanh.pop %v1746
    %v1761 = vxor.u32 %v1747, 2147483648
    %v1762 = vmul.f32 %v1761, 1.442695
    %v1763 = vpow.pop %v1762
    %v1764 = vadd.f32 %v1763, 1.0
    %v1765 = vrcp.pop %v1764
    %v1766 = vmul.f32 1.0, %v1765
    %v1767 = vmul.f32 %v1759, %v1455
    %v1768 = vmul.f32 %v1753, %v1760
    %v1769 = vadd.f32 %v1767, %v1768
    %v1770 = vtanh.pop %v1769
    %v1771 = vmul.f32 %v1766, %v1770
    %v1772 = vsel %vm1656, %v1771, %v1454
    %v1773 = vsel %vm1656, %v1769, %v1455
    %v1774 = vpack.c.bf16 %v1772, %v1772
    %1775 = vmatprep.subr.bf16.mxu0 %v598
    %1776 = vmatpush1.bf16.msra.mxu0 %v597
    %1777 = vmatprep.subr.bf16.mxu0 %v602
    %1778 = vmatpush1.bf16.msra.mxu0 %v601
    %1779 = vmatprep.subr.bf16.mxu0 %v606
    %1780 = vmatpush1.bf16.msra.mxu0 %v605
    %1781 = vmatprep.subr.bf16.mxu0 %v610
    %1782 = vmatpush1.bf16.msra.mxu0 %v609
    %1783 = vmatprep.subr.bf16.mxu0 %v614
    %1784 = vmatpush1.bf16.msra.mxu0 %v613
    %1785 = vmatprep.subr.bf16.mxu0 %v618
    %1786 = vmatpush1.bf16.msra.mxu0 %v617
    %1787 = vmatprep.subr.bf16.mxu0 %v622
    %1788 = vmatpush1.bf16.msra.mxu0 %v621
    %1789 = vmatprep.subr.bf16.mxu0 %v626
    %1790 = vmatpush1.bf16.msra.mxu0 %v625
    %1791 = vmatprep.subr.bf16.mxu0 0
    %1792 = vmatpush1.bf16.msra.mxu0 0
    %1793 = vmatprep.subr.bf16.mxu0 0
    %1794 = vmatpush1.bf16.msra.mxu0 0
    %1795 = vmatprep.subr.bf16.mxu0 0
    %1796 = vmatpush1.bf16.msra.mxu0 0
    %1797 = vmatprep.subr.bf16.mxu0 0
    %1798 = vmatpush1.bf16.msra.mxu0 0
    %1799 = vmatprep.subr.bf16.mxu0 0
    %1800 = vmatpush1.bf16.msra.mxu0 0
    %1801 = vmatprep.subr.bf16.mxu0 0
    %1802 = vmatpush1.bf16.msra.mxu0 0
    %1803 = vmatprep.subr.bf16.mxu0 0
    %1804 = vmatpush1.bf16.msra.mxu0 0
    %1805 = vmatprep.subr.bf16.mxu0 0
    %1806 = vmatpush1.bf16.msra.mxu0 0
    %1807 = vmatprep.mubr.bf16.mxu0 0
    %1808 = vmatmul.mubr.bf16.gmra.mrb[0].mxu0 %v1774
    %v1809 = vpop.f32.mrb[0].mxu0
    %v1810 = vadd.f32 0.0, %v1809
    %v1811 = vpop.f32.mrb[0].mxu0
    %v1812 = vadd.f32 0.0, %v1811
    %v1813 = vpop.f32.mrb[0].mxu0
    %v1814 = vpop.f32.mrb[0].mxu0
    %1815 = vdwg.mxu0
    %1816 = vmatprep.subr.bf16.mxu0 %v600
    %1817 = vmatpush1.bf16.msra.mxu0 %v599
    %1818 = vmatprep.subr.bf16.mxu0 %v604
    %1819 = vmatpush1.bf16.msra.mxu0 %v603
    %1820 = vmatprep.subr.bf16.mxu0 %v608
    %1821 = vmatpush1.bf16.msra.mxu0 %v607
    %1822 = vmatprep.subr.bf16.mxu0 %v612
    %1823 = vmatpush1.bf16.msra.mxu0 %v611
    %1824 = vmatprep.subr.bf16.mxu0 %v616
    %1825 = vmatpush1.bf16.msra.mxu0 %v615
    %1826 = vmatprep.subr.bf16.mxu0 %v620
    %1827 = vmatpush1.bf16.msra.mxu0 %v619
    %1828 = vmatprep.subr.bf16.mxu0 %v624
    %1829 = vmatpush1.bf16.msra.mxu0 %v623
    %1830 = vmatprep.subr.bf16.mxu0 %v628
    %1831 = vmatpush1.bf16.msra.mxu0 %v627
    %1832 = vmatprep.subr.bf16.mxu0 0
    %1833 = vmatpush1.bf16.msra.mxu0 0
    %1834 = vmatprep.subr.bf16.mxu0 0
    %1835 = vmatpush1.bf16.msra.mxu0 0
    %1836 = vmatprep.subr.bf16.mxu0 0
    %1837 = vmatpush1.bf16.msra.mxu0 0
    %1838 = vmatprep.subr.bf16.mxu0 0
    %1839 = vmatpush1.bf16.msra.mxu0 0
    %1840 = vmatprep.subr.bf16.mxu0 0
    %1841 = vmatpush1.bf16.msra.mxu0 0
    %1842 = vmatprep.subr.bf16.mxu0 0
    %1843 = vmatpush1.bf16.msra.mxu0 0
    %1844 = vmatprep.subr.bf16.mxu0 0
    %1845 = vmatpush1.bf16.msra.mxu0 0
    %1846 = vmatprep.subr.bf16.mxu0 0
    %1847 = vmatpush1.bf16.msra.mxu0 0
    %1848 = vmatprep.mubr.bf16.mxu0 0
    %1849 = vmatmul.mubr.bf16.gmra.mrb[0].mxu0 %v1774
    %v1850 = vpop.f32.mrb[0].mxu0
    %v1851 = vadd.f32 0.0, %v1850
    %v1852 = vpop.f32.mrb[0].mxu0
    %v1853 = vadd.f32 0.0, %v1852
    %v1854 = vpop.f32.mrb[0].mxu0
    %v1855 = vpop.f32.mrb[0].mxu0
    %1856 = vdwg.mxu0
    %1857 = vmatprep.subr.bf16.mxu0 %v840
    %1858 = vmatpush1.bf16.msra.mxu0 %v839
    %1859 = vmatprep.subr.bf16.mxu0 %v844
    %1860 = vmatpush1.bf16.msra.mxu0 %v843
    %1861 = vmatprep.subr.bf16.mxu0 %v848
    %1862 = vmatpush1.bf16.msra.mxu0 %v847
    %1863 = vmatprep.subr.bf16.mxu0 %v852
    %1864 = vmatpush1.bf16.msra.mxu0 %v851
    %1865 = vmatprep.subr.bf16.mxu0 %v856
    %1866 = vmatpush1.bf16.msra.mxu0 %v855
    %1867 = vmatprep.subr.bf16.mxu0 %v860
    %1868 = vmatpush1.bf16.msra.mxu0 %v859
    %1869 = vmatprep.subr.bf16.mxu0 %v864
    %1870 = vmatpush1.bf16.msra.mxu0 %v863
    %1871 = vmatprep.subr.bf16.mxu0 %v868
    %1872 = vmatpush1.bf16.msra.mxu0 %v867
    %1873 = vmatprep.subr.bf16.mxu0 0
    %1874 = vmatpush1.bf16.msra.mxu0 0
    %1875 = vmatprep.subr.bf16.mxu0 0
    %1876 = vmatpush1.bf16.msra.mxu0 0
    %1877 = vmatprep.subr.bf16.mxu0 0
    %1878 = vmatpush1.bf16.msra.mxu0 0
    %1879 = vmatprep.subr.bf16.mxu0 0
    %1880 = vmatpush1.bf16.msra.mxu0 0
    %1881 = vmatprep.subr.bf16.mxu0 0
    %1882 = vmatpush1.bf16.msra.mxu0 0
    %1883 = vmatprep.subr.bf16.mxu0 0
    %1884 = vmatpush1.bf16.msra.mxu0 0
    %1885 = vmatprep.subr.bf16.mxu0 0
    %1886 = vmatpush1.bf16.msra.mxu0 0
    %1887 = vmatprep.subr.bf16.mxu0 0
    %1888 = vmatpush1.bf16.msra.mxu0 0
    %1889 = vmatprep.mubr.bf16.mxu0 0
    %1890 = vmatmul.mubr.bf16.gmra.mrb[0].mxu0 %v1657
    %v1891 = vpop.f32.mrb[0].mxu0
    %v1892 = vadd.f32 %v1810, %v1891
    %v1893 = vpop.f32.mrb[0].mxu0
    %v1894 = vadd.f32 %v1812, %v1893
    %v1895 = vpop.f32.mrb[0].mxu0
    %v1896 = vpop.f32.mrb[0].mxu0
    %1897 = vdwg.mxu0
    %1898 = vmatprep.subr.bf16.mxu0 %v842
    %1899 = vmatpush1.bf16.msra.mxu0 %v841
    %1900 = vmatprep.subr.bf16.mxu0 %v846
    %1901 = vmatpush1.bf16.msra.mxu0 %v845
    %1902 = vmatprep.subr.bf16.mxu0 %v850
    %1903 = vmatpush1.bf16.msra.mxu0 %v849
    %1904 = vmatprep.subr.bf16.mxu0 %v854
    %1905 = vmatpush1.bf16.msra.mxu0 %v853
    %1906 = vmatprep.subr.bf16.mxu0 %v858
    %1907 = vmatpush1.bf16.msra.mxu0 %v857
    %1908 = vmatprep.subr.bf16.mxu0 %v862
    %1909 = vmatpush1.bf16.msra.mxu0 %v861
    %1910 = vmatprep.subr.bf16.mxu0 %v866
    %1911 = vmatpush1.bf16.msra.mxu0 %v865
    %1912 = vmatprep.subr.bf16.mxu0 %v870
    %1913 = vmatpush1.bf16.msra.mxu0 %v869
    %1914 = vmatprep.subr.bf16.mxu0 0
    %1915 = vmatpush1.bf16.msra.mxu0 0
    %1916 = vmatprep.subr.bf16.mxu0 0
    %1917 = vmatpush1.bf16.msra.mxu0 0
    %1918 = vmatprep.subr.bf16.mxu0 0
    %1919 = vmatpush1.bf16.msra.mxu0 0
    %1920 = vmatprep.subr.bf16.mxu0 0
    %1921 = vmatpush1.bf16.msra.mxu0 0
    %1922 = vmatprep.subr.bf16.mxu0 0
    %1923 = vmatpush1.bf16.msra.mxu0 0
    %1924 = vmatprep.subr.bf16.mxu0 0
    %1925 = vmatpush1.bf16.msra.mxu0 0
    %1926 = vmatprep.subr.bf16.mxu0 0
    %1927 = vmatpush1.bf16.msra.mxu0 0
    %1928 = vmatprep.subr.bf16.mxu0 0
    %1929 = vmatpush1.bf16.msra.mxu0 0
    %1930 = vmatprep.mubr.bf16.mxu0 0
    %1931 = vmatmul.mubr.bf16.gmra.mrb[0].mxu0 %v1657
    %v1932 = vpop.f32.mrb[0].mxu0
    %v1933 = vadd.f32 %v1851, %v1932
    %v1934 = vpop.f32.mrb[0].mxu0
    %v1935 = vadd.f32 %v1853, %v1934
    %v1936 = vpop.f32.mrb[0].mxu0
    %v1937 = vpop.f32.mrb[0].mxu0
    %1938 = vdwg.mxu0
    %v1939 = vadd.f32 %v1892, %v105
    %v1940 = vadd.f32 %v1894, %v109
    %v1941 = vadd.f32 %v1933, %v113
    %v1942 = vadd.f32 %v1935, %v117
    %v1943 = vxor.u32 %v1939, 2147483648
    %v1944 = vmul.f32 %v1943, 1.442695
    %v1945 = vpow.pop %v1944
    %v1946 = vadd.f32 %v1945, 1.0
    %v1947 = vrcp.pop %v1946
    %v1948 = vmul.f32 1.0, %v1947
    %v1949 = vxor.u32 %v1940, 2147483648
    %v1950 = vmul.f32 %v1949, 1.442695
    %v1951 = vpow.pop %v1950
    %v1952 = vadd.f32 %v1951, 1.0
    %v1953 = vrcp.pop %v1952
    %v1954 = vmul.f32 1.0, %v1953
    %v1955 = vtanh.pop %v1941
    %v1956 = vxor.u32 %v1942, 2147483648
    %v1957 = vmul.f32 %v1956, 1.442695
    %v1958 = vpow.pop %v1957
    %v1959 = vadd.f32 %v1958, 1.0
    %v1960 = vrcp.pop %v1959
    %v1961 = vmul.f32 1.0, %v1960
    %v1962 = vmul.f32 %v1954, %v1650
    %v1963 = vmul.f32 %v1948, %v1955
    %v1964 = vadd.f32 %v1962, %v1963
    %v1965 = vtanh.pop %v1964
    %v1966 = vmul.f32 %v1961, %v1965
    %v1967 = vsel %vm1656, %v1966, %v1649
    %v1968 = vsel %vm1656, %v1964, %v1650
    %vm1969 = vcmp.gt.s32.totalorder %v99, 4
    %v1970 = vsel %vm1969, 1, 0
    %1971 = vset.pattern.permute.xlu0 0
    %1972 = vperm.xlu0 %1971, %v1970
    %v1973 = vpop.permute.xlu0 %1972
    %vm1974 = vcmp.eq.s32.totalorder %v1973, 1
    %v1975 = vpack.c.bf16 %v1967, %v1967
    %v1976 = vld [vmem:[#allocation2 + $0x80] sm:$0xff]
    %v1977 = vld [vmem:[#allocation2 + $0x88] sm:$0xff]
    %v1978 = vld [vmem:[#allocation2 + $0x90] sm:$0xff]
    %v1979 = vld [vmem:[#allocation2 + $0x98] sm:$0xff]
    %1980 = vmatprep.subr.bf16.mxu0 %v293
    %1981 = vmatpush1.bf16.msra.mxu0 %v292
    %1982 = vmatprep.subr.bf16.mxu0 %v297
    %1983 = vmatpush1.bf16.msra.mxu0 %v296
    %1984 = vmatprep.subr.bf16.mxu0 %v301
    %1985 = vmatpush1.bf16.msra.mxu0 %v300
    %1986 = vmatprep.subr.bf16.mxu0 %v305
    %1987 = vmatpush1.bf16.msra.mxu0 %v304
    %1988 = vmatprep.subr.bf16.mxu0 %v309
    %1989 = vmatpush1.bf16.msra.mxu0 %v308
    %1990 = vmatprep.subr.bf16.mxu0 %v313
    %1991 = vmatpush1.bf16.msra.mxu0 %v312
    %1992 = vmatprep.subr.bf16.mxu0 %v317
    %1993 = vmatpush1.bf16.msra.mxu0 %v316
    %1994 = vmatprep.subr.bf16.mxu0 %v321
    %1995 = vmatpush1.bf16.msra.mxu0 %v320
    %1996 = vmatprep.subr.bf16.mxu0 0
    %1997 = vmatpush1.bf16.msra.mxu0 0
    %1998 = vmatprep.subr.bf16.mxu0 0
    %1999 = vmatpush1.bf16.msra.mxu0 0
    %2000 = vmatprep.subr.bf16.mxu0 0
    %2001 = vmatpush1.bf16.msra.mxu0 0
    %2002 = vmatprep.subr.bf16.mxu0 0
    %2003 = vmatpush1.bf16.msra.mxu0 0
    %2004 = vmatprep.subr.bf16.mxu0 0
    %2005 = vmatpush1.bf16.msra.mxu0 0
    %2006 = vmatprep.subr.bf16.mxu0 0
    %2007 = vmatpush1.bf16.msra.mxu0 0
    %2008 = vmatprep.subr.bf16.mxu0 0
    %2009 = vmatpush1.bf16.msra.mxu0 0
    %2010 = vmatprep.subr.bf16.mxu0 0
    %2011 = vmatpush1.bf16.msra.mxu0 0
    %2012 = vmatprep.mubr.bf16.mxu0 0
    %2013 = vmatmul.mubr.bf16.gmra.mrb[0].mxu0 %v1774
    %v2014 = vpop.f32.mrb[0].mxu0
    %v2015 = vadd.f32 0.0, %v2014
    %v2016 = vpop.f32.mrb[0].mxu0
    %v2017 = vadd.f32 0.0, %v2016
    %v2018 = vpop.f32.mrb[0].mxu0
    %v2019 = vpop.f32.mrb[0].mxu0
    %2020 = vdwg.mxu0
    %2021 = vmatprep.subr.bf16.mxu0 %v295
    %2022 = vmatpush1.bf16.msra.mxu0 %v294
    %2023 = vmatprep.subr.bf16.mxu0 %v299
    %2024 = vmatpush1.bf16.msra.mxu0 %v298
    %2025 = vmatprep.subr.bf16.mxu0 %v303
    %2026 = vmatpush1.bf16.msra.mxu0 %v302
    %2027 = vmatprep.subr.bf16.mxu0 %v307
    %2028 = vmatpush1.bf16.msra.mxu0 %v306
    %2029 = vmatprep.subr.bf16.mxu0 %v311
    %2030 = vmatpush1.bf16.msra.mxu0 %v310
    %2031 = vmatprep.subr.bf16.mxu0 %v315
    %2032 = vmatpush1.bf16.msra.mxu0 %v314
    %2033 = vmatprep.subr.bf16.mxu0 %v319
    %2034 = vmatpush1.bf16.msra.mxu0 %v318
    %2035 = vmatprep.subr.bf16.mxu0 %v323
    %2036 = vmatpush1.bf16.msra.mxu0 %v322
    %2037 = vmatprep.subr.bf16.mxu0 0
    %2038 = vmatpush1.bf16.msra.mxu0 0
    %2039 = vmatprep.subr.bf16.mxu0 0
    %2040 = vmatpush1.bf16.msra.mxu0 0
    %2041 = vmatprep.subr.bf16.mxu0 0
    %2042 = vmatpush1.bf16.msra.mxu0 0
    %2043 = vmatprep.subr.bf16.mxu0 0
    %2044 = vmatpush1.bf16.msra.mxu0 0
    %2045 = vmatprep.subr.bf16.mxu0 0
    %2046 = vmatpush1.bf16.msra.mxu0 0
    %2047 = vmatprep.subr.bf16.mxu0 0
    %2048 = vmatpush1.bf16.msra.mxu0 0
    %2049 = vmatprep.subr.bf16.mxu0 0
    %2050 = vmatpush1.bf16.msra.mxu0 0
    %2051 = vmatprep.subr.bf16.mxu0 0
    %2052 = vmatpush1.bf16.msra.mxu0 0
    %2053 = vmatprep.mubr.bf16.mxu0 0
    %2054 = vmatmul.mubr.bf16.gmra.mrb[0].mxu0 %v1774
    %v2055 = vpop.f32.mrb[0].mxu0
    %v2056 = vadd.f32 0.0, %v2055
    %v2057 = vpop.f32.mrb[0].mxu0
    %v2058 = vadd.f32 0.0, %v2057
    %v2059 = vpop.f32.mrb[0].mxu0
    %v2060 = vpop.f32.mrb[0].mxu0
    %2061 = vdwg.mxu0
    %v2062 = vadd.f32 %v1976, %v2015
    %v2063 = vadd.f32 %v1977, %v2017
    %v2064 = vadd.f32 %v1978, %v2056
    %v2065 = vadd.f32 %v1979, %v2058
    %v2066 = vxor.u32 %v2062, 2147483648
    %v2067 = vmul.f32 %v2066, 1.442695
    %v2068 = vpow.pop %v2067
    %v2069 = vadd.f32 %v2068, 1.0
    %v2070 = vrcp.pop %v2069
    %v2071 = vmul.f32 1.0, %v2070
    %v2072 = vxor.u32 %v2063, 2147483648
    %v2073 = vmul.f32 %v2072, 1.442695
    %v2074 = vpow.pop %v2073
    %v2075 = vadd.f32 %v2074, 1.0
    %v2076 = vrcp.pop %v2075
    %v2077 = vmul.f32 1.0, %v2076
    %v2078 = vtanh.pop %v2064
    %v2079 = vxor.u32 %v2065, 2147483648
    %v2080 = vmul.f32 %v2079, 1.442695
    %v2081 = vpow.pop %v2080
    %v2082 = vadd.f32 %v2081, 1.0
    %v2083 = vrcp.pop %v2082
    %v2084 = vmul.f32 1.0, %v2083
    %v2085 = vmul.f32 %v2077, %v1773
    %v2086 = vmul.f32 %v2071, %v2078
    %v2087 = vadd.f32 %v2085, %v2086
    %v2088 = vtanh.pop %v2087
    %v2089 = vmul.f32 %v2084, %v2088
    %v2090 = vsel %vm1974, %v2089, %v1772
    %v2091 = vsel %vm1974, %v2087, %v1773
    %v2092 = vpack.c.bf16 %v2090, %v2090
    %2093 = vmatprep.subr.bf16.mxu0 %v598
    %2094 = vmatpush1.bf16.msra.mxu0 %v597
    %2095 = vmatprep.subr.bf16.mxu0 %v602
    %2096 = vmatpush1.bf16.msra.mxu0 %v601
    %2097 = vmatprep.subr.bf16.mxu0 %v606
    %2098 = vmatpush1.bf16.msra.mxu0 %v605
    %2099 = vmatprep.subr.bf16.mxu0 %v610
    %2100 = vmatpush1.bf16.msra.mxu0 %v609
    %2101 = vmatprep.subr.bf16.mxu0 %v614
    %2102 = vmatpush1.bf16.msra.mxu0 %v613
    %2103 = vmatprep.subr.bf16.mxu0 %v618
    %2104 = vmatpush1.bf16.msra.mxu0 %v617
    %2105 = vmatprep.subr.bf16.mxu0 %v622
    %2106 = vmatpush1.bf16.msra.mxu0 %v621
    %2107 = vmatprep.subr.bf16.mxu0 %v626
    %2108 = vmatpush1.bf16.msra.mxu0 %v625
    %2109 = vmatprep.subr.bf16.mxu0 0
    %2110 = vmatpush1.bf16.msra.mxu0 0
    %2111 = vmatprep.subr.bf16.mxu0 0
    %2112 = vmatpush1.bf16.msra.mxu0 0
    %2113 = vmatprep.subr.bf16.mxu0 0
    %2114 = vmatpush1.bf16.msra.mxu0 0
    %2115 = vmatprep.subr.bf16.mxu0 0
    %2116 = vmatpush1.bf16.msra.mxu0 0
    %2117 = vmatprep.subr.bf16.mxu0 0
    %2118 = vmatpush1.bf16.msra.mxu0 0
    %2119 = vmatprep.subr.bf16.mxu0 0
    %2120 = vmatpush1.bf16.msra.mxu0 0
    %2121 = vmatprep.subr.bf16.mxu0 0
    %2122 = vmatpush1.bf16.msra.mxu0 0
    %2123 = vmatprep.subr.bf16.mxu0 0
    %2124 = vmatpush1.bf16.msra.mxu0 0
    %2125 = vmatprep.mubr.bf16.mxu0 0
    %2126 = vmatmul.mubr.bf16.gmra.mrb[0].mxu0 %v2092
    %v2127 = vpop.f32.mrb[0].mxu0
    %v2128 = vadd.f32 0.0, %v2127
    %v2129 = vpop.f32.mrb[0].mxu0
    %v2130 = vadd.f32 0.0, %v2129
    %v2131 = vpop.f32.mrb[0].mxu0
    %v2132 = vpop.f32.mrb[0].mxu0
    %2133 = vdwg.mxu0
    %2134 = vmatprep.subr.bf16.mxu0 %v600
    %2135 = vmatpush1.bf16.msra.mxu0 %v599
    %2136 = vmatprep.subr.bf16.mxu0 %v604
    %2137 = vmatpush1.bf16.msra.mxu0 %v603
    %2138 = vmatprep.subr.bf16.mxu0 %v608
    %2139 = vmatpush1.bf16.msra.mxu0 %v607
    %2140 = vmatprep.subr.bf16.mxu0 %v612
    %2141 = vmatpush1.bf16.msra.mxu0 %v611
    %2142 = vmatprep.subr.bf16.mxu0 %v616
    %2143 = vmatpush1.bf16.msra.mxu0 %v615
    %2144 = vmatprep.subr.bf16.mxu0 %v620
    %2145 = vmatpush1.bf16.msra.mxu0 %v619
    %2146 = vmatprep.subr.bf16.mxu0 %v624
    %2147 = vmatpush1.bf16.msra.mxu0 %v623
    %2148 = vmatprep.subr.bf16.mxu0 %v628
    %2149 = vmatpush1.bf16.msra.mxu0 %v627
    %2150 = vmatprep.subr.bf16.mxu0 0
    %2151 = vmatpush1.bf16.msra.mxu0 0
    %2152 = vmatprep.subr.bf16.mxu0 0
    %2153 = vmatpush1.bf16.msra.mxu0 0
    %2154 = vmatprep.subr.bf16.mxu0 0
    %2155 = vmatpush1.bf16.msra.mxu0 0
    %2156 = vmatprep.subr.bf16.mxu0 0
    %2157 = vmatpush1.bf16.msra.mxu0 0
    %2158 = vmatprep.subr.bf16.mxu0 0
    %2159 = vmatpush1.bf16.msra.mxu0 0
    %2160 = vmatprep.subr.bf16.mxu0 0
    %2161 = vmatpush1.bf16.msra.mxu0 0
    %2162 = vmatprep.subr.bf16.mxu0 0
    %2163 = vmatpush1.bf16.msra.mxu0 0
    %2164 = vmatprep.subr.bf16.mxu0 0
    %2165 = vmatpush1.bf16.msra.mxu0 0
    %2166 = vmatprep.mubr.bf16.mxu0 0
    %2167 = vmatmul.mubr.bf16.gmra.mrb[0].mxu0 %v2092
    %v2168 = vpop.f32.mrb[0].mxu0
    %v2169 = vadd.f32 0.0, %v2168
    %v2170 = vpop.f32.mrb[0].mxu0
    %v2171 = vadd.f32 0.0, %v2170
    %v2172 = vpop.f32.mrb[0].mxu0
    %v2173 = vpop.f32.mrb[0].mxu0
    %2174 = vdwg.mxu0
    %2175 = vmatprep.subr.bf16.mxu0 %v840
    %2176 = vmatpush1.bf16.msra.mxu0 %v839
    %2177 = vmatprep.subr.bf16.mxu0 %v844
    %2178 = vmatpush1.bf16.msra.mxu0 %v843
    %2179 = vmatprep.subr.bf16.mxu0 %v848
    %2180 = vmatpush1.bf16.msra.mxu0 %v847
    %2181 = vmatprep.subr.bf16.mxu0 %v852
    %2182 = vmatpush1.bf16.msra.mxu0 %v851
    %2183 = vmatprep.subr.bf16.mxu0 %v856
    %2184 = vmatpush1.bf16.msra.mxu0 %v855
    %2185 = vmatprep.subr.bf16.mxu0 %v860
    %2186 = vmatpush1.bf16.msra.mxu0 %v859
    %2187 = vmatprep.subr.bf16.mxu0 %v864
    %2188 = vmatpush1.bf16.msra.mxu0 %v863
    %2189 = vmatprep.subr.bf16.mxu0 %v868
    %2190 = vmatpush1.bf16.msra.mxu0 %v867
    %2191 = vmatprep.subr.bf16.mxu0 0
    %2192 = vmatpush1.bf16.msra.mxu0 0
    %2193 = vmatprep.subr.bf16.mxu0 0
    %2194 = vmatpush1.bf16.msra.mxu0 0
    %2195 = vmatprep.subr.bf16.mxu0 0
    %2196 = vmatpush1.bf16.msra.mxu0 0
    %2197 = vmatprep.subr.bf16.mxu0 0
    %2198 = vmatpush1.bf16.msra.mxu0 0
    %2199 = vmatprep.subr.bf16.mxu0 0
    %2200 = vmatpush1.bf16.msra.mxu0 0
    %2201 = vmatprep.subr.bf16.mxu0 0
    %2202 = vmatpush1.bf16.msra.mxu0 0
    %2203 = vmatprep.subr.bf16.mxu0 0
    %2204 = vmatpush1.bf16.msra.mxu0 0
    %2205 = vmatprep.subr.bf16.mxu0 0
    %2206 = vmatpush1.bf16.msra.mxu0 0
    %2207 = vmatprep.mubr.bf16.mxu0 0
    %2208 = vmatmul.mubr.bf16.gmra.mrb[0].mxu0 %v1975
    %v2209 = vpop.f32.mrb[0].mxu0
    %v2210 = vadd.f32 %v2128, %v2209
    %v2211 = vpop.f32.mrb[0].mxu0
    %v2212 = vadd.f32 %v2130, %v2211
    %v2213 = vpop.f32.mrb[0].mxu0
    %v2214 = vpop.f32.mrb[0].mxu0
    %2215 = vdwg.mxu0
    %2216 = vmatprep.subr.bf16.mxu0 %v842
    %2217 = vmatpush1.bf16.msra.mxu0 %v841
    %2218 = vmatprep.subr.bf16.mxu0 %v846
    %2219 = vmatpush1.bf16.msra.mxu0 %v845
    %2220 = vmatprep.subr.bf16.mxu0 %v850
    %2221 = vmatpush1.bf16.msra.mxu0 %v849
    %2222 = vmatprep.subr.bf16.mxu0 %v854
    %2223 = vmatpush1.bf16.msra.mxu0 %v853
    %2224 = vmatprep.subr.bf16.mxu0 %v858
    %2225 = vmatpush1.bf16.msra.mxu0 %v857
    %2226 = vmatprep.subr.bf16.mxu0 %v862
    %2227 = vmatpush1.bf16.msra.mxu0 %v861
    %2228 = vmatprep.subr.bf16.mxu0 %v866
    %2229 = vmatpush1.bf16.msra.mxu0 %v865
    %2230 = vmatprep.subr.bf16.mxu0 %v870
    %2231 = vmatpush1.bf16.msra.mxu0 %v869
    %2232 = vmatprep.subr.bf16.mxu0 0
    %2233 = vmatpush1.bf16.msra.mxu0 0
    %2234 = vmatprep.subr.bf16.mxu0 0
    %2235 = vmatpush1.bf16.msra.mxu0 0
    %2236 = vmatprep.subr.bf16.mxu0 0
    %2237 = vmatpush1.bf16.msra.mxu0 0
    %2238 = vmatprep.subr.bf16.mxu0 0
    %2239 = vmatpush1.bf16.msra.mxu0 0
    %2240 = vmatprep.subr.bf16.mxu0 0
    %2241 = vmatpush1.bf16.msra.mxu0 0
    %2242 = vmatprep.subr.bf16.mxu0 0
    %2243 = vmatpush1.bf16.msra.mxu0 0
    %2244 = vmatprep.subr.bf16.mxu0 0
    %2245 = vmatpush1.bf16.msra.mxu0 0
    %2246 = vmatprep.subr.bf16.mxu0 0
    %2247 = vmatpush1.bf16.msra.mxu0 0
    %2248 = vmatprep.mubr.bf16.mxu0 0
    %2249 = vmatmul.mubr.bf16.gmra.mrb[0].mxu0 %v1975
    %v2250 = vpop.f32.mrb[0].mxu0
    %v2251 = vadd.f32 %v2169, %v2250
    %v2252 = vpop.f32.mrb[0].mxu0
    %v2253 = vadd.f32 %v2171, %v2252
    %v2254 = vpop.f32.mrb[0].mxu0
    %v2255 = vpop.f32.mrb[0].mxu0
    %2256 = vdwg.mxu0
    %v2257 = vadd.f32 %v2210, %v105
    %v2258 = vadd.f32 %v2212, %v109
    %v2259 = vadd.f32 %v2251, %v113
    %v2260 = vadd.f32 %v2253, %v117
    %v2261 = vxor.u32 %v2257, 2147483648
    %v2262 = vmul.f32 %v2261, 1.442695
    %v2263 = vpow.pop %v2262
    %v2264 = vadd.f32 %v2263, 1.0
    %v2265 = vrcp.pop %v2264
    %v2266 = vmul.f32 1.0, %v2265
    %v2267 = vxor.u32 %v2258, 2147483648
    %v2268 = vmul.f32 %v2267, 1.442695
    %v2269 = vpow.pop %v2268
    %v2270 = vadd.f32 %v2269, 1.0
    %v2271 = vrcp.pop %v2270
    %v2272 = vmul.f32 1.0, %v2271
    %v2273 = vtanh.pop %v2259
    %v2274 = vxor.u32 %v2260, 2147483648
    %v2275 = vmul.f32 %v2274, 1.442695
    %v2276 = vpow.pop %v2275
    %v2277 = vadd.f32 %v2276, 1.0
    %v2278 = vrcp.pop %v2277
    %v2279 = vmul.f32 1.0, %v2278
    %v2280 = vmul.f32 %v2272, %v1968
    %v2281 = vmul.f32 %v2266, %v2273
    %v2282 = vadd.f32 %v2280, %v2281
    %v2283 = vtanh.pop %v2282
    %v2284 = vmul.f32 %v2279, %v2283
    %v2285 = vsel %vm1974, %v2284, %v1967
    %v2286 = vsel %vm1974, %v2282, %v1968
    %vm2287 = vcmp.gt.s32.totalorder %v99, 5
    %v2288 = vsel %vm2287, 1, 0
    %2289 = vset.pattern.permute.xlu0 0
    %2290 = vperm.xlu0 %2289, %v2288
    %v2291 = vpop.permute.xlu0 %2290
    %vm2292 = vcmp.eq.s32.totalorder %v2291, 1
    %v2293 = vpack.c.bf16 %v2285, %v2285
    %v2294 = vld [vmem:[#allocation2 + $0xa0] sm:$0xff]
    %v2295 = vld [vmem:[#allocation2 + $0xa8] sm:$0xff]
    %v2296 = vld [vmem:[#allocation2 + $0xb0] sm:$0xff]
    %v2297 = vld [vmem:[#allocation2 + $0xb8] sm:$0xff]
    %2298 = vmatprep.subr.bf16.mxu0 %v293
    %2299 = vmatpush1.bf16.msra.mxu0 %v292
    %2300 = vmatprep.subr.bf16.mxu0 %v297
    %2301 = vmatpush1.bf16.msra.mxu0 %v296
    %2302 = vmatprep.subr.bf16.mxu0 %v301
    %2303 = vmatpush1.bf16.msra.mxu0 %v300
    %2304 = vmatprep.subr.bf16.mxu0 %v305
    %2305 = vmatpush1.bf16.msra.mxu0 %v304
    %2306 = vmatprep.subr.bf16.mxu0 %v309
    %2307 = vmatpush1.bf16.msra.mxu0 %v308
    %2308 = vmatprep.subr.bf16.mxu0 %v313
    %2309 = vmatpush1.bf16.msra.mxu0 %v312
    %2310 = vmatprep.subr.bf16.mxu0 %v317
    %2311 = vmatpush1.bf16.msra.mxu0 %v316
    %2312 = vmatprep.subr.bf16.mxu0 %v321
    %2313 = vmatpush1.bf16.msra.mxu0 %v320
    %2314 = vmatprep.subr.bf16.mxu0 0
    %2315 = vmatpush1.bf16.msra.mxu0 0
    %2316 = vmatprep.subr.bf16.mxu0 0
    %2317 = vmatpush1.bf16.msra.mxu0 0
    %2318 = vmatprep.subr.bf16.mxu0 0
    %2319 = vmatpush1.bf16.msra.mxu0 0
    %2320 = vmatprep.subr.bf16.mxu0 0
    %2321 = vmatpush1.bf16.msra.mxu0 0
    %2322 = vmatprep.subr.bf16.mxu0 0
    %2323 = vmatpush1.bf16.msra.mxu0 0
    %2324 = vmatprep.subr.bf16.mxu0 0
    %2325 = vmatpush1.bf16.msra.mxu0 0
    %2326 = vmatprep.subr.bf16.mxu0 0
    %2327 = vmatpush1.bf16.msra.mxu0 0
    %2328 = vmatprep.subr.bf16.mxu0 0
    %2329 = vmatpush1.bf16.msra.mxu0 0
    %2330 = vmatprep.mubr.bf16.mxu0 0
    %2331 = vmatmul.mubr.bf16.gmra.mrb[0].mxu0 %v2092
    %v2332 = vpop.f32.mrb[0].mxu0
    %v2333 = vadd.f32 0.0, %v2332
    %v2334 = vpop.f32.mrb[0].mxu0
    %v2335 = vadd.f32 0.0, %v2334
    %v2336 = vpop.f32.mrb[0].mxu0
    %v2337 = vpop.f32.mrb[0].mxu0
    %2338 = vdwg.mxu0
    %2339 = vmatprep.subr.bf16.mxu0 %v295
    %2340 = vmatpush1.bf16.msra.mxu0 %v294
    %2341 = vmatprep.subr.bf16.mxu0 %v299
    %2342 = vmatpush1.bf16.msra.mxu0 %v298
    %2343 = vmatprep.subr.bf16.mxu0 %v303
    %2344 = vmatpush1.bf16.msra.mxu0 %v302
    %2345 = vmatprep.subr.bf16.mxu0 %v307
    %2346 = vmatpush1.bf16.msra.mxu0 %v306
    %2347 = vmatprep.subr.bf16.mxu0 %v311
    %2348 = vmatpush1.bf16.msra.mxu0 %v310
    %2349 = vmatprep.subr.bf16.mxu0 %v315
    %2350 = vmatpush1.bf16.msra.mxu0 %v314
    %2351 = vmatprep.subr.bf16.mxu0 %v319
    %2352 = vmatpush1.bf16.msra.mxu0 %v318
    %2353 = vmatprep.subr.bf16.mxu0 %v323
    %2354 = vmatpush1.bf16.msra.mxu0 %v322
    %2355 = vmatprep.subr.bf16.mxu0 0
    %2356 = vmatpush1.bf16.msra.mxu0 0
    %2357 = vmatprep.subr.bf16.mxu0 0
    %2358 = vmatpush1.bf16.msra.mxu0 0
    %2359 = vmatprep.subr.bf16.mxu0 0
    %2360 = vmatpush1.bf16.msra.mxu0 0
    %2361 = vmatprep.subr.bf16.mxu0 0
    %2362 = vmatpush1.bf16.msra.mxu0 0
    %2363 = vmatprep.subr.bf16.mxu0 0
    %2364 = vmatpush1.bf16.msra.mxu0 0
    %2365 = vmatprep.subr.bf16.mxu0 0
    %2366 = vmatpush1.bf16.msra.mxu0 0
    %2367 = vmatprep.subr.bf16.mxu0 0
    %2368 = vmatpush1.bf16.msra.mxu0 0
    %2369 = vmatprep.subr.bf16.mxu0 0
    %2370 = vmatpush1.bf16.msra.mxu0 0
    %2371 = vmatprep.mubr.bf16.mxu0 0
    %2372 = vmatmul.mubr.bf16.gmra.mrb[0].mxu0 %v2092
    %v2373 = vpop.f32.mrb[0].mxu0
    %v2374 = vadd.f32 0.0, %v2373
    %v2375 = vpop.f32.mrb[0].mxu0
    %v2376 = vadd.f32 0.0, %v2375
    %v2377 = vpop.f32.mrb[0].mxu0
    %v2378 = vpop.f32.mrb[0].mxu0
    %2379 = vdwg.mxu0
    %v2380 = vadd.f32 %v2294, %v2333
    %v2381 = vadd.f32 %v2295, %v2335
    %v2382 = vadd.f32 %v2296, %v2374
    %v2383 = vadd.f32 %v2297, %v2376
    %v2384 = vxor.u32 %v2380, 2147483648
    %v2385 = vmul.f32 %v2384, 1.442695
    %v2386 = vpow.pop %v2385
    %v2387 = vadd.f32 %v2386, 1.0
    %v2388 = vrcp.pop %v2387
    %v2389 = vmul.f32 1.0, %v2388
    %v2390 = vxor.u32 %v2381, 2147483648
    %v2391 = vmul.f32 %v2390, 1.442695
    %v2392 = vpow.pop %v2391
    %v2393 = vadd.f32 %v2392, 1.0
    %v2394 = vrcp.pop %v2393
    %v2395 = vmul.f32 1.0, %v2394
    %v2396 = vtanh.pop %v2382
    %v2397 = vxor.u32 %v2383, 2147483648
    %v2398 = vmul.f32 %v2397, 1.442695
    %v2399 = vpow.pop %v2398
    %v2400 = vadd.f32 %v2399, 1.0
    %v2401 = vrcp.pop %v2400
    %v2402 = vmul.f32 1.0, %v2401
    %v2403 = vmul.f32 %v2395, %v2091
    %v2404 = vmul.f32 %v2389, %v2396
    %v2405 = vadd.f32 %v2403, %v2404
    %v2406 = vtanh.pop %v2405
    %v2407 = vmul.f32 %v2402, %v2406
    %v2408 = vsel %vm2292, %v2407, %v2090
    %v2409 = vsel %vm2292, %v2405, %v2091
    %v2410 = vpack.c.bf16 %v2408, %v2408
    %2411 = vmatprep.subr.bf16.mxu0 %v598
    %2412 = vmatpush1.bf16.msra.mxu0 %v597
    %2413 = vmatprep.subr.bf16.mxu0 %v602
    %2414 = vmatpush1.bf16.msra.mxu0 %v601
    %2415 = vmatprep.subr.bf16.mxu0 %v606
    %2416 = vmatpush1.bf16.msra.mxu0 %v605
    %2417 = vmatprep.subr.bf16.mxu0 %v610
    %2418 = vmatpush1.bf16.msra.mxu0 %v609
    %2419 = vmatprep.subr.bf16.mxu0 %v614
    %2420 = vmatpush1.bf16.msra.mxu0 %v613
    %2421 = vmatprep.subr.bf16.mxu0 %v618
    %2422 = vmatpush1.bf16.msra.mxu0 %v617
    %2423 = vmatprep.subr.bf16.mxu0 %v622
    %2424 = vmatpush1.bf16.msra.mxu0 %v621
    %2425 = vmatprep.subr.bf16.mxu0 %v626
    %2426 = vmatpush1.bf16.msra.mxu0 %v625
    %2427 = vmatprep.subr.bf16.mxu0 0
    %2428 = vmatpush1.bf16.msra.mxu0 0
    %2429 = vmatprep.subr.bf16.mxu0 0
    %2430 = vmatpush1.bf16.msra.mxu0 0
    %2431 = vmatprep.subr.bf16.mxu0 0
    %2432 = vmatpush1.bf16.msra.mxu0 0
    %2433 = vmatprep.subr.bf16.mxu0 0
    %2434 = vmatpush1.bf16.msra.mxu0 0
    %2435 = vmatprep.subr.bf16.mxu0 0
    %2436 = vmatpush1.bf16.msra.mxu0 0
    %2437 = vmatprep.subr.bf16.mxu0 0
    %2438 = vmatpush1.bf16.msra.mxu0 0
    %2439 = vmatprep.subr.bf16.mxu0 0
    %2440 = vmatpush1.bf16.msra.mxu0 0
    %2441 = vmatprep.subr.bf16.mxu0 0
    %2442 = vmatpush1.bf16.msra.mxu0 0
    %2443 = vmatprep.mubr.bf16.mxu0 0
    %2444 = vmatmul.mubr.bf16.gmra.mrb[0].mxu0 %v2410
    %v2445 = vpop.f32.mrb[0].mxu0
    %v2446 = vadd.f32 0.0, %v2445
    %v2447 = vpop.f32.mrb[0].mxu0
    %v2448 = vadd.f32 0.0, %v2447
    %v2449 = vpop.f32.mrb[0].mxu0
    %v2450 = vpop.f32.mrb[0].mxu0
    %2451 = vdwg.mxu0
    %2452 = vmatprep.subr.bf16.mxu0 %v600
    %2453 = vmatpush1.bf16.msra.mxu0 %v599
    %2454 = vmatprep.subr.bf16.mxu0 %v604
    %2455 = vmatpush1.bf16.msra.mxu0 %v603
    %2456 = vmatprep.subr.bf16.mxu0 %v608
    %2457 = vmatpush1.bf16.msra.mxu0 %v607
    %2458 = vmatprep.subr.bf16.mxu0 %v612
    %2459 = vmatpush1.bf16.msra.mxu0 %v611
    %2460 = vmatprep.subr.bf16.mxu0 %v616
    %2461 = vmatpush1.bf16.msra.mxu0 %v615
    %2462 = vmatprep.subr.bf16.mxu0 %v620
    %2463 = vmatpush1.bf16.msra.mxu0 %v619
    %2464 = vmatprep.subr.bf16.mxu0 %v624
    %2465 = vmatpush1.bf16.msra.mxu0 %v623
    %2466 = vmatprep.subr.bf16.mxu0 %v628
    %2467 = vmatpush1.bf16.msra.mxu0 %v627
    %2468 = vmatprep.subr.bf16.mxu0 0
    %2469 = vmatpush1.bf16.msra.mxu0 0
    %2470 = vmatprep.subr.bf16.mxu0 0
    %2471 = vmatpush1.bf16.msra.mxu0 0
    %2472 = vmatprep.subr.bf16.mxu0 0
    %2473 = vmatpush1.bf16.msra.mxu0 0
    %2474 = vmatprep.subr.bf16.mxu0 0
    %2475 = vmatpush1.bf16.msra.mxu0 0
    %2476 = vmatprep.subr.bf16.mxu0 0
    %2477 = vmatpush1.bf16.msra.mxu0 0
    %2478 = vmatprep.subr.bf16.mxu0 0
    %2479 = vmatpush1.bf16.msra.mxu0 0
    %2480 = vmatprep.subr.bf16.mxu0 0
    %2481 = vmatpush1.bf16.msra.mxu0 0
    %2482 = vmatprep.subr.bf16.mxu0 0
    %2483 = vmatpush1.bf16.msra.mxu0 0
    %2484 = vmatprep.mubr.bf16.mxu0 0
    %2485 = vmatmul.mubr.bf16.gmra.mrb[0].mxu0 %v2410
    %v2486 = vpop.f32.mrb[0].mxu0
    %v2487 = vadd.f32 0.0, %v2486
    %v2488 = vpop.f32.mrb[0].mxu0
    %v2489 = vadd.f32 0.0, %v2488
    %v2490 = vpop.f32.mrb[0].mxu0
    %v2491 = vpop.f32.mrb[0].mxu0
    %2492 = vdwg.mxu0
    %2493 = vmatprep.subr.bf16.mxu0 %v840
    %2494 = vmatpush1.bf16.msra.mxu0 %v839
    %2495 = vmatprep.subr.bf16.mxu0 %v844
    %2496 = vmatpush1.bf16.msra.mxu0 %v843
    %2497 = vmatprep.subr.bf16.mxu0 %v848
    %2498 = vmatpush1.bf16.msra.mxu0 %v847
    %2499 = vmatprep.subr.bf16.mxu0 %v852
    %2500 = vmatpush1.bf16.msra.mxu0 %v851
    %2501 = vmatprep.subr.bf16.mxu0 %v856
    %2502 = vmatpush1.bf16.msra.mxu0 %v855
    %2503 = vmatprep.subr.bf16.mxu0 %v860
    %2504 = vmatpush1.bf16.msra.mxu0 %v859
    %2505 = vmatprep.subr.bf16.mxu0 %v864
    %2506 = vmatpush1.bf16.msra.mxu0 %v863
    %2507 = vmatprep.subr.bf16.mxu0 %v868
    %2508 = vmatpush1.bf16.msra.mxu0 %v867
    %2509 = vmatprep.subr.bf16.mxu0 0
    %2510 = vmatpush1.bf16.msra.mxu0 0
    %2511 = vmatprep.subr.bf16.mxu0 0
    %2512 = vmatpush1.bf16.msra.mxu0 0
    %2513 = vmatprep.subr.bf16.mxu0 0
    %2514 = vmatpush1.bf16.msra.mxu0 0
    %2515 = vmatprep.subr.bf16.mxu0 0
    %2516 = vmatpush1.bf16.msra.mxu0 0
    %2517 = vmatprep.subr.bf16.mxu0 0
    %2518 = vmatpush1.bf16.msra.mxu0 0
    %2519 = vmatprep.subr.bf16.mxu0 0
    %2520 = vmatpush1.bf16.msra.mxu0 0
    %2521 = vmatprep.subr.bf16.mxu0 0
    %2522 = vmatpush1.bf16.msra.mxu0 0
    %2523 = vmatprep.subr.bf16.mxu0 0
    %2524 = vmatpush1.bf16.msra.mxu0 0
    %2525 = vmatprep.mubr.bf16.mxu0 0
    %2526 = vmatmul.mubr.bf16.gmra.mrb[0].mxu0 %v2293
    %v2527 = vpop.f32.mrb[0].mxu0
    %v2528 = vadd.f32 %v2446, %v2527
    %v2529 = vpop.f32.mrb[0].mxu0
    %v2530 = vadd.f32 %v2448, %v2529
    %v2531 = vpop.f32.mrb[0].mxu0
    %v2532 = vpop.f32.mrb[0].mxu0
    %2533 = vdwg.mxu0
    %2534 = vmatprep.subr.bf16.mxu0 %v842
    %2535 = vmatpush1.bf16.msra.mxu0 %v841
    %2536 = vmatprep.subr.bf16.mxu0 %v846
    %2537 = vmatpush1.bf16.msra.mxu0 %v845
    %2538 = vmatprep.subr.bf16.mxu0 %v850
    %2539 = vmatpush1.bf16.msra.mxu0 %v849
    %2540 = vmatprep.subr.bf16.mxu0 %v854
    %2541 = vmatpush1.bf16.msra.mxu0 %v853
    %2542 = vmatprep.subr.bf16.mxu0 %v858
    %2543 = vmatpush1.bf16.msra.mxu0 %v857
    %2544 = vmatprep.subr.bf16.mxu0 %v862
    %2545 = vmatpush1.bf16.msra.mxu0 %v861
    %2546 = vmatprep.subr.bf16.mxu0 %v866
    %2547 = vmatpush1.bf16.msra.mxu0 %v865
    %2548 = vmatprep.subr.bf16.mxu0 %v870
    %2549 = vmatpush1.bf16.msra.mxu0 %v869
    %2550 = vmatprep.subr.bf16.mxu0 0
    %2551 = vmatpush1.bf16.msra.mxu0 0
    %2552 = vmatprep.subr.bf16.mxu0 0
    %2553 = vmatpush1.bf16.msra.mxu0 0
    %2554 = vmatprep.subr.bf16.mxu0 0
    %2555 = vmatpush1.bf16.msra.mxu0 0
    %2556 = vmatprep.subr.bf16.mxu0 0
    %2557 = vmatpush1.bf16.msra.mxu0 0
    %2558 = vmatprep.subr.bf16.mxu0 0
    %2559 = vmatpush1.bf16.msra.mxu0 0
    %2560 = vmatprep.subr.bf16.mxu0 0
    %2561 = vmatpush1.bf16.msra.mxu0 0
    %2562 = vmatprep.subr.bf16.mxu0 0
    %2563 = vmatpush1.bf16.msra.mxu0 0
    %2564 = vmatprep.subr.bf16.mxu0 0
    %2565 = vmatpush1.bf16.msra.mxu0 0
    %2566 = vmatprep.mubr.bf16.mxu0 0
    %2567 = vmatmul.mubr.bf16.gmra.mrb[0].mxu0 %v2293
    %v2568 = vpop.f32.mrb[0].mxu0
    %v2569 = vadd.f32 %v2487, %v2568
    %v2570 = vpop.f32.mrb[0].mxu0
    %v2571 = vadd.f32 %v2489, %v2570
    %v2572 = vpop.f32.mrb[0].mxu0
    %v2573 = vpop.f32.mrb[0].mxu0
    %2574 = vdwg.mxu0
    %v2575 = vadd.f32 %v2528, %v105
    %v2576 = vadd.f32 %v2530, %v109
    %v2577 = vadd.f32 %v2569, %v113
    %v2578 = vadd.f32 %v2571, %v117
    %v2579 = vxor.u32 %v2575, 2147483648
    %v2580 = vmul.f32 %v2579, 1.442695
    %v2581 = vpow.pop %v2580
    %v2582 = vadd.f32 %v2581, 1.0
    %v2583 = vrcp.pop %v2582
    %v2584 = vmul.f32 1.0, %v2583
    %v2585 = vxor.u32 %v2576, 2147483648
    %v2586 = vmul.f32 %v2585, 1.442695
    %v2587 = vpow.pop %v2586
    %v2588 = vadd.f32 %v2587, 1.0
    %v2589 = vrcp.pop %v2588
    %v2590 = vmul.f32 1.0, %v2589
    %v2591 = vtanh.pop %v2577
    %v2592 = vxor.u32 %v2578, 2147483648
    %v2593 = vmul.f32 %v2592, 1.442695
    %v2594 = vpow.pop %v2593
    %v2595 = vadd.f32 %v2594, 1.0
    %v2596 = vrcp.pop %v2595
    %v2597 = vmul.f32 1.0, %v2596
    %v2598 = vmul.f32 %v2590, %v2286
    %v2599 = vmul.f32 %v2584, %v2591
    %v2600 = vadd.f32 %v2598, %v2599
    %v2601 = vtanh.pop %v2600
    %v2602 = vmul.f32 %v2597, %v2601
    %v2603 = vsel %vm2292, %v2602, %v2285
    %v2604 = vsel %vm2292, %v2600, %v2286
    %vm2605 = vcmp.gt.s32.totalorder %v99, 6
    %v2606 = vsel %vm2605, 1, 0
    %2607 = vset.pattern.permute.xlu0 0
    %2608 = vperm.xlu0 %2607, %v2606
    %v2609 = vpop.permute.xlu0 %2608
    %vm2610 = vcmp.eq.s32.totalorder %v2609, 1
    %v2611 = vpack.c.bf16 %v2603, %v2603
    %v2612 = vld [vmem:[#allocation2 + $0xc0] sm:$0xff]
    %v2613 = vld [vmem:[#allocation2 + $0xc8] sm:$0xff]
    %v2614 = vld [vmem:[#allocation2 + $0xd0] sm:$0xff]
    %v2615 = vld [vmem:[#allocation2 + $0xd8] sm:$0xff]
    %2616 = vmatprep.subr.bf16.mxu0 %v293
    %2617 = vmatpush1.bf16.msra.mxu0 %v292
    %2618 = vmatprep.subr.bf16.mxu0 %v297
    %2619 = vmatpush1.bf16.msra.mxu0 %v296
    %2620 = vmatprep.subr.bf16.mxu0 %v301
    %2621 = vmatpush1.bf16.msra.mxu0 %v300
    %2622 = vmatprep.subr.bf16.mxu0 %v305
    %2623 = vmatpush1.bf16.msra.mxu0 %v304
    %2624 = vmatprep.subr.bf16.mxu0 %v309
    %2625 = vmatpush1.bf16.msra.mxu0 %v308
    %2626 = vmatprep.subr.bf16.mxu0 %v313
    %2627 = vmatpush1.bf16.msra.mxu0 %v312
    %2628 = vmatprep.subr.bf16.mxu0 %v317
    %2629 = vmatpush1.bf16.msra.mxu0 %v316
    %2630 = vmatprep.subr.bf16.mxu0 %v321
    %2631 = vmatpush1.bf16.msra.mxu0 %v320
    %2632 = vmatprep.subr.bf16.mxu0 0
    %2633 = vmatpush1.bf16.msra.mxu0 0
    %2634 = vmatprep.subr.bf16.mxu0 0
    %2635 = vmatpush1.bf16.msra.mxu0 0
    %2636 = vmatprep.subr.bf16.mxu0 0
    %2637 = vmatpush1.bf16.msra.mxu0 0
    %2638 = vmatprep.subr.bf16.mxu0 0
    %2639 = vmatpush1.bf16.msra.mxu0 0
    %2640 = vmatprep.subr.bf16.mxu0 0
    %2641 = vmatpush1.bf16.msra.mxu0 0
    %2642 = vmatprep.subr.bf16.mxu0 0
    %2643 = vmatpush1.bf16.msra.mxu0 0
    %2644 = vmatprep.subr.bf16.mxu0 0
    %2645 = vmatpush1.bf16.msra.mxu0 0
    %2646 = vmatprep.subr.bf16.mxu0 0
    %2647 = vmatpush1.bf16.msra.mxu0 0
    %2648 = vmatprep.mubr.bf16.mxu0 0
    %2649 = vmatmul.mubr.bf16.gmra.mrb[0].mxu0 %v2410
    %v2650 = vpop.f32.mrb[0].mxu0
    %v2651 = vadd.f32 0.0, %v2650
    %v2652 = vpop.f32.mrb[0].mxu0
    %v2653 = vadd.f32 0.0, %v2652
    %v2654 = vpop.f32.mrb[0].mxu0
    %v2655 = vpop.f32.mrb[0].mxu0
    %2656 = vdwg.mxu0
    %2657 = vmatprep.subr.bf16.mxu0 %v295
    %2658 = vmatpush1.bf16.msra.mxu0 %v294
    %2659 = vmatprep.subr.bf16.mxu0 %v299
    %2660 = vmatpush1.bf16.msra.mxu0 %v298
    %2661 = vmatprep.subr.bf16.mxu0 %v303
    %2662 = vmatpush1.bf16.msra.mxu0 %v302
    %2663 = vmatprep.subr.bf16.mxu0 %v307
    %2664 = vmatpush1.bf16.msra.mxu0 %v306
    %2665 = vmatprep.subr.bf16.mxu0 %v311
    %2666 = vmatpush1.bf16.msra.mxu0 %v310
    %2667 = vmatprep.subr.bf16.mxu0 %v315
    %2668 = vmatpush1.bf16.msra.mxu0 %v314
    %2669 = vmatprep.subr.bf16.mxu0 %v319
    %2670 = vmatpush1.bf16.msra.mxu0 %v318
    %2671 = vmatprep.subr.bf16.mxu0 %v323
    %2672 = vmatpush1.bf16.msra.mxu0 %v322
    %2673 = vmatprep.subr.bf16.mxu0 0
    %2674 = vmatpush1.bf16.msra.mxu0 0
    %2675 = vmatprep.subr.bf16.mxu0 0
    %2676 = vmatpush1.bf16.msra.mxu0 0
    %2677 = vmatprep.subr.bf16.mxu0 0
    %2678 = vmatpush1.bf16.msra.mxu0 0
    %2679 = vmatprep.subr.bf16.mxu0 0
    %2680 = vmatpush1.bf16.msra.mxu0 0
    %2681 = vmatprep.subr.bf16.mxu0 0
    %2682 = vmatpush1.bf16.msra.mxu0 0
    %2683 = vmatprep.subr.bf16.mxu0 0
    %2684 = vmatpush1.bf16.msra.mxu0 0
    %2685 = vmatprep.subr.bf16.mxu0 0
    %2686 = vmatpush1.bf16.msra.mxu0 0
    %2687 = vmatprep.subr.bf16.mxu0 0
    %2688 = vmatpush1.bf16.msra.mxu0 0
    %2689 = vmatprep.mubr.bf16.mxu0 0
    %2690 = vmatmul.mubr.bf16.gmra.mrb[0].mxu0 %v2410
    %v2691 = vpop.f32.mrb[0].mxu0
    %v2692 = vadd.f32 0.0, %v2691
    %v2693 = vpop.f32.mrb[0].mxu0
    %v2694 = vadd.f32 0.0, %v2693
    %v2695 = vpop.f32.mrb[0].mxu0
    %v2696 = vpop.f32.mrb[0].mxu0
    %2697 = vdwg.mxu0
    %v2698 = vadd.f32 %v2612, %v2651
    %v2699 = vadd.f32 %v2613, %v2653
    %v2700 = vadd.f32 %v2614, %v2692
    %v2701 = vadd.f32 %v2615, %v2694
    %v2702 = vxor.u32 %v2698, 2147483648
    %v2703 = vmul.f32 %v2702, 1.442695
    %v2704 = vpow.pop %v2703
    %v2705 = vadd.f32 %v2704, 1.0
    %v2706 = vrcp.pop %v2705
    %v2707 = vmul.f32 1.0, %v2706
    %v2708 = vxor.u32 %v2699, 2147483648
    %v2709 = vmul.f32 %v2708, 1.442695
    %v2710 = vpow.pop %v2709
    %v2711 = vadd.f32 %v2710, 1.0
    %v2712 = vrcp.pop %v2711
    %v2713 = vmul.f32 1.0, %v2712
    %v2714 = vtanh.pop %v2700
    %v2715 = vxor.u32 %v2701, 2147483648
    %v2716 = vmul.f32 %v2715, 1.442695
    %v2717 = vpow.pop %v2716
    %v2718 = vadd.f32 %v2717, 1.0
    %v2719 = vrcp.pop %v2718
    %v2720 = vmul.f32 1.0, %v2719
    %v2721 = vmul.f32 %v2713, %v2409
    %v2722 = vmul.f32 %v2707, %v2714
    %v2723 = vadd.f32 %v2721, %v2722
    %v2724 = vtanh.pop %v2723
    %v2725 = vmul.f32 %v2720, %v2724
    %v2726 = vsel %vm2610, %v2725, %v2408
    %v2727 = vsel %vm2610, %v2723, %v2409
    %v2728 = vpack.c.bf16 %v2726, %v2726
    %2729 = vmatprep.subr.bf16.mxu0 %v598
    %2730 = vmatpush1.bf16.msra.mxu0 %v597
    %2731 = vmatprep.subr.bf16.mxu0 %v602
    %2732 = vmatpush1.bf16.msra.mxu0 %v601
    %2733 = vmatprep.subr.bf16.mxu0 %v606
    %2734 = vmatpush1.bf16.msra.mxu0 %v605
    %2735 = vmatprep.subr.bf16.mxu0 %v610
    %2736 = vmatpush1.bf16.msra.mxu0 %v609
    %2737 = vmatprep.subr.bf16.mxu0 %v614
    %2738 = vmatpush1.bf16.msra.mxu0 %v613
    %2739 = vmatprep.subr.bf16.mxu0 %v618
    %2740 = vmatpush1.bf16.msra.mxu0 %v617
    %2741 = vmatprep.subr.bf16.mxu0 %v622
    %2742 = vmatpush1.bf16.msra.mxu0 %v621
    %2743 = vmatprep.subr.bf16.mxu0 %v626
    %2744 = vmatpush1.bf16.msra.mxu0 %v625
    %2745 = vmatprep.subr.bf16.mxu0 0
    %2746 = vmatpush1.bf16.msra.mxu0 0
    %2747 = vmatprep.subr.bf16.mxu0 0
    %2748 = vmatpush1.bf16.msra.mxu0 0
    %2749 = vmatprep.subr.bf16.mxu0 0
    %2750 = vmatpush1.bf16.msra.mxu0 0
    %2751 = vmatprep.subr.bf16.mxu0 0
    %2752 = vmatpush1.bf16.msra.mxu0 0
    %2753 = vmatprep.subr.bf16.mxu0 0
    %2754 = vmatpush1.bf16.msra.mxu0 0
    %2755 = vmatprep.subr.bf16.mxu0 0
    %2756 = vmatpush1.bf16.msra.mxu0 0
    %2757 = vmatprep.subr.bf16.mxu0 0
    %2758 = vmatpush1.bf16.msra.mxu0 0
    %2759 = vmatprep.subr.bf16.mxu0 0
    %2760 = vmatpush1.bf16.msra.mxu0 0
    %2761 = vmatprep.mubr.bf16.mxu0 0
    %2762 = vmatmul.mubr.bf16.gmra.mrb[0].mxu0 %v2728
    %v2763 = vpop.f32.mrb[0].mxu0
    %v2764 = vadd.f32 0.0, %v2763
    %v2765 = vpop.f32.mrb[0].mxu0
    %v2766 = vadd.f32 0.0, %v2765
    %v2767 = vpop.f32.mrb[0].mxu0
    %v2768 = vpop.f32.mrb[0].mxu0
    %2769 = vdwg.mxu0
    %2770 = vmatprep.subr.bf16.mxu0 %v600
    %2771 = vmatpush1.bf16.msra.mxu0 %v599
    %2772 = vmatprep.subr.bf16.mxu0 %v604
    %2773 = vmatpush1.bf16.msra.mxu0 %v603
    %2774 = vmatprep.subr.bf16.mxu0 %v608
    %2775 = vmatpush1.bf16.msra.mxu0 %v607
    %2776 = vmatprep.subr.bf16.mxu0 %v612
    %2777 = vmatpush1.bf16.msra.mxu0 %v611
    %2778 = vmatprep.subr.bf16.mxu0 %v616
    %2779 = vmatpush1.bf16.msra.mxu0 %v615
    %2780 = vmatprep.subr.bf16.mxu0 %v620
    %2781 = vmatpush1.bf16.msra.mxu0 %v619
    %2782 = vmatprep.subr.bf16.mxu0 %v624
    %2783 = vmatpush1.bf16.msra.mxu0 %v623
    %2784 = vmatprep.subr.bf16.mxu0 %v628
    %2785 = vmatpush1.bf16.msra.mxu0 %v627
    %2786 = vmatprep.subr.bf16.mxu0 0
    %2787 = vmatpush1.bf16.msra.mxu0 0
    %2788 = vmatprep.subr.bf16.mxu0 0
    %2789 = vmatpush1.bf16.msra.mxu0 0
    %2790 = vmatprep.subr.bf16.mxu0 0
    %2791 = vmatpush1.bf16.msra.mxu0 0
    %2792 = vmatprep.subr.bf16.mxu0 0
    %2793 = vmatpush1.bf16.msra.mxu0 0
    %2794 = vmatprep.subr.bf16.mxu0 0
    %2795 = vmatpush1.bf16.msra.mxu0 0
    %2796 = vmatprep.subr.bf16.mxu0 0
    %2797 = vmatpush1.bf16.msra.mxu0 0
    %2798 = vmatprep.subr.bf16.mxu0 0
    %2799 = vmatpush1.bf16.msra.mxu0 0
    %2800 = vmatprep.subr.bf16.mxu0 0
    %2801 = vmatpush1.bf16.msra.mxu0 0
    %2802 = vmatprep.mubr.bf16.mxu0 0
    %2803 = vmatmul.mubr.bf16.gmra.mrb[0].mxu0 %v2728
    %v2804 = vpop.f32.mrb[0].mxu0
    %v2805 = vadd.f32 0.0, %v2804
    %v2806 = vpop.f32.mrb[0].mxu0
    %v2807 = vadd.f32 0.0, %v2806
    %v2808 = vpop.f32.mrb[0].mxu0
    %v2809 = vpop.f32.mrb[0].mxu0
    %2810 = vdwg.mxu0
    %2811 = vmatprep.subr.bf16.mxu0 %v840
    %2812 = vmatpush1.bf16.msra.mxu0 %v839
    %2813 = vmatprep.subr.bf16.mxu0 %v844
    %2814 = vmatpush1.bf16.msra.mxu0 %v843
    %2815 = vmatprep.subr.bf16.mxu0 %v848
    %2816 = vmatpush1.bf16.msra.mxu0 %v847
    %2817 = vmatprep.subr.bf16.mxu0 %v852
    %2818 = vmatpush1.bf16.msra.mxu0 %v851
    %2819 = vmatprep.subr.bf16.mxu0 %v856
    %2820 = vmatpush1.bf16.msra.mxu0 %v855
    %2821 = vmatprep.subr.bf16.mxu0 %v860
    %2822 = vmatpush1.bf16.msra.mxu0 %v859
    %2823 = vmatprep.subr.bf16.mxu0 %v864
    %2824 = vmatpush1.bf16.msra.mxu0 %v863
    %2825 = vmatprep.subr.bf16.mxu0 %v868
    %2826 = vmatpush1.bf16.msra.mxu0 %v867
    %2827 = vmatprep.subr.bf16.mxu0 0
    %2828 = vmatpush1.bf16.msra.mxu0 0
    %2829 = vmatprep.subr.bf16.mxu0 0
    %2830 = vmatpush1.bf16.msra.mxu0 0
    %2831 = vmatprep.subr.bf16.mxu0 0
    %2832 = vmatpush1.bf16.msra.mxu0 0
    %2833 = vmatprep.subr.bf16.mxu0 0
    %2834 = vmatpush1.bf16.msra.mxu0 0
    %2835 = vmatprep.subr.bf16.mxu0 0
    %2836 = vmatpush1.bf16.msra.mxu0 0
    %2837 = vmatprep.subr.bf16.mxu0 0
    %2838 = vmatpush1.bf16.msra.mxu0 0
    %2839 = vmatprep.subr.bf16.mxu0 0
    %2840 = vmatpush1.bf16.msra.mxu0 0
    %2841 = vmatprep.subr.bf16.mxu0 0
    %2842 = vmatpush1.bf16.msra.mxu0 0
    %2843 = vmatprep.mubr.bf16.mxu0 0
    %2844 = vmatmul.mubr.bf16.gmra.mrb[0].mxu0 %v2611
    %v2845 = vpop.f32.mrb[0].mxu0
    %v2846 = vadd.f32 %v2764, %v2845
    %v2847 = vpop.f32.mrb[0].mxu0
    %v2848 = vadd.f32 %v2766, %v2847
    %v2849 = vpop.f32.mrb[0].mxu0
    %v2850 = vpop.f32.mrb[0].mxu0
    %2851 = vdwg.mxu0
    %2852 = vmatprep.subr.bf16.mxu0 %v842
    %2853 = vmatpush1.bf16.msra.mxu0 %v841
    %2854 = vmatprep.subr.bf16.mxu0 %v846
    %2855 = vmatpush1.bf16.msra.mxu0 %v845
    %2856 = vmatprep.subr.bf16.mxu0 %v850
    %2857 = vmatpush1.bf16.msra.mxu0 %v849
    %2858 = vmatprep.subr.bf16.mxu0 %v854
    %2859 = vmatpush1.bf16.msra.mxu0 %v853
    %2860 = vmatprep.subr.bf16.mxu0 %v858
    %2861 = vmatpush1.bf16.msra.mxu0 %v857
    %2862 = vmatprep.subr.bf16.mxu0 %v862
    %2863 = vmatpush1.bf16.msra.mxu0 %v861
    %2864 = vmatprep.subr.bf16.mxu0 %v866
    %2865 = vmatpush1.bf16.msra.mxu0 %v865
    %2866 = vmatprep.subr.bf16.mxu0 %v870
    %2867 = vmatpush1.bf16.msra.mxu0 %v869
    %2868 = vmatprep.subr.bf16.mxu0 0
    %2869 = vmatpush1.bf16.msra.mxu0 0
    %2870 = vmatprep.subr.bf16.mxu0 0
    %2871 = vmatpush1.bf16.msra.mxu0 0
    %2872 = vmatprep.subr.bf16.mxu0 0
    %2873 = vmatpush1.bf16.msra.mxu0 0
    %2874 = vmatprep.subr.bf16.mxu0 0
    %2875 = vmatpush1.bf16.msra.mxu0 0
    %2876 = vmatprep.subr.bf16.mxu0 0
    %2877 = vmatpush1.bf16.msra.mxu0 0
    %2878 = vmatprep.subr.bf16.mxu0 0
    %2879 = vmatpush1.bf16.msra.mxu0 0
    %2880 = vmatprep.subr.bf16.mxu0 0
    %2881 = vmatpush1.bf16.msra.mxu0 0
    %2882 = vmatprep.subr.bf16.mxu0 0
    %2883 = vmatpush1.bf16.msra.mxu0 0
    %2884 = vmatprep.mubr.bf16.mxu0 0
    %2885 = vmatmul.mubr.bf16.gmra.mrb[0].mxu0 %v2611
    %v2886 = vpop.f32.mrb[0].mxu0
    %v2887 = vadd.f32 %v2805, %v2886
    %v2888 = vpop.f32.mrb[0].mxu0
    %v2889 = vadd.f32 %v2807, %v2888
    %v2890 = vpop.f32.mrb[0].mxu0
    %v2891 = vpop.f32.mrb[0].mxu0
    %2892 = vdwg.mxu0
    %v2893 = vadd.f32 %v2846, %v105
    %v2894 = vadd.f32 %v2848, %v109
    %v2895 = vadd.f32 %v2887, %v113
    %v2896 = vadd.f32 %v2889, %v117
    %v2897 = vxor.u32 %v2893, 2147483648
    %v2898 = vmul.f32 %v2897, 1.442695
    %v2899 = vpow.pop %v2898
    %v2900 = vadd.f32 %v2899, 1.0
    %v2901 = vrcp.pop %v2900
    %v2902 = vmul.f32 1.0, %v2901
    %v2903 = vxor.u32 %v2894, 2147483648
    %v2904 = vmul.f32 %v2903, 1.442695
    %v2905 = vpow.pop %v2904
    %v2906 = vadd.f32 %v2905, 1.0
    %v2907 = vrcp.pop %v2906
    %v2908 = vmul.f32 1.0, %v2907
    %v2909 = vtanh.pop %v2895
    %v2910 = vxor.u32 %v2896, 2147483648
    %v2911 = vmul.f32 %v2910, 1.442695
    %v2912 = vpow.pop %v2911
    %v2913 = vadd.f32 %v2912, 1.0
    %v2914 = vrcp.pop %v2913
    %v2915 = vmul.f32 1.0, %v2914
    %v2916 = vmul.f32 %v2908, %v2604
    %v2917 = vmul.f32 %v2902, %v2909
    %v2918 = vadd.f32 %v2916, %v2917
    %v2919 = vtanh.pop %v2918
    %v2920 = vmul.f32 %v2915, %v2919
    %v2921 = vsel %vm2610, %v2920, %v2603
    %v2922 = vsel %vm2610, %v2918, %v2604
    %vm2923 = vcmp.gt.s32.totalorder %v99, 7
    %v2924 = vsel %vm2923, 1, 0
    %2925 = vset.pattern.permute.xlu0 0
    %2926 = vperm.xlu0 %2925, %v2924
    %v2927 = vpop.permute.xlu0 %2926
    %vm2928 = vcmp.eq.s32.totalorder %v2927, 1
    %v2929 = vpack.c.bf16 %v2921, %v2921
    %v2930 = vld [vmem:[#allocation2 + $0xe0] sm:$0xff]
    %v2931 = vld [vmem:[#allocation2 + $0xe8] sm:$0xff]
    %v2932 = vld [vmem:[#allocation2 + $0xf0] sm:$0xff]
    %v2933 = vld [vmem:[#allocation2 + $0xf8] sm:$0xff]
    %2934 = vmatprep.subr.bf16.mxu0 %v293
    %2935 = vmatpush1.bf16.msra.mxu0 %v292
    %2936 = vmatprep.subr.bf16.mxu0 %v297
    %2937 = vmatpush1.bf16.msra.mxu0 %v296
    %2938 = vmatprep.subr.bf16.mxu0 %v301
    %2939 = vmatpush1.bf16.msra.mxu0 %v300
    %2940 = vmatprep.subr.bf16.mxu0 %v305
    %2941 = vmatpush1.bf16.msra.mxu0 %v304
    %2942 = vmatprep.subr.bf16.mxu0 %v309
    %2943 = vmatpush1.bf16.msra.mxu0 %v308
    %2944 = vmatprep.subr.bf16.mxu0 %v313
    %2945 = vmatpush1.bf16.msra.mxu0 %v312
    %2946 = vmatprep.subr.bf16.mxu0 %v317
    %2947 = vmatpush1.bf16.msra.mxu0 %v316
    %2948 = vmatprep.subr.bf16.mxu0 %v321
    %2949 = vmatpush1.bf16.msra.mxu0 %v320
    %2950 = vmatprep.subr.bf16.mxu0 0
    %2951 = vmatpush1.bf16.msra.mxu0 0
    %2952 = vmatprep.subr.bf16.mxu0 0
    %2953 = vmatpush1.bf16.msra.mxu0 0
    %2954 = vmatprep.subr.bf16.mxu0 0
    %2955 = vmatpush1.bf16.msra.mxu0 0
    %2956 = vmatprep.subr.bf16.mxu0 0
    %2957 = vmatpush1.bf16.msra.mxu0 0
    %2958 = vmatprep.subr.bf16.mxu0 0
    %2959 = vmatpush1.bf16.msra.mxu0 0
    %2960 = vmatprep.subr.bf16.mxu0 0
    %2961 = vmatpush1.bf16.msra.mxu0 0
    %2962 = vmatprep.subr.bf16.mxu0 0
    %2963 = vmatpush1.bf16.msra.mxu0 0
    %2964 = vmatprep.subr.bf16.mxu0 0
    %2965 = vmatpush1.bf16.msra.mxu0 0
    %2966 = vmatprep.mubr.bf16.mxu0 0
    %2967 = vmatmul.mubr.bf16.gmra.mrb[0].mxu0 %v2728
    %v2968 = vpop.f32.mrb[0].mxu0
    %v2969 = vadd.f32 0.0, %v2968
    %v2970 = vpop.f32.mrb[0].mxu0
    %v2971 = vadd.f32 0.0, %v2970
    %v2972 = vpop.f32.mrb[0].mxu0
    %v2973 = vpop.f32.mrb[0].mxu0
    %2974 = vdwg.mxu0
    %2975 = vmatprep.subr.bf16.mxu0 %v295
    %2976 = vmatpush1.bf16.msra.mxu0 %v294
    %2977 = vmatprep.subr.bf16.mxu0 %v299
    %2978 = vmatpush1.bf16.msra.mxu0 %v298
    %2979 = vmatprep.subr.bf16.mxu0 %v303
    %2980 = vmatpush1.bf16.msra.mxu0 %v302
    %2981 = vmatprep.subr.bf16.mxu0 %v307
    %2982 = vmatpush1.bf16.msra.mxu0 %v306
    %2983 = vmatprep.subr.bf16.mxu0 %v311
    %2984 = vmatpush1.bf16.msra.mxu0 %v310
    %2985 = vmatprep.subr.bf16.mxu0 %v315
    %2986 = vmatpush1.bf16.msra.mxu0 %v314
    %2987 = vmatprep.subr.bf16.mxu0 %v319
    %2988 = vmatpush1.bf16.msra.mxu0 %v318
    %2989 = vmatprep.subr.bf16.mxu0 %v323
    %2990 = vmatpush1.bf16.msra.mxu0 %v322
    %2991 = vmatprep.subr.bf16.mxu0 0
    %2992 = vmatpush1.bf16.msra.mxu0 0
    %2993 = vmatprep.subr.bf16.mxu0 0
    %2994 = vmatpush1.bf16.msra.mxu0 0
    %2995 = vmatprep.subr.bf16.mxu0 0
    %2996 = vmatpush1.bf16.msra.mxu0 0
    %2997 = vmatprep.subr.bf16.mxu0 0
    %2998 = vmatpush1.bf16.msra.mxu0 0
    %2999 = vmatprep.subr.bf16.mxu0 0
    %3000 = vmatpush1.bf16.msra.mxu0 0
    %3001 = vmatprep.subr.bf16.mxu0 0
    %3002 = vmatpush1.bf16.msra.mxu0 0
    %3003 = vmatprep.subr.bf16.mxu0 0
    %3004 = vmatpush1.bf16.msra.mxu0 0
    %3005 = vmatprep.subr.bf16.mxu0 0
    %3006 = vmatpush1.bf16.msra.mxu0 0
    %3007 = vmatprep.mubr.bf16.mxu0 0
    %3008 = vmatmul.mubr.bf16.gmra.mrb[0].mxu0 %v2728
    %v3009 = vpop.f32.mrb[0].mxu0
    %v3010 = vadd.f32 0.0, %v3009
    %v3011 = vpop.f32.mrb[0].mxu0
    %v3012 = vadd.f32 0.0, %v3011
    %v3013 = vpop.f32.mrb[0].mxu0
    %v3014 = vpop.f32.mrb[0].mxu0
    %3015 = vdwg.mxu0
    %v3016 = vadd.f32 %v2930, %v2969
    %v3017 = vadd.f32 %v2931, %v2971
    %v3018 = vadd.f32 %v2932, %v3010
    %v3019 = vadd.f32 %v2933, %v3012
    %v3020 = vxor.u32 %v3016, 2147483648
    %v3021 = vmul.f32 %v3020, 1.442695
    %v3022 = vpow.pop %v3021
    %v3023 = vadd.f32 %v3022, 1.0
    %v3024 = vrcp.pop %v3023
    %v3025 = vmul.f32 1.0, %v3024
    %v3026 = vxor.u32 %v3017, 2147483648
    %v3027 = vmul.f32 %v3026, 1.442695
    %v3028 = vpow.pop %v3027
    %v3029 = vadd.f32 %v3028, 1.0
    %v3030 = vrcp.pop %v3029
    %v3031 = vmul.f32 1.0, %v3030
    %v3032 = vtanh.pop %v3018
    %v3033 = vxor.u32 %v3019, 2147483648
    %v3034 = vmul.f32 %v3033, 1.442695
    %v3035 = vpow.pop %v3034
    %v3036 = vadd.f32 %v3035, 1.0
    %v3037 = vrcp.pop %v3036
    %v3038 = vmul.f32 1.0, %v3037
    %v3039 = vmul.f32 %v3031, %v2727
    %v3040 = vmul.f32 %v3025, %v3032
    %v3041 = vadd.f32 %v3039, %v3040
    %v3042 = vtanh.pop %v3041
    %v3043 = vmul.f32 %v3038, %v3042
    %v3044 = vsel %vm2928, %v3043, %v2726
    %v3045 = vsel %vm2928, %v3041, %v2727
    %v3046 = vpack.c.bf16 %v3044, %v3044
    %3047 = vmatprep.subr.bf16.mxu0 %v598
    %3048 = vmatpush1.bf16.msra.mxu0 %v597
    %3049 = vmatprep.subr.bf16.mxu0 %v602
    %3050 = vmatpush1.bf16.msra.mxu0 %v601
    %3051 = vmatprep.subr.bf16.mxu0 %v606
    %3052 = vmatpush1.bf16.msra.mxu0 %v605
    %3053 = vmatprep.subr.bf16.mxu0 %v610
    %3054 = vmatpush1.bf16.msra.mxu0 %v609
    %3055 = vmatprep.subr.bf16.mxu0 %v614
    %3056 = vmatpush1.bf16.msra.mxu0 %v613
    %3057 = vmatprep.subr.bf16.mxu0 %v618
    %3058 = vmatpush1.bf16.msra.mxu0 %v617
    %3059 = vmatprep.subr.bf16.mxu0 %v622
    %3060 = vmatpush1.bf16.msra.mxu0 %v621
    %3061 = vmatprep.subr.bf16.mxu0 %v626
    %3062 = vmatpush1.bf16.msra.mxu0 %v625
    %3063 = vmatprep.subr.bf16.mxu0 0
    %3064 = vmatpush1.bf16.msra.mxu0 0
    %3065 = vmatprep.subr.bf16.mxu0 0
    %3066 = vmatpush1.bf16.msra.mxu0 0
    %3067 = vmatprep.subr.bf16.mxu0 0
    %3068 = vmatpush1.bf16.msra.mxu0 0
    %3069 = vmatprep.subr.bf16.mxu0 0
    %3070 = vmatpush1.bf16.msra.mxu0 0
    %3071 = vmatprep.subr.bf16.mxu0 0
    %3072 = vmatpush1.bf16.msra.mxu0 0
    %3073 = vmatprep.subr.bf16.mxu0 0
    %3074 = vmatpush1.bf16.msra.mxu0 0
    %3075 = vmatprep.subr.bf16.mxu0 0
    %3076 = vmatpush1.bf16.msra.mxu0 0
    %3077 = vmatprep.subr.bf16.mxu0 0
    %3078 = vmatpush1.bf16.msra.mxu0 0
    %3079 = vmatprep.mubr.bf16.mxu0 0
    %3080 = vmatmul.mubr.bf16.gmra.mrb[0].mxu0 %v3046
    %v3081 = vpop.f32.mrb[0].mxu0
    %v3082 = vadd.f32 0.0, %v3081
    %v3083 = vpop.f32.mrb[0].mxu0
    %v3084 = vadd.f32 0.0, %v3083
    %v3085 = vpop.f32.mrb[0].mxu0
    %v3086 = vpop.f32.mrb[0].mxu0
    %3087 = vdwg.mxu0
    %3088 = vmatprep.subr.bf16.mxu0 %v600
    %3089 = vmatpush1.bf16.msra.mxu0 %v599
    %3090 = vmatprep.subr.bf16.mxu0 %v604
    %3091 = vmatpush1.bf16.msra.mxu0 %v603
    %3092 = vmatprep.subr.bf16.mxu0 %v608
    %3093 = vmatpush1.bf16.msra.mxu0 %v607
    %3094 = vmatprep.subr.bf16.mxu0 %v612
    %3095 = vmatpush1.bf16.msra.mxu0 %v611
    %3096 = vmatprep.subr.bf16.mxu0 %v616
    %3097 = vmatpush1.bf16.msra.mxu0 %v615
    %3098 = vmatprep.subr.bf16.mxu0 %v620
    %3099 = vmatpush1.bf16.msra.mxu0 %v619
    %3100 = vmatprep.subr.bf16.mxu0 %v624
    %3101 = vmatpush1.bf16.msra.mxu0 %v623
    %3102 = vmatprep.subr.bf16.mxu0 %v628
    %3103 = vmatpush1.bf16.msra.mxu0 %v627
    %3104 = vmatprep.subr.bf16.mxu0 0
    %3105 = vmatpush1.bf16.msra.mxu0 0
    %3106 = vmatprep.subr.bf16.mxu0 0
    %3107 = vmatpush1.bf16.msra.mxu0 0
    %3108 = vmatprep.subr.bf16.mxu0 0
    %3109 = vmatpush1.bf16.msra.mxu0 0
    %3110 = vmatprep.subr.bf16.mxu0 0
    %3111 = vmatpush1.bf16.msra.mxu0 0
    %3112 = vmatprep.subr.bf16.mxu0 0
    %3113 = vmatpush1.bf16.msra.mxu0 0
    %3114 = vmatprep.subr.bf16.mxu0 0
    %3115 = vmatpush1.bf16.msra.mxu0 0
    %3116 = vmatprep.subr.bf16.mxu0 0
    %3117 = vmatpush1.bf16.msra.mxu0 0
    %3118 = vmatprep.subr.bf16.mxu0 0
    %3119 = vmatpush1.bf16.msra.mxu0 0
    %3120 = vmatprep.mubr.bf16.mxu0 0
    %3121 = vmatmul.mubr.bf16.gmra.mrb[0].mxu0 %v3046
    %v3122 = vpop.f32.mrb[0].mxu0
    %v3123 = vadd.f32 0.0, %v3122
    %v3124 = vpop.f32.mrb[0].mxu0
    %v3125 = vadd.f32 0.0, %v3124
    %v3126 = vpop.f32.mrb[0].mxu0
    %v3127 = vpop.f32.mrb[0].mxu0
    %3128 = vdwg.mxu0
    %3129 = vmatprep.subr.bf16.mxu0 %v840
    %3130 = vmatpush1.bf16.msra.mxu0 %v839
    %3131 = vmatprep.subr.bf16.mxu0 %v844
    %3132 = vmatpush1.bf16.msra.mxu0 %v843
    %3133 = vmatprep.subr.bf16.mxu0 %v848
    %3134 = vmatpush1.bf16.msra.mxu0 %v847
    %3135 = vmatprep.subr.bf16.mxu0 %v852
    %3136 = vmatpush1.bf16.msra.mxu0 %v851
    %3137 = vmatprep.subr.bf16.mxu0 %v856
    %3138 = vmatpush1.bf16.msra.mxu0 %v855
    %3139 = vmatprep.subr.bf16.mxu0 %v860
    %3140 = vmatpush1.bf16.msra.mxu0 %v859
    %3141 = vmatprep.subr.bf16.mxu0 %v864
    %3142 = vmatpush1.bf16.msra.mxu0 %v863
    %3143 = vmatprep.subr.bf16.mxu0 %v868
    %3144 = vmatpush1.bf16.msra.mxu0 %v867
    %3145 = vmatprep.subr.bf16.mxu0 0
    %3146 = vmatpush1.bf16.msra.mxu0 0
    %3147 = vmatprep.subr.bf16.mxu0 0
    %3148 = vmatpush1.bf16.msra.mxu0 0
    %3149 = vmatprep.subr.bf16.mxu0 0
    %3150 = vmatpush1.bf16.msra.mxu0 0
    %3151 = vmatprep.subr.bf16.mxu0 0
    %3152 = vmatpush1.bf16.msra.mxu0 0
    %3153 = vmatprep.subr.bf16.mxu0 0
    %3154 = vmatpush1.bf16.msra.mxu0 0
    %3155 = vmatprep.subr.bf16.mxu0 0
    %3156 = vmatpush1.bf16.msra.mxu0 0
    %3157 = vmatprep.subr.bf16.mxu0 0
    %3158 = vmatpush1.bf16.msra.mxu0 0
    %3159 = vmatprep.subr.bf16.mxu0 0
    %3160 = vmatpush1.bf16.msra.mxu0 0
    %3161 = vmatprep.mubr.bf16.mxu0 0
    %3162 = vmatmul.mubr.bf16.gmra.mrb[0].mxu0 %v2929
    %v3163 = vpop.f32.mrb[0].mxu0
    %v3164 = vadd.f32 %v3082, %v3163
    %v3165 = vpop.f32.mrb[0].mxu0
    %v3166 = vadd.f32 %v3084, %v3165
    %v3167 = vpop.f32.mrb[0].mxu0
    %v3168 = vpop.f32.mrb[0].mxu0
    %3169 = vdwg.mxu0
    %3170 = vmatprep.subr.bf16.mxu0 %v842
    %3171 = vmatpush1.bf16.msra.mxu0 %v841
    %3172 = vmatprep.subr.bf16.mxu0 %v846
    %3173 = vmatpush1.bf16.msra.mxu0 %v845
    %3174 = vmatprep.subr.bf16.mxu0 %v850
    %3175 = vmatpush1.bf16.msra.mxu0 %v849
    %3176 = vmatprep.subr.bf16.mxu0 %v854
    %3177 = vmatpush1.bf16.msra.mxu0 %v853
    %3178 = vmatprep.subr.bf16.mxu0 %v858
    %3179 = vmatpush1.bf16.msra.mxu0 %v857
    %3180 = vmatprep.subr.bf16.mxu0 %v862
    %3181 = vmatpush1.bf16.msra.mxu0 %v861
    %3182 = vmatprep.subr.bf16.mxu0 %v866
    %3183 = vmatpush1.bf16.msra.mxu0 %v865
    %3184 = vmatprep.subr.bf16.mxu0 %v870
    %3185 = vmatpush1.bf16.msra.mxu0 %v869
    %3186 = vmatprep.subr.bf16.mxu0 0
    %3187 = vmatpush1.bf16.msra.mxu0 0
    %3188 = vmatprep.subr.bf16.mxu0 0
    %3189 = vmatpush1.bf16.msra.mxu0 0
    %3190 = vmatprep.subr.bf16.mxu0 0
    %3191 = vmatpush1.bf16.msra.mxu0 0
    %3192 = vmatprep.subr.bf16.mxu0 0
    %3193 = vmatpush1.bf16.msra.mxu0 0
    %3194 = vmatprep.subr.bf16.mxu0 0
    %3195 = vmatpush1.bf16.msra.mxu0 0
    %3196 = vmatprep.subr.bf16.mxu0 0
    %3197 = vmatpush1.bf16.msra.mxu0 0
    %3198 = vmatprep.subr.bf16.mxu0 0
    %3199 = vmatpush1.bf16.msra.mxu0 0
    %3200 = vmatprep.subr.bf16.mxu0 0
    %3201 = vmatpush1.bf16.msra.mxu0 0
    %3202 = vmatprep.mubr.bf16.mxu0 0
    %3203 = vmatmul.mubr.bf16.gmra.mrb[0].mxu0 %v2929
    %v3204 = vpop.f32.mrb[0].mxu0
    %v3205 = vadd.f32 %v3123, %v3204
    %v3206 = vpop.f32.mrb[0].mxu0
    %v3207 = vadd.f32 %v3125, %v3206
    %v3208 = vpop.f32.mrb[0].mxu0
    %v3209 = vpop.f32.mrb[0].mxu0
    %3210 = vdwg.mxu0
    %v3211 = vadd.f32 %v3164, %v105
    %v3212 = vadd.f32 %v3166, %v109
    %v3213 = vadd.f32 %v3205, %v113
    %v3214 = vadd.f32 %v3207, %v117
    %v3215 = vxor.u32 %v3211, 2147483648
    %v3216 = vmul.f32 %v3215, 1.442695
    %v3217 = vpow.pop %v3216
    %v3218 = vadd.f32 %v3217, 1.0
    %v3219 = vrcp.pop %v3218
    %v3220 = vmul.f32 1.0, %v3219
    %v3221 = vxor.u32 %v3212, 2147483648
    %v3222 = vmul.f32 %v3221, 1.442695
    %v3223 = vpow.pop %v3222
    %v3224 = vadd.f32 %v3223, 1.0
    %v3225 = vrcp.pop %v3224
    %v3226 = vmul.f32 1.0, %v3225
    %v3227 = vtanh.pop %v3213
    %v3228 = vxor.u32 %v3214, 2147483648
    %v3229 = vmul.f32 %v3228, 1.442695
    %v3230 = vpow.pop %v3229
    %v3231 = vadd.f32 %v3230, 1.0
    %v3232 = vrcp.pop %v3231
    %v3233 = vmul.f32 1.0, %v3232
    %v3234 = vmul.f32 %v3226, %v2922
    %v3235 = vmul.f32 %v3220, %v3227
    %v3236 = vadd.f32 %v3234, %v3235
    %v3237 = vtanh.pop %v3236
    %v3238 = vmul.f32 %v3233, %v3237
    %v3239 = vsel %vm2928, %v3238, %v2921
    %v3240 = vsel %vm2928, %v3236, %v2922
    %vm3241 = vcmp.gt.s32.totalorder %v99, 8
    %v3242 = vsel %vm3241, 1, 0
    %3243 = vset.pattern.permute.xlu0 0
    %3244 = vperm.xlu0 %3243, %v3242
    %v3245 = vpop.permute.xlu0 %3244
    %vm3246 = vcmp.eq.s32.totalorder %v3245, 1
    %v3247 = vpack.c.bf16 %v3239, %v3239
    %v3248 = vld [vmem:[#allocation2 + $0x100] sm:$0xff]
    %v3249 = vld [vmem:[#allocation2 + $0x108] sm:$0xff]
    %v3250 = vld [vmem:[#allocation2 + $0x110] sm:$0xff]
    %v3251 = vld [vmem:[#allocation2 + $0x118] sm:$0xff]
    %3252 = vmatprep.subr.bf16.mxu0 %v293
    %3253 = vmatpush1.bf16.msra.mxu0 %v292
    %3254 = vmatprep.subr.bf16.mxu0 %v297
    %3255 = vmatpush1.bf16.msra.mxu0 %v296
    %3256 = vmatprep.subr.bf16.mxu0 %v301
    %3257 = vmatpush1.bf16.msra.mxu0 %v300
    %3258 = vmatprep.subr.bf16.mxu0 %v305
    %3259 = vmatpush1.bf16.msra.mxu0 %v304
    %3260 = vmatprep.subr.bf16.mxu0 %v309
    %3261 = vmatpush1.bf16.msra.mxu0 %v308
    %3262 = vmatprep.subr.bf16.mxu0 %v313
    %3263 = vmatpush1.bf16.msra.mxu0 %v312
    %3264 = vmatprep.subr.bf16.mxu0 %v317
    %3265 = vmatpush1.bf16.msra.mxu0 %v316
    %3266 = vmatprep.subr.bf16.mxu0 %v321
    %3267 = vmatpush1.bf16.msra.mxu0 %v320
    %3268 = vmatprep.subr.bf16.mxu0 0
    %3269 = vmatpush1.bf16.msra.mxu0 0
    %3270 = vmatprep.subr.bf16.mxu0 0
    %3271 = vmatpush1.bf16.msra.mxu0 0
    %3272 = vmatprep.subr.bf16.mxu0 0
    %3273 = vmatpush1.bf16.msra.mxu0 0
    %3274 = vmatprep.subr.bf16.mxu0 0
    %3275 = vmatpush1.bf16.msra.mxu0 0
    %3276 = vmatprep.subr.bf16.mxu0 0
    %3277 = vmatpush1.bf16.msra.mxu0 0
    %3278 = vmatprep.subr.bf16.mxu0 0
    %3279 = vmatpush1.bf16.msra.mxu0 0
    %3280 = vmatprep.subr.bf16.mxu0 0
    %3281 = vmatpush1.bf16.msra.mxu0 0
    %3282 = vmatprep.subr.bf16.mxu0 0
    %3283 = vmatpush1.bf16.msra.mxu0 0
    %3284 = vmatprep.mubr.bf16.mxu0 0
    %3285 = vmatmul.mubr.bf16.gmra.mrb[0].mxu0 %v3046
    %v3286 = vpop.f32.mrb[0].mxu0
    %v3287 = vadd.f32 0.0, %v3286
    %v3288 = vpop.f32.mrb[0].mxu0
    %v3289 = vadd.f32 0.0, %v3288
    %v3290 = vpop.f32.mrb[0].mxu0
    %v3291 = vpop.f32.mrb[0].mxu0
    %3292 = vdwg.mxu0
    %3293 = vmatprep.subr.bf16.mxu0 %v295
    %3294 = vmatpush1.bf16.msra.mxu0 %v294
    %3295 = vmatprep.subr.bf16.mxu0 %v299
    %3296 = vmatpush1.bf16.msra.mxu0 %v298
    %3297 = vmatprep.subr.bf16.mxu0 %v303
    %3298 = vmatpush1.bf16.msra.mxu0 %v302
    %3299 = vmatprep.subr.bf16.mxu0 %v307
    %3300 = vmatpush1.bf16.msra.mxu0 %v306
    %3301 = vmatprep.subr.bf16.mxu0 %v311
    %3302 = vmatpush1.bf16.msra.mxu0 %v310
    %3303 = vmatprep.subr.bf16.mxu0 %v315
    %3304 = vmatpush1.bf16.msra.mxu0 %v314
    %3305 = vmatprep.subr.bf16.mxu0 %v319
    %3306 = vmatpush1.bf16.msra.mxu0 %v318
    %3307 = vmatprep.subr.bf16.mxu0 %v323
    %3308 = vmatpush1.bf16.msra.mxu0 %v322
    %3309 = vmatprep.subr.bf16.mxu0 0
    %3310 = vmatpush1.bf16.msra.mxu0 0
    %3311 = vmatprep.subr.bf16.mxu0 0
    %3312 = vmatpush1.bf16.msra.mxu0 0
    %3313 = vmatprep.subr.bf16.mxu0 0
    %3314 = vmatpush1.bf16.msra.mxu0 0
    %3315 = vmatprep.subr.bf16.mxu0 0
    %3316 = vmatpush1.bf16.msra.mxu0 0
    %3317 = vmatprep.subr.bf16.mxu0 0
    %3318 = vmatpush1.bf16.msra.mxu0 0
    %3319 = vmatprep.subr.bf16.mxu0 0
    %3320 = vmatpush1.bf16.msra.mxu0 0
    %3321 = vmatprep.subr.bf16.mxu0 0
    %3322 = vmatpush1.bf16.msra.mxu0 0
    %3323 = vmatprep.subr.bf16.mxu0 0
    %3324 = vmatpush1.bf16.msra.mxu0 0
    %3325 = vmatprep.mubr.bf16.mxu0 0
    %3326 = vmatmul.mubr.bf16.gmra.mrb[0].mxu0 %v3046
    %v3327 = vpop.f32.mrb[0].mxu0
    %v3328 = vadd.f32 0.0, %v3327
    %v3329 = vpop.f32.mrb[0].mxu0
    %v3330 = vadd.f32 0.0, %v3329
    %v3331 = vpop.f32.mrb[0].mxu0
    %v3332 = vpop.f32.mrb[0].mxu0
    %3333 = vdwg.mxu0
    %v3334 = vadd.f32 %v3248, %v3287
    %v3335 = vadd.f32 %v3249, %v3289
    %v3336 = vadd.f32 %v3250, %v3328
    %v3337 = vadd.f32 %v3251, %v3330
    %v3338 = vxor.u32 %v3334, 2147483648
    %v3339 = vmul.f32 %v3338, 1.442695
    %v3340 = vpow.pop %v3339
    %v3341 = vadd.f32 %v3340, 1.0
    %v3342 = vrcp.pop %v3341
    %v3343 = vmul.f32 1.0, %v3342
    %v3344 = vxor.u32 %v3335, 2147483648
    %v3345 = vmul.f32 %v3344, 1.442695
    %v3346 = vpow.pop %v3345
    %v3347 = vadd.f32 %v3346, 1.0
    %v3348 = vrcp.pop %v3347
    %v3349 = vmul.f32 1.0, %v3348
    %v3350 = vtanh.pop %v3336
    %v3351 = vxor.u32 %v3337, 2147483648
    %v3352 = vmul.f32 %v3351, 1.442695
    %v3353 = vpow.pop %v3352
    %v3354 = vadd.f32 %v3353, 1.0
    %v3355 = vrcp.pop %v3354
    %v3356 = vmul.f32 1.0, %v3355
    %v3357 = vmul.f32 %v3349, %v3045
    %v3358 = vmul.f32 %v3343, %v3350
    %v3359 = vadd.f32 %v3357, %v3358
    %v3360 = vtanh.pop %v3359
    %v3361 = vmul.f32 %v3356, %v3360
    %v3362 = vsel %vm3246, %v3361, %v3044
    %v3363 = vsel %vm3246, %v3359, %v3045
    %v3364 = vpack.c.bf16 %v3362, %v3362
    %3365 = vmatprep.subr.bf16.mxu0 %v598
    %3366 = vmatpush1.bf16.msra.mxu0 %v597
    %3367 = vmatprep.subr.bf16.mxu0 %v602
    %3368 = vmatpush1.bf16.msra.mxu0 %v601
    %3369 = vmatprep.subr.bf16.mxu0 %v606
    %3370 = vmatpush1.bf16.msra.mxu0 %v605
    %3371 = vmatprep.subr.bf16.mxu0 %v610
    %3372 = vmatpush1.bf16.msra.mxu0 %v609
    %3373 = vmatprep.subr.bf16.mxu0 %v614
    %3374 = vmatpush1.bf16.msra.mxu0 %v613
    %3375 = vmatprep.subr.bf16.mxu0 %v618
    %3376 = vmatpush1.bf16.msra.mxu0 %v617
    %3377 = vmatprep.subr.bf16.mxu0 %v622
    %3378 = vmatpush1.bf16.msra.mxu0 %v621
    %3379 = vmatprep.subr.bf16.mxu0 %v626
    %3380 = vmatpush1.bf16.msra.mxu0 %v625
    %3381 = vmatprep.subr.bf16.mxu0 0
    %3382 = vmatpush1.bf16.msra.mxu0 0
    %3383 = vmatprep.subr.bf16.mxu0 0
    %3384 = vmatpush1.bf16.msra.mxu0 0
    %3385 = vmatprep.subr.bf16.mxu0 0
    %3386 = vmatpush1.bf16.msra.mxu0 0
    %3387 = vmatprep.subr.bf16.mxu0 0
    %3388 = vmatpush1.bf16.msra.mxu0 0
    %3389 = vmatprep.subr.bf16.mxu0 0
    %3390 = vmatpush1.bf16.msra.mxu0 0
    %3391 = vmatprep.subr.bf16.mxu0 0
    %3392 = vmatpush1.bf16.msra.mxu0 0
    %3393 = vmatprep.subr.bf16.mxu0 0
    %3394 = vmatpush1.bf16.msra.mxu0 0
    %3395 = vmatprep.subr.bf16.mxu0 0
    %3396 = vmatpush1.bf16.msra.mxu0 0
    %3397 = vmatprep.mubr.bf16.mxu0 0
    %3398 = vmatmul.mubr.bf16.gmra.mrb[0].mxu0 %v3364
    %v3399 = vpop.f32.mrb[0].mxu0
    %v3400 = vadd.f32 0.0, %v3399
    %v3401 = vpop.f32.mrb[0].mxu0
    %v3402 = vadd.f32 0.0, %v3401
    %v3403 = vpop.f32.mrb[0].mxu0
    %v3404 = vpop.f32.mrb[0].mxu0
    %3405 = vdwg.mxu0
    %3406 = vmatprep.subr.bf16.mxu0 %v600
    %3407 = vmatpush1.bf16.msra.mxu0 %v599
    %3408 = vmatprep.subr.bf16.mxu0 %v604
    %3409 = vmatpush1.bf16.msra.mxu0 %v603
    %3410 = vmatprep.subr.bf16.mxu0 %v608
    %3411 = vmatpush1.bf16.msra.mxu0 %v607
    %3412 = vmatprep.subr.bf16.mxu0 %v612
    %3413 = vmatpush1.bf16.msra.mxu0 %v611
    %3414 = vmatprep.subr.bf16.mxu0 %v616
    %3415 = vmatpush1.bf16.msra.mxu0 %v615
    %3416 = vmatprep.subr.bf16.mxu0 %v620
    %3417 = vmatpush1.bf16.msra.mxu0 %v619
    %3418 = vmatprep.subr.bf16.mxu0 %v624
    %3419 = vmatpush1.bf16.msra.mxu0 %v623
    %3420 = vmatprep.subr.bf16.mxu0 %v628
    %3421 = vmatpush1.bf16.msra.mxu0 %v627
    %3422 = vmatprep.subr.bf16.mxu0 0
    %3423 = vmatpush1.bf16.msra.mxu0 0
    %3424 = vmatprep.subr.bf16.mxu0 0
    %3425 = vmatpush1.bf16.msra.mxu0 0
    %3426 = vmatprep.subr.bf16.mxu0 0
    %3427 = vmatpush1.bf16.msra.mxu0 0
    %3428 = vmatprep.subr.bf16.mxu0 0
    %3429 = vmatpush1.bf16.msra.mxu0 0
    %3430 = vmatprep.subr.bf16.mxu0 0
    %3431 = vmatpush1.bf16.msra.mxu0 0
    %3432 = vmatprep.subr.bf16.mxu0 0
    %3433 = vmatpush1.bf16.msra.mxu0 0
    %3434 = vmatprep.subr.bf16.mxu0 0
    %3435 = vmatpush1.bf16.msra.mxu0 0
    %3436 = vmatprep.subr.bf16.mxu0 0
    %3437 = vmatpush1.bf16.msra.mxu0 0
    %3438 = vmatprep.mubr.bf16.mxu0 0
    %3439 = vmatmul.mubr.bf16.gmra.mrb[0].mxu0 %v3364
    %v3440 = vpop.f32.mrb[0].mxu0
    %v3441 = vadd.f32 0.0, %v3440
    %v3442 = vpop.f32.mrb[0].mxu0
    %v3443 = vadd.f32 0.0, %v3442
    %v3444 = vpop.f32.mrb[0].mxu0
    %v3445 = vpop.f32.mrb[0].mxu0
    %3446 = vdwg.mxu0
    %3447 = vmatprep.subr.bf16.mxu0 %v840
    %3448 = vmatpush1.bf16.msra.mxu0 %v839
    %3449 = vmatprep.subr.bf16.mxu0 %v844
    %3450 = vmatpush1.bf16.msra.mxu0 %v843
    %3451 = vmatprep.subr.bf16.mxu0 %v848
    %3452 = vmatpush1.bf16.msra.mxu0 %v847
    %3453 = vmatprep.subr.bf16.mxu0 %v852
    %3454 = vmatpush1.bf16.msra.mxu0 %v851
    %3455 = vmatprep.subr.bf16.mxu0 %v856
    %3456 = vmatpush1.bf16.msra.mxu0 %v855
    %3457 = vmatprep.subr.bf16.mxu0 %v860
    %3458 = vmatpush1.bf16.msra.mxu0 %v859
    %3459 = vmatprep.subr.bf16.mxu0 %v864
    %3460 = vmatpush1.bf16.msra.mxu0 %v863
    %3461 = vmatprep.subr.bf16.mxu0 %v868
    %3462 = vmatpush1.bf16.msra.mxu0 %v867
    %3463 = vmatprep.subr.bf16.mxu0 0
    %3464 = vmatpush1.bf16.msra.mxu0 0
    %3465 = vmatprep.subr.bf16.mxu0 0
    %3466 = vmatpush1.bf16.msra.mxu0 0
    %3467 = vmatprep.subr.bf16.mxu0 0
    %3468 = vmatpush1.bf16.msra.mxu0 0
    %3469 = vmatprep.subr.bf16.mxu0 0
    %3470 = vmatpush1.bf16.msra.mxu0 0
    %3471 = vmatprep.subr.bf16.mxu0 0
    %3472 = vmatpush1.bf16.msra.mxu0 0
    %3473 = vmatprep.subr.bf16.mxu0 0
    %3474 = vmatpush1.bf16.msra.mxu0 0
    %3475 = vmatprep.subr.bf16.mxu0 0
    %3476 = vmatpush1.bf16.msra.mxu0 0
    %3477 = vmatprep.subr.bf16.mxu0 0
    %3478 = vmatpush1.bf16.msra.mxu0 0
    %3479 = vmatprep.mubr.bf16.mxu0 0
    %3480 = vmatmul.mubr.bf16.gmra.mrb[0].mxu0 %v3247
    %v3481 = vpop.f32.mrb[0].mxu0
    %v3482 = vadd.f32 %v3400, %v3481
    %v3483 = vpop.f32.mrb[0].mxu0
    %v3484 = vadd.f32 %v3402, %v3483
    %v3485 = vpop.f32.mrb[0].mxu0
    %v3486 = vpop.f32.mrb[0].mxu0
    %3487 = vdwg.mxu0
    %3488 = vmatprep.subr.bf16.mxu0 %v842
    %3489 = vmatpush1.bf16.msra.mxu0 %v841
    %3490 = vmatprep.subr.bf16.mxu0 %v846
    %3491 = vmatpush1.bf16.msra.mxu0 %v845
    %3492 = vmatprep.subr.bf16.mxu0 %v850
    %3493 = vmatpush1.bf16.msra.mxu0 %v849
    %3494 = vmatprep.subr.bf16.mxu0 %v854
    %3495 = vmatpush1.bf16.msra.mxu0 %v853
    %3496 = vmatprep.subr.bf16.mxu0 %v858
    %3497 = vmatpush1.bf16.msra.mxu0 %v857
    %3498 = vmatprep.subr.bf16.mxu0 %v862
    %3499 = vmatpush1.bf16.msra.mxu0 %v861
    %3500 = vmatprep.subr.bf16.mxu0 %v866
    %3501 = vmatpush1.bf16.msra.mxu0 %v865
    %3502 = vmatprep.subr.bf16.mxu0 %v870
    %3503 = vmatpush1.bf16.msra.mxu0 %v869
    %3504 = vmatprep.subr.bf16.mxu0 0
    %3505 = vmatpush1.bf16.msra.mxu0 0
    %3506 = vmatprep.subr.bf16.mxu0 0
    %3507 = vmatpush1.bf16.msra.mxu0 0
    %3508 = vmatprep.subr.bf16.mxu0 0
    %3509 = vmatpush1.bf16.msra.mxu0 0
    %3510 = vmatprep.subr.bf16.mxu0 0
    %3511 = vmatpush1.bf16.msra.mxu0 0
    %3512 = vmatprep.subr.bf16.mxu0 0
    %3513 = vmatpush1.bf16.msra.mxu0 0
    %3514 = vmatprep.subr.bf16.mxu0 0
    %3515 = vmatpush1.bf16.msra.mxu0 0
    %3516 = vmatprep.subr.bf16.mxu0 0
    %3517 = vmatpush1.bf16.msra.mxu0 0
    %3518 = vmatprep.subr.bf16.mxu0 0
    %3519 = vmatpush1.bf16.msra.mxu0 0
    %3520 = vmatprep.mubr.bf16.mxu0 0
    %3521 = vmatmul.mubr.bf16.gmra.mrb[0].mxu0 %v3247
    %v3522 = vpop.f32.mrb[0].mxu0
    %v3523 = vadd.f32 %v3441, %v3522
    %v3524 = vpop.f32.mrb[0].mxu0
    %v3525 = vadd.f32 %v3443, %v3524
    %v3526 = vpop.f32.mrb[0].mxu0
    %v3527 = vpop.f32.mrb[0].mxu0
    %3528 = vdwg.mxu0
    %v3529 = vadd.f32 %v3482, %v105
    %v3530 = vadd.f32 %v3484, %v109
    %v3531 = vadd.f32 %v3523, %v113
    %v3532 = vadd.f32 %v3525, %v117
    %v3533 = vxor.u32 %v3529, 2147483648
    %v3534 = vmul.f32 %v3533, 1.442695
    %v3535 = vpow.pop %v3534
    %v3536 = vadd.f32 %v3535, 1.0
    %v3537 = vrcp.pop %v3536
    %v3538 = vmul.f32 1.0, %v3537
    %v3539 = vxor.u32 %v3530, 2147483648
    %v3540 = vmul.f32 %v3539, 1.442695
    %v3541 = vpow.pop %v3540
    %v3542 = vadd.f32 %v3541, 1.0
    %v3543 = vrcp.pop %v3542
    %v3544 = vmul.f32 1.0, %v3543
    %v3545 = vtanh.pop %v3531
    %v3546 = vxor.u32 %v3532, 2147483648
    %v3547 = vmul.f32 %v3546, 1.442695
    %v3548 = vpow.pop %v3547
    %v3549 = vadd.f32 %v3548, 1.0
    %v3550 = vrcp.pop %v3549
    %v3551 = vmul.f32 1.0, %v3550
    %v3552 = vmul.f32 %v3544, %v3240
    %v3553 = vmul.f32 %v3538, %v3545
    %v3554 = vadd.f32 %v3552, %v3553
    %v3555 = vtanh.pop %v3554
    %v3556 = vmul.f32 %v3551, %v3555
    %v3557 = vsel %vm3246, %v3556, %v3239
    %v3558 = vsel %vm3246, %v3554, %v3240
    %vm3559 = vcmp.gt.s32.totalorder %v99, 9
    %v3560 = vsel %vm3559, 1, 0
    %3561 = vset.pattern.permute.xlu0 0
    %3562 = vperm.xlu0 %3561, %v3560
    %v3563 = vpop.permute.xlu0 %3562
    %vm3564 = vcmp.eq.s32.totalorder %v3563, 1
    %v3565 = vpack.c.bf16 %v3557, %v3557
    %v3566 = vld [vmem:[#allocation2 + $0x120] sm:$0xff]
    %v3567 = vld [vmem:[#allocation2 + $0x128] sm:$0xff]
    %v3568 = vld [vmem:[#allocation2 + $0x130] sm:$0xff]
    %v3569 = vld [vmem:[#allocation2 + $0x138] sm:$0xff]
    %3570 = vmatprep.subr.bf16.mxu0 %v293
    %3571 = vmatpush1.bf16.msra.mxu0 %v292
    %3572 = vmatprep.subr.bf16.mxu0 %v297
    %3573 = vmatpush1.bf16.msra.mxu0 %v296
    %3574 = vmatprep.subr.bf16.mxu0 %v301
    %3575 = vmatpush1.bf16.msra.mxu0 %v300
    %3576 = vmatprep.subr.bf16.mxu0 %v305
    %3577 = vmatpush1.bf16.msra.mxu0 %v304
    %3578 = vmatprep.subr.bf16.mxu0 %v309
    %3579 = vmatpush1.bf16.msra.mxu0 %v308
    %3580 = vmatprep.subr.bf16.mxu0 %v313
    %3581 = vmatpush1.bf16.msra.mxu0 %v312
    %3582 = vmatprep.subr.bf16.mxu0 %v317
    %3583 = vmatpush1.bf16.msra.mxu0 %v316
    %3584 = vmatprep.subr.bf16.mxu0 %v321
    %3585 = vmatpush1.bf16.msra.mxu0 %v320
    %3586 = vmatprep.subr.bf16.mxu0 0
    %3587 = vmatpush1.bf16.msra.mxu0 0
    %3588 = vmatprep.subr.bf16.mxu0 0
    %3589 = vmatpush1.bf16.msra.mxu0 0
    %3590 = vmatprep.subr.bf16.mxu0 0
    %3591 = vmatpush1.bf16.msra.mxu0 0
    %3592 = vmatprep.subr.bf16.mxu0 0
    %3593 = vmatpush1.bf16.msra.mxu0 0
    %3594 = vmatprep.subr.bf16.mxu0 0
    %3595 = vmatpush1.bf16.msra.mxu0 0
    %3596 = vmatprep.subr.bf16.mxu0 0
    %3597 = vmatpush1.bf16.msra.mxu0 0
    %3598 = vmatprep.subr.bf16.mxu0 0
    %3599 = vmatpush1.bf16.msra.mxu0 0
    %3600 = vmatprep.subr.bf16.mxu0 0
    %3601 = vmatpush1.bf16.msra.mxu0 0
    %3602 = vmatprep.mubr.bf16.mxu0 0
    %3603 = vmatmul.mubr.bf16.gmra.mrb[0].mxu0 %v3364
    %v3604 = vpop.f32.mrb[0].mxu0
    %v3605 = vadd.f32 0.0, %v3604
    %v3606 = vpop.f32.mrb[0].mxu0
    %v3607 = vadd.f32 0.0, %v3606
    %v3608 = vpop.f32.mrb[0].mxu0
    %v3609 = vpop.f32.mrb[0].mxu0
    %3610 = vdwg.mxu0
    %3611 = vmatprep.subr.bf16.mxu0 %v295
    %3612 = vmatpush1.bf16.msra.mxu0 %v294
    %3613 = vmatprep.subr.bf16.mxu0 %v299
    %3614 = vmatpush1.bf16.msra.mxu0 %v298
    %3615 = vmatprep.subr.bf16.mxu0 %v303
    %3616 = vmatpush1.bf16.msra.mxu0 %v302
    %3617 = vmatprep.subr.bf16.mxu0 %v307
    %3618 = vmatpush1.bf16.msra.mxu0 %v306
    %3619 = vmatprep.subr.bf16.mxu0 %v311
    %3620 = vmatpush1.bf16.msra.mxu0 %v310
    %3621 = vmatprep.subr.bf16.mxu0 %v315
    %3622 = vmatpush1.bf16.msra.mxu0 %v314
    %3623 = vmatprep.subr.bf16.mxu0 %v319
    %3624 = vmatpush1.bf16.msra.mxu0 %v318
    %3625 = vmatprep.subr.bf16.mxu0 %v323
    %3626 = vmatpush1.bf16.msra.mxu0 %v322
    %3627 = vmatprep.subr.bf16.mxu0 0
    %3628 = vmatpush1.bf16.msra.mxu0 0
    %3629 = vmatprep.subr.bf16.mxu0 0
    %3630 = vmatpush1.bf16.msra.mxu0 0
    %3631 = vmatprep.subr.bf16.mxu0 0
    %3632 = vmatpush1.bf16.msra.mxu0 0
    %3633 = vmatprep.subr.bf16.mxu0 0
    %3634 = vmatpush1.bf16.msra.mxu0 0
    %3635 = vmatprep.subr.bf16.mxu0 0
    %3636 = vmatpush1.bf16.msra.mxu0 0
    %3637 = vmatprep.subr.bf16.mxu0 0
    %3638 = vmatpush1.bf16.msra.mxu0 0
    %3639 = vmatprep.subr.bf16.mxu0 0
    %3640 = vmatpush1.bf16.msra.mxu0 0
    %3641 = vmatprep.subr.bf16.mxu0 0
    %3642 = vmatpush1.bf16.msra.mxu0 0
    %3643 = vmatprep.mubr.bf16.mxu0 0
    %3644 = vmatmul.mubr.bf16.gmra.mrb[0].mxu0 %v3364
    %v3645 = vpop.f32.mrb[0].mxu0
    %v3646 = vadd.f32 0.0, %v3645
    %v3647 = vpop.f32.mrb[0].mxu0
    %v3648 = vadd.f32 0.0, %v3647
    %v3649 = vpop.f32.mrb[0].mxu0
    %v3650 = vpop.f32.mrb[0].mxu0
    %3651 = vdwg.mxu0
    %v3652 = vadd.f32 %v3566, %v3605
    %v3653 = vadd.f32 %v3567, %v3607
    %v3654 = vadd.f32 %v3568, %v3646
    %v3655 = vadd.f32 %v3569, %v3648
    %v3656 = vxor.u32 %v3652, 2147483648
    %v3657 = vmul.f32 %v3656, 1.442695
    %v3658 = vpow.pop %v3657
    %v3659 = vadd.f32 %v3658, 1.0
    %v3660 = vrcp.pop %v3659
    %v3661 = vmul.f32 1.0, %v3660
    %v3662 = vxor.u32 %v3653, 2147483648
    %v3663 = vmul.f32 %v3662, 1.442695
    %v3664 = vpow.pop %v3663
    %v3665 = vadd.f32 %v3664, 1.0
    %v3666 = vrcp.pop %v3665
    %v3667 = vmul.f32 1.0, %v3666
    %v3668 = vtanh.pop %v3654
    %v3669 = vxor.u32 %v3655, 2147483648
    %v3670 = vmul.f32 %v3669, 1.442695
    %v3671 = vpow.pop %v3670
    %v3672 = vadd.f32 %v3671, 1.0
    %v3673 = vrcp.pop %v3672
    %v3674 = vmul.f32 1.0, %v3673
    %v3675 = vmul.f32 %v3667, %v3363
    %v3676 = vmul.f32 %v3661, %v3668
    %v3677 = vadd.f32 %v3675, %v3676
    %v3678 = vtanh.pop %v3677
    %v3679 = vmul.f32 %v3674, %v3678
    %v3680 = vsel %vm3564, %v3679, %v3362
    %v3681 = vpack.c.bf16 %v3680, %v3680
    %3682 = vmatprep.subr.bf16.mxu0 %v598
    %3683 = vmatpush1.bf16.msra.mxu0 %v597
    %3684 = vmatprep.subr.bf16.mxu0 %v602
    %3685 = vmatpush1.bf16.msra.mxu0 %v601
    %3686 = vmatprep.subr.bf16.mxu0 %v606
    %3687 = vmatpush1.bf16.msra.mxu0 %v605
    %3688 = vmatprep.subr.bf16.mxu0 %v610
    %3689 = vmatpush1.bf16.msra.mxu0 %v609
    %3690 = vmatprep.subr.bf16.mxu0 %v614
    %3691 = vmatpush1.bf16.msra.mxu0 %v613
    %3692 = vmatprep.subr.bf16.mxu0 %v618
    %3693 = vmatpush1.bf16.msra.mxu0 %v617
    %3694 = vmatprep.subr.bf16.mxu0 %v622
    %3695 = vmatpush1.bf16.msra.mxu0 %v621
    %3696 = vmatprep.subr.bf16.mxu0 %v626
    %3697 = vmatpush1.bf16.msra.mxu0 %v625
    %3698 = vmatprep.subr.bf16.mxu0 0
    %3699 = vmatpush1.bf16.msra.mxu0 0
    %3700 = vmatprep.subr.bf16.mxu0 0
    %3701 = vmatpush1.bf16.msra.mxu0 0
    %3702 = vmatprep.subr.bf16.mxu0 0
    %3703 = vmatpush1.bf16.msra.mxu0 0
    %3704 = vmatprep.subr.bf16.mxu0 0
    %3705 = vmatpush1.bf16.msra.mxu0 0
    %3706 = vmatprep.subr.bf16.mxu0 0
    %3707 = vmatpush1.bf16.msra.mxu0 0
    %3708 = vmatprep.subr.bf16.mxu0 0
    %3709 = vmatpush1.bf16.msra.mxu0 0
    %3710 = vmatprep.subr.bf16.mxu0 0
    %3711 = vmatpush1.bf16.msra.mxu0 0
    %3712 = vmatprep.subr.bf16.mxu0 0
    %3713 = vmatpush1.bf16.msra.mxu0 0
    %3714 = vmatprep.mubr.bf16.mxu0 0
    %3715 = vmatmul.mubr.bf16.gmra.mrb[0].mxu0 %v3681
    %v3716 = vpop.f32.mrb[0].mxu0
    %v3717 = vadd.f32 0.0, %v3716
    %v3718 = vpop.f32.mrb[0].mxu0
    %v3719 = vadd.f32 0.0, %v3718
    %v3720 = vpop.f32.mrb[0].mxu0
    %v3721 = vpop.f32.mrb[0].mxu0
    %3722 = vdwg.mxu0
    %3723 = vmatprep.subr.bf16.mxu0 %v600
    %3724 = vmatpush1.bf16.msra.mxu0 %v599
    %3725 = vmatprep.subr.bf16.mxu0 %v604
    %3726 = vmatpush1.bf16.msra.mxu0 %v603
    %3727 = vmatprep.subr.bf16.mxu0 %v608
    %3728 = vmatpush1.bf16.msra.mxu0 %v607
    %3729 = vmatprep.subr.bf16.mxu0 %v612
    %3730 = vmatpush1.bf16.msra.mxu0 %v611
    %3731 = vmatprep.subr.bf16.mxu0 %v616
    %3732 = vmatpush1.bf16.msra.mxu0 %v615
    %3733 = vmatprep.subr.bf16.mxu0 %v620
    %3734 = vmatpush1.bf16.msra.mxu0 %v619
    %3735 = vmatprep.subr.bf16.mxu0 %v624
    %3736 = vmatpush1.bf16.msra.mxu0 %v623
    %3737 = vmatprep.subr.bf16.mxu0 %v628
    %3738 = vmatpush1.bf16.msra.mxu0 %v627
    %3739 = vmatprep.subr.bf16.mxu0 0
    %3740 = vmatpush1.bf16.msra.mxu0 0
    %3741 = vmatprep.subr.bf16.mxu0 0
    %3742 = vmatpush1.bf16.msra.mxu0 0
    %3743 = vmatprep.subr.bf16.mxu0 0
    %3744 = vmatpush1.bf16.msra.mxu0 0
    %3745 = vmatprep.subr.bf16.mxu0 0
    %3746 = vmatpush1.bf16.msra.mxu0 0
    %3747 = vmatprep.subr.bf16.mxu0 0
    %3748 = vmatpush1.bf16.msra.mxu0 0
    %3749 = vmatprep.subr.bf16.mxu0 0
    %3750 = vmatpush1.bf16.msra.mxu0 0
    %3751 = vmatprep.subr.bf16.mxu0 0
    %3752 = vmatpush1.bf16.msra.mxu0 0
    %3753 = vmatprep.subr.bf16.mxu0 0
    %3754 = vmatpush1.bf16.msra.mxu0 0
    %3755 = vmatprep.mubr.bf16.mxu0 0
    %3756 = vmatmul.mubr.bf16.gmra.mrb[0].mxu0 %v3681
    %v3757 = vpop.f32.mrb[0].mxu0
    %v3758 = vadd.f32 0.0, %v3757
    %v3759 = vpop.f32.mrb[0].mxu0
    %v3760 = vadd.f32 0.0, %v3759
    %v3761 = vpop.f32.mrb[0].mxu0
    %v3762 = vpop.f32.mrb[0].mxu0
    %3763 = vdwg.mxu0
    %3764 = vmatprep.subr.bf16.mxu0 %v840
    %3765 = vmatpush1.bf16.msra.mxu0 %v839
    %3766 = vmatprep.subr.bf16.mxu0 %v844
    %3767 = vmatpush1.bf16.msra.mxu0 %v843
    %3768 = vmatprep.subr.bf16.mxu0 %v848
    %3769 = vmatpush1.bf16.msra.mxu0 %v847
    %3770 = vmatprep.subr.bf16.mxu0 %v852
    %3771 = vmatpush1.bf16.msra.mxu0 %v851
    %3772 = vmatprep.subr.bf16.mxu0 %v856
    %3773 = vmatpush1.bf16.msra.mxu0 %v855
    %3774 = vmatprep.subr.bf16.mxu0 %v860
    %3775 = vmatpush1.bf16.msra.mxu0 %v859
    %3776 = vmatprep.subr.bf16.mxu0 %v864
    %3777 = vmatpush1.bf16.msra.mxu0 %v863
    %3778 = vmatprep.subr.bf16.mxu0 %v868
    %3779 = vmatpush1.bf16.msra.mxu0 %v867
    %3780 = vmatprep.subr.bf16.mxu0 0
    %3781 = vmatpush1.bf16.msra.mxu0 0
    %3782 = vmatprep.subr.bf16.mxu0 0
    %3783 = vmatpush1.bf16.msra.mxu0 0
    %3784 = vmatprep.subr.bf16.mxu0 0
    %3785 = vmatpush1.bf16.msra.mxu0 0
    %3786 = vmatprep.subr.bf16.mxu0 0
    %3787 = vmatpush1.bf16.msra.mxu0 0
    %3788 = vmatprep.subr.bf16.mxu0 0
    %3789 = vmatpush1.bf16.msra.mxu0 0
    %3790 = vmatprep.subr.bf16.mxu0 0
    %3791 = vmatpush1.bf16.msra.mxu0 0
    %3792 = vmatprep.subr.bf16.mxu0 0
    %3793 = vmatpush1.bf16.msra.mxu0 0
    %3794 = vmatprep.subr.bf16.mxu0 0
    %3795 = vmatpush1.bf16.msra.mxu0 0
    %3796 = vmatprep.mubr.bf16.mxu0 0
    %3797 = vmatmul.mubr.bf16.gmra.mrb[0].mxu0 %v3565
    %v3798 = vpop.f32.mrb[0].mxu0
    %v3799 = vadd.f32 %v3717, %v3798
    %v3800 = vpop.f32.mrb[0].mxu0
    %v3801 = vadd.f32 %v3719, %v3800
    %v3802 = vpop.f32.mrb[0].mxu0
    %v3803 = vpop.f32.mrb[0].mxu0
    %3804 = vdwg.mxu0
    %3805 = vmatprep.subr.bf16.mxu0 %v842
    %3806 = vmatpush1.bf16.msra.mxu0 %v841
    %3807 = vmatprep.subr.bf16.mxu0 %v846
    %3808 = vmatpush1.bf16.msra.mxu0 %v845
    %3809 = vmatprep.subr.bf16.mxu0 %v850
    %3810 = vmatpush1.bf16.msra.mxu0 %v849
    %3811 = vmatprep.subr.bf16.mxu0 %v854
    %3812 = vmatpush1.bf16.msra.mxu0 %v853
    %3813 = vmatprep.subr.bf16.mxu0 %v858
    %3814 = vmatpush1.bf16.msra.mxu0 %v857
    %3815 = vmatprep.subr.bf16.mxu0 %v862
    %3816 = vmatpush1.bf16.msra.mxu0 %v861
    %3817 = vmatprep.subr.bf16.mxu0 %v866
    %3818 = vmatpush1.bf16.msra.mxu0 %v865
    %3819 = vmatprep.subr.bf16.mxu0 %v870
    %3820 = vmatpush1.bf16.msra.mxu0 %v869
    %3821 = vmatprep.subr.bf16.mxu0 0
    %3822 = vmatpush1.bf16.msra.mxu0 0
    %3823 = vmatprep.subr.bf16.mxu0 0
    %3824 = vmatpush1.bf16.msra.mxu0 0
    %3825 = vmatprep.subr.bf16.mxu0 0
    %3826 = vmatpush1.bf16.msra.mxu0 0
    %3827 = vmatprep.subr.bf16.mxu0 0
    %3828 = vmatpush1.bf16.msra.mxu0 0
    %3829 = vmatprep.subr.bf16.mxu0 0
    %3830 = vmatpush1.bf16.msra.mxu0 0
    %3831 = vmatprep.subr.bf16.mxu0 0
    %3832 = vmatpush1.bf16.msra.mxu0 0
    %3833 = vmatprep.subr.bf16.mxu0 0
    %3834 = vmatpush1.bf16.msra.mxu0 0
    %3835 = vmatprep.subr.bf16.mxu0 0
    %3836 = vmatpush1.bf16.msra.mxu0 0
    %3837 = vmatprep.mubr.bf16.mxu0 0
    %3838 = vmatmul.mubr.bf16.gmra.mrb[0].mxu0 %v3565
    %v3839 = vpop.f32.mrb[0].mxu0
    %v3840 = vadd.f32 %v3758, %v3839
    %v3841 = vpop.f32.mrb[0].mxu0
    %v3842 = vadd.f32 %v3760, %v3841
    %v3843 = vpop.f32.mrb[0].mxu0
    %v3844 = vpop.f32.mrb[0].mxu0
    %3845 = vdwg.mxu0
    %v3846 = vadd.f32 %v3799, %v105
    %v3847 = vadd.f32 %v3801, %v109
    %v3848 = vadd.f32 %v3840, %v113
    %v3849 = vadd.f32 %v3842, %v117
    %v3850 = vxor.u32 %v3846, 2147483648
    %v3851 = vmul.f32 %v3850, 1.442695
    %v3852 = vpow.pop %v3851
    %v3853 = vadd.f32 %v3852, 1.0
    %v3854 = vrcp.pop %v3853
    %v3855 = vmul.f32 1.0, %v3854
    %v3856 = vxor.u32 %v3847, 2147483648
    %v3857 = vmul.f32 %v3856, 1.442695
    %v3858 = vpow.pop %v3857
    %v3859 = vadd.f32 %v3858, 1.0
    %v3860 = vrcp.pop %v3859
    %v3861 = vmul.f32 1.0, %v3860
    %v3862 = vtanh.pop %v3848
    %v3863 = vxor.u32 %v3849, 2147483648
    %v3864 = vmul.f32 %v3863, 1.442695
    %v3865 = vpow.pop %v3864
    %v3866 = vadd.f32 %v3865, 1.0
    %v3867 = vrcp.pop %v3866
    %v3868 = vmul.f32 1.0, %v3867
    %v3869 = vmul.f32 %v3861, %v3558
    %v3870 = vmul.f32 %v3855, %v3862
    %v3871 = vadd.f32 %v3869, %v3870
    %v3872 = vtanh.pop %v3871
    %v3873 = vmul.f32 %v3868, %v3872
    %v3874 = vsel %vm3564, %v3873, %v3557
    %v3875 = vpack.c.bf16 %v3874, %v3874
    %v3876 = vld [vmem:[#allocation10] sm:$0xf]
    %v3877 = vld [vmem:[#allocation10 + $0x4] sm:$0xf]
    %v3878 = vld [vmem:[#allocation10 + $0x8] sm:$0xf]
    %v3879 = vld [vmem:[#allocation10 + $0xc] sm:$0xf]
    %v3880 = vld [vmem:[#allocation10 + $0x10] sm:$0xf]
    %v3881 = vld [vmem:[#allocation10 + $0x14] sm:$0xf]
    %v3882 = vld [vmem:[#allocation10 + $0x18] sm:$0xf]
    %v3883 = vld [vmem:[#allocation10 + $0x1c] sm:$0xf]
    %v3884 = vld [vmem:[#allocation10 + $0x20] sm:$0xf]
    %v3885 = vld [vmem:[#allocation10 + $0x24] sm:$0xf]
    %v3886 = vld [vmem:[#allocation10 + $0x28] sm:$0xf]
    %v3887 = vld [vmem:[#allocation10 + $0x2c] sm:$0xf]
    %v3888 = vld [vmem:[#allocation10 + $0x30] sm:$0xf]
    %v3889 = vld [vmem:[#allocation10 + $0x34] sm:$0xf]
    %v3890 = vld [vmem:[#allocation10 + $0x38] sm:$0xf]
    %v3891 = vld [vmem:[#allocation10 + $0x3c] sm:$0xf]
    %v3892 = vld [vmem:[%s7] sm:$0x1]
    %v3894 = vlaneseq
    %v3895 = vshrl.u32 %v3894, 7
    %v3896 = vsub.s32 0, %v3895
    %v3897 = vrot.slane %v3892, %v3896
    %v3915 = vunpack.c.l.b16 %v3876
    %v3916 = vunpack.c.l.b16 %v3877
    %v3917 = vunpack.c.l.b16 %v3878
    %v3918 = vunpack.c.l.b16 %v3879
    %v3919 = vunpack.c.l.b16 %v3880
    %v3920 = vunpack.c.l.b16 %v3881
    %v3921 = vunpack.c.l.b16 %v3882
    %v3922 = vunpack.c.l.b16 %v3883
    %v3923 = vunpack.c.l.b16 %v3884
    %v3924 = vunpack.c.l.b16 %v3885
    %v3925 = vunpack.c.l.b16 %v3886
    %v3926 = vunpack.c.l.b16 %v3887
    %v3927 = vunpack.c.l.b16 %v3888
    %v3928 = vunpack.c.l.b16 %v3889
    %v3929 = vunpack.c.l.b16 %v3890
    %v3930 = vunpack.c.l.b16 %v3891
    %v3931 = vpack.c.b16 %v3916, %v3915
    %v3932 = vpack.c.b16 %v3918, %v3917
    %v3933 = vpack.c.b16 %v3920, %v3919
    %v3934 = vpack.c.b16 %v3922, %v3921
    %v3935 = vpack.c.b16 %v3924, %v3923
    %v3936 = vpack.c.b16 %v3926, %v3925
    %v3937 = vpack.c.b16 %v3928, %v3927
    %v3938 = vpack.c.b16 %v3930, %v3929
    %3947 = vmatprep.subr.bf16.mxu0 0
    %3948 = vmatpush1.bf16.msra.mxu0 %v3931
    %3949 = vmatprep.subr.bf16.mxu0 0
    %3950 = vmatpush1.bf16.msra.mxu0 %v3932
    %3951 = vmatprep.subr.bf16.mxu0 0
    %3952 = vmatpush1.bf16.msra.mxu0 %v3933
    %3953 = vmatprep.subr.bf16.mxu0 0
    %3954 = vmatpush1.bf16.msra.mxu0 %v3934
    %3955 = vmatprep.subr.bf16.mxu0 0
    %3956 = vmatpush1.bf16.msra.mxu0 %v3935
    %3957 = vmatprep.subr.bf16.mxu0 0
    %3958 = vmatpush1.bf16.msra.mxu0 %v3936
    %3959 = vmatprep.subr.bf16.mxu0 0
    %3960 = vmatpush1.bf16.msra.mxu0 %v3937
    %3961 = vmatprep.subr.bf16.mxu0 0
    %3962 = vmatpush1.bf16.msra.mxu0 %v3938
    %3963 = vmatprep.subr.bf16.mxu0 0
    %3964 = vmatpush1.bf16.msra.mxu0 0
    %3965 = vmatprep.subr.bf16.mxu0 0
    %3966 = vmatpush1.bf16.msra.mxu0 0
    %3967 = vmatprep.subr.bf16.mxu0 0
    %3968 = vmatpush1.bf16.msra.mxu0 0
    %3969 = vmatprep.subr.bf16.mxu0 0
    %3970 = vmatpush1.bf16.msra.mxu0 0
    %3971 = vmatprep.subr.bf16.mxu0 0
    %3972 = vmatpush1.bf16.msra.mxu0 0
    %3973 = vmatprep.subr.bf16.mxu0 0
    %3974 = vmatpush1.bf16.msra.mxu0 0
    %3975 = vmatprep.subr.bf16.mxu0 0
    %3976 = vmatpush1.bf16.msra.mxu0 0
    %3977 = vmatprep.subr.bf16.mxu0 0
    %3978 = vmatpush1.bf16.msra.mxu0 0
    %3979 = vmatprep.mubr.bf16.mxu0 0
    %3980 = vmatmul.mubr.bf16.gmra.mrb[0].mxu0 %v3875
    %v3981 = vpop.f32.mrb[0].mxu0
    %v3982 = vadd.f32 %v3897, %v3981
    %v3983 = vpop.f32.mrb[0].mxu0
    %v3984 = vpop.f32.mrb[0].mxu0
    %v3985 = vpop.f32.mrb[0].mxu0
    %3986 = vdwg.mxu0
    %3987 = vst [vmem:[#allocation11] sm:$0xff] %v3982
    // Predicated region
    $region54: #{tpu_custom_call.1} parent=1 // pred_check
      _
    $region55: #{tpu_custom_call.1} parent=1 // pred_check_branch
      %3989 = sbr.rel (0) target = $region57
    $region56: #{tpu_custom_call.1} parent=1 // pred_region
      %s3991 = ssub.s32 128, 128
      %3992 = vsyncadd [#allocation4], %s3991
      %s3994 = sshll.u32 [#allocation11], 4
      %s3995 = int_to_ptr.vmem [resolvable:$true] %s3994
      %3997 = dma.vmem_to_hbm [thread:$0]  %s3995, 128, %s8, [#allocation4]
    $region57: #{tpu_custom_call.1} parent=1 // pred_fallthru
      _
    // Predicated region
    $region58: #{tpu_custom_call.1} parent=1 // pred_check
      _
    $region59: #{tpu_custom_call.1} parent=1 // pred_check_branch
      %3999 = sbr.rel (0) target = $region61
    $region60: #{tpu_custom_call.1} parent=1 // pred_region
      %4000 = dma.done [#allocation4], 128
    $region61: #{tpu_custom_call.1} parent=1 // pred_fallthru
      _
    %4001 = vsyncpa [#allocation3], 1
    %4002 = vsyncpa [#allocation6], 1
    %4003 = vsyncpa [#allocation9], 1
    %4004 = vsyncpa [#allocation4], 1

</llo_original>
